<compile_context>
chip_gen: v7x
topology: tpu7x:2x2x1
jax: 0.10.0
libtpu: 0.0.40
codegen_flags: <defaults>
</compile_context>

<pallas_src>
import functools
import math

import jax
import jax.numpy as jnp
from jax import lax
from jax.experimental import pallas as pl
from jax.experimental.pallas import tpu as pltpu


def _round_up(x, m):
    return ((x + m - 1) // m) * m


def _default_vmem_limit():
    # Generation-aware scoped-VMEM budget: ~3/4 of physical VMEM, capped.
    # v7x (64 MiB)  -> 48 MiB ; v5e/v6e (128 MiB) -> 96 MiB.
    try:
        cap = pltpu.get_tpu_info().vmem_capacity_bytes
        return int(min(cap * 3 // 4, 100 * 1024 * 1024))
    except Exception:
        return 48 * 1024 * 1024


_VMEM_LIMIT = _default_vmem_limit()


def _pick_time_tile(T, max_tile):
    """Pick a lane-dense time tile. Returns (tile, padded_T)."""
    if T <= max_tile:
        return T, T                      # full-dim block (bypasses (8,128) rule)
    for t in (512, 256, 128):
        if t <= max_tile and T % t == 0:
            return t, T
    t = min(256, max_tile)
    return t, _round_up(T, t)            # pad time, slice back afterwards


# ---------------------------------------------------------------------------
# NCT projection kernel:  y[b, :, t] = w @ x[b, :, t] + b
# Weight (Cout x Cin) is resident in VMEM (index map constant -> fetched once);
# grid tiles only over (batch, time).
# ---------------------------------------------------------------------------
def _nct_linear_kernel(x_ref, w_ref, b_ref, o_ref):
    # x: [1, Cin, tt] (f32 or bf16), w: [Cout, Cin] bf16, b: [Cout, 1] f32
    x = x_ref[0].astype(jnp.bfloat16)
    y = jnp.dot(w_ref[...], x, preferred_element_type=jnp.float32)   # [Cout, tt]
    o_ref[0] = (y + b_ref[...]).astype(o_ref.dtype)


def pallas_linear_nct(x, w, b, *, out_dtype=jnp.bfloat16, max_time_tile=512):
    """x: [B, Cin, T], w: [Cout, Cin] bf16, b: [Cout, 1] f32 -> [B, Cout, T]."""
    B, Cin, T = x.shape
    Cout = w.shape[0]
    tt, Tp = _pick_time_tile(T, max_time_tile)
    if Tp != T:
        x = jnp.pad(x, ((0, 0), (0, 0), (0, Tp - T)))

    out = pl.pallas_call(
        _nct_linear_kernel,
        out_shape=jax.ShapeDtypeStruct((B, Cout, Tp), out_dtype),
        grid=(B, Tp // tt),
        in_specs=[
            pl.BlockSpec((1, Cin, tt), lambda bi, ti: (bi, 0, ti)),
            pl.BlockSpec((Cout, Cin), lambda bi, ti: (0, 0)),
            pl.BlockSpec((Cout, 1), lambda bi, ti: (0, 0)),
        ],
        out_specs=pl.BlockSpec((1, Cout, tt), lambda bi, ti: (bi, 0, ti)),
        compiler_params=pltpu.CompilerParams(
            dimension_semantics=("parallel", "parallel"),
            vmem_limit_bytes=_VMEM_LIMIT,
        ),
    )(x, w, b)

    if Tp != T:
        out = out[:, :, :T]   # padded key/query columns never reach attention
    return out


# ---------------------------------------------------------------------------
# Multi-head attention kernel with fused output projection.
# One grid step = (one batch element, one Tq tile), all heads.
# ---------------------------------------------------------------------------
def _mha_attention_kernel(q_ref, kv_ref, wo_ref, bo_ref, o_ref, acc_ref,
                          *, n_heads, k_channels):
    # q_ref:  [1, C, tq]   bf16 (1/sqrt(Dk) already folded into the Q projection)
    # kv_ref: [1, 2C, Tk]  bf16 (k rows [0, C), v rows [C, 2C))
    # wo_ref: [Cout, C]    bf16 (resident), bo_ref: [Cout, 1] f32
    # o_ref:  [1, Cout, tq]
    # acc_ref:[C, tq]      bf16 VMEM scratch (per-head outputs, channel-major)
    C = n_heads * k_channels

    for h in range(n_heads):
        lo = h * k_channels
        hi = lo + k_channels
        q_h = q_ref[0, lo:hi, :]              # [Dk, tq]
        k_h = kv_ref[0, lo:hi, :]             # [Dk, Tk]
        v_h = kv_ref[0, C + lo:C + hi, :]     # [Dk, Tk]

        # scores[tq, Tk] = q_h^T @ k_h (contract Dk); scale folded into wq/bq.
        s = lax.dot_general(
            q_h, k_h, (((0,), (0,)), ((), ())),
            preferred_element_type=jnp.float32,
        )

        # softmax over the key axis (f32 math, EUP exp, approx reciprocal)
        m = jnp.max(s, axis=-1, keepdims=True)
        e = jnp.exp(s - m)
        denom = jnp.sum(e, axis=-1, keepdims=True)
        p = (e * pl.reciprocal(denom, approx=True)).astype(jnp.bfloat16)

        # p_dropout = 0.0 -> identity
        # o_h[Dk, tq] = v_h @ p^T (contract Tk) — channel-major, matches NCT.
        o_h = lax.dot_general(
            v_h, p, (((1,), (1,)), ((), ())),
            preferred_element_type=jnp.float32,
        )
        acc_ref[lo:hi, :] = o_h.astype(acc_ref.dtype)

    # Fused output projection: out = wo @ concat_heads + bo  -> [Cout, tq]
    out = jnp.dot(wo_ref[...], acc_ref[...], preferred_element_type=jnp.float32)
    o_ref[0] = (out + bo_ref[...]).astype(o_ref.dtype)


def pallas_attention(q, kv, wo, bo, n_heads, *, out_dtype=jnp.float32,
                     max_q_tile=256):
    """q: [B, C, Tq] bf16, kv: [B, 2C, Tk] bf16 -> [B, Cout, Tq]."""
    B, C, Tq = q.shape
    Tk = kv.shape[2]
    Cout = wo.shape[0]

    tq, Tqp = _pick_time_tile(Tq, max_q_tile)
    if Tqp != Tq:
        # zero-padded query columns give finite (uniform-softmax) rows that are
        # sliced away below; keys are never padded, so no masking is needed.
        q = jnp.pad(q, ((0, 0), (0, 0), (0, Tqp - Tq)))

    kern = functools.partial(
        _mha_attention_kernel, n_heads=n_heads, k_channels=C // n_heads
    )
    # TODO(synk): for very long Tk, add a Tk grid axis ("arbitrary") with
    # flash-style online-softmax scratch (m, l, acc) and -inf masking of padded keys.
    out = pl.pallas_call(
        kern,
        out_shape=jax.ShapeDtypeStruct((B, Cout, Tqp), out_dtype),
        grid=(B, Tqp // tq),
        in_specs=[
            pl.BlockSpec((1, C, tq), lambda bi, ti: (bi, 0, ti)),
            pl.BlockSpec((1, 2 * C, Tk), lambda bi, ti: (bi, 0, 0)),
            pl.BlockSpec((Cout, C), lambda bi, ti: (0, 0)),
            pl.BlockSpec((Cout, 1), lambda bi, ti: (0, 0)),
        ],
        out_specs=pl.BlockSpec((1, Cout, tq), lambda bi, ti: (bi, 0, ti)),
        scratch_shapes=[pltpu.VMEM((C, tq), jnp.bfloat16)],
        compiler_params=pltpu.CompilerParams(
            dimension_semantics=("parallel", "parallel"),
            vmem_limit_bytes=_VMEM_LIMIT,
        ),
    )(q, kv, wo, bo)

    if Tqp != Tq:
        out = out[:, :, :Tq]
    return out


# ---------------------------------------------------------------------------
# Module wrapper
# ---------------------------------------------------------------------------
def init_params(key, channels, out_channels, n_heads):
    """Deterministic synthetic init.

    Weights stay in PyTorch [Cout, Cin] layout (NCT kernels compute w @ x),
    pre-cast to bf16. K/V weights and biases are fused ([2C, C] / [2C, 1]).
    The softmax scale 1/sqrt(k_channels) is folded into wq/bq.
    """
    def xavier(k, fan_out, fan_in):
        bound = math.sqrt(6.0 / (fan_in + fan_out))
        return jax.random.uniform(k, (fan_out, fan_in), jnp.float32, -bound, bound)

    ks = jax.random.split(key, 8)
    scale = 1.0 / math.sqrt(channels // n_heads)
    wq = xavier(ks[0], channels, channels) * scale
    bq = jax.random.uniform(ks[1], (channels,), jnp.float32, -0.1, 0.1) * scale
    wk = xavier(ks[2], channels, channels)
    bk = jax.random.uniform(ks[3], (channels,), jnp.float32, -0.1, 0.1)
    wv = xavier(ks[4], channels, channels)
    bv = jax.random.uniform(ks[5], (channels,), jnp.float32, -0.1, 0.1)
    wo = xavier(ks[6], out_channels, channels)
    bo = jax.random.uniform(ks[7], (out_channels,), jnp.float32, -0.1, 0.1)
    return {
        "wq": wq.astype(jnp.bfloat16),
        "bq": bq.reshape(channels, 1),
        "wkv": jnp.concatenate([wk, wv], axis=0).astype(jnp.bfloat16),
        "bkv": jnp.concatenate([bk, bv], axis=0).reshape(2 * channels, 1),
        "wo": wo.astype(jnp.bfloat16),
        "bo": bo.reshape(out_channels, 1),
    }


@functools.partial(jax.jit, static_argnames=("n_heads",))
def multi_head_attention_forward(x, c, params, n_heads):
    """x: [B, C, Tq], c: [B, C, Tk]  ->  [B, out_channels, Tq]."""
    # q = conv_q(x.mT).mT with the softmax scale folded in; kv fused projection.
    q = pallas_linear_nct(x, params["wq"], params["bq"])        # [B, C, Tq]  bf16
    kv = pallas_linear_nct(c, params["wkv"], params["bkv"])     # [B, 2C, Tk] bf16
    # Attention with the output projection fused into the kernel epilogue.
    return pallas_attention(q, kv, params["wo"], params["bo"], n_heads)


# TODO(synk): window_size / relative position embeddings, attn_mask, block_length
# masking and proximal_bias branches are not exercised (module defaults: all
# None) and are omitted.

if __name__ == "__main__":
    B = 2
    channels = 128
    out_channels = 128
    n_heads = 4
    T = 64

    key = jax.random.PRNGKey(0)
    kx, kc, kp = jax.random.split(key, 3)
    x = jax.random.normal(kx, (B, channels, T), jnp.float32)   # [B, C, Tq]
    c = jax.random.normal(kc, (B, channels, T), jnp.float32)   # [B, C, Tk]
    params = init_params(kp, channels, out_channels, n_heads)

    out = multi_head_attention_forward(x, c, params, n_heads)
    out = jax.block_until_ready(out)
    assert out.shape == (B, out_channels, T)
    assert bool(jnp.all(jnp.isfinite(out)))
    print("KERNEL_OK")
</pallas_src>

<mosaic_0001>
module attributes {stable_mosaic.version = 11 : i64} {
  func.func @_nct_linear_kernel(%arg0: i32, %arg1: i32, %arg2: memref<1x128x64xf32, #tpu.memory_space<vmem>>, %arg3: memref<256x128xbf16, #tpu.memory_space<vmem>>, %arg4: memref<256x1xf32, #tpu.memory_space<vmem>>, %arg5: memref<1x256x64xbf16, #tpu.memory_space<vmem>>) attributes {dimension_semantics = [#tpu.dimension_semantics<parallel>, #tpu.dimension_semantics<parallel>], iteration_bounds = array<i64: 2, 1>, scalar_prefetch = 0 : i64, scratch_operands = 0 : i64, tpu.core_type = #tpu.core_type<tc>, window_params = [{transform_indices = @transform_0, window_bounds = array<i64: 1, 128, 64>}, {pipeline_mode = #tpu.pipeline_mode<synchronous>, transform_indices = @transform_1, window_bounds = array<i64: 256, 128>}, {pipeline_mode = #tpu.pipeline_mode<synchronous>, transform_indices = @transform_2, window_bounds = array<i64: 256, 1>}, {transform_indices = @transform_3, window_bounds = array<i64: 1, 256, 64>}]} {
    %c0 = arith.constant 0 : index
    %c0_0 = arith.constant 0 : index
    %c0_1 = arith.constant 0 : index
    %0 = vector.load %arg2[%c0, %c0_0, %c0_1] : memref<1x128x64xf32, #tpu.memory_space<vmem>>, vector<1x128x64xf32>
    %1 = vector.shape_cast %0 : vector<1x128x64xf32> to vector<128x64xf32>
    %2 = arith.truncf %1 : vector<128x64xf32> to vector<128x64xbf16>
    %c0_2 = arith.constant 0 : index
    %c0_3 = arith.constant 0 : index
    %3 = vector.load %arg3[%c0_2, %c0_3] : memref<256x128xbf16, #tpu.memory_space<vmem>>, vector<256x128xbf16>
    %cst = arith.constant dense<0.000000e+00> : vector<256x64xf32>
    %4 = tpu.matmul %3, %2, %cst {dimension_numbers = #tpu.dot_dimension_numbers<[1], [0], [0], [1], [0, 0, 1, 1], [], []>} : vector<256x128xbf16>, vector<128x64xbf16>, vector<256x64xf32> -> vector<256x64xf32>
    %c0_4 = arith.constant 0 : index
    %c0_5 = arith.constant 0 : index
    %5 = vector.load %arg4[%c0_4, %c0_5] : memref<256x1xf32, #tpu.memory_space<vmem>>, vector<256x1xf32>
    %6 = vector.broadcast %5 : vector<256x1xf32> to vector<256x64xf32>
    %7 = arith.addf %4, %6 : vector<256x64xf32>
    %8 = arith.truncf %7 : vector<256x64xf32> to vector<256x64xbf16>
    %c0_6 = arith.constant 0 : index
    %c0_7 = arith.constant 0 : index
    %c0_8 = arith.constant 0 : index
    %9 = vector.load %arg5[%c0_6, %c0_7, %c0_8] : memref<1x256x64xbf16, #tpu.memory_space<vmem>>, vector<1x256x64xbf16>
    %10 = vector.shape_cast %9 : vector<1x256x64xbf16> to vector<256x64xbf16>
    %11 = vector.shape_cast %8 : vector<256x64xbf16> to vector<1x256x64xbf16>
    tpu.vector_store %arg5[%c0_6, %c0_7, %c0_8], %11 {strides = array<i32>} : memref<1x256x64xbf16, #tpu.memory_space<vmem>>, vector<1x256x64xbf16>,
    return
  }
  func.func @transform_0(%arg0: i32, %arg1: i32) -> (i32, i32, i32) {
    %c0_i32 = arith.constant 0 : i32
    %c0_i32_0 = arith.constant 0 : i32
    return %arg0, %c0_i32, %arg1 : i32, i32, i32
  }
  func.func @transform_1(%arg0: i32, %arg1: i32) -> (i32, i32) {
    %c0_i32 = arith.constant 0 : i32
    %c0_i32_0 = arith.constant 0 : i32
    %c0_i32_1 = arith.constant 0 : i32
    return %c0_i32, %c0_i32_0 : i32, i32
  }
  func.func @transform_2(%arg0: i32, %arg1: i32) -> (i32, i32) {
    %c0_i32 = arith.constant 0 : i32
    %c0_i32_0 = arith.constant 0 : i32
    %c0_i32_1 = arith.constant 0 : i32
    return %c0_i32, %c0_i32_0 : i32, i32
  }
  func.func @transform_3(%arg0: i32, %arg1: i32) -> (i32, i32, i32) {
    %c0_i32 = arith.constant 0 : i32
    %c0_i32_0 = arith.constant 0 : i32
    return %arg0, %c0_i32, %arg1 : i32, i32, i32
  }
}

module attributes {stable_mosaic.version = 11 : i64} {
  func.func @_nct_linear_kernel(%arg0: i32, %arg1: i32, %arg2: memref<1x128x64xf32, #tpu.memory_space<vmem>>, %arg3: memref<128x128xbf16, #tpu.memory_space<vmem>>, %arg4: memref<128x1xf32, #tpu.memory_space<vmem>>, %arg5: memref<1x128x64xbf16, #tpu.memory_space<vmem>>) attributes {dimension_semantics = [#tpu.dimension_semantics<parallel>, #tpu.dimension_semantics<parallel>], iteration_bounds = array<i64: 2, 1>, scalar_prefetch = 0 : i64, scratch_operands = 0 : i64, tpu.core_type = #tpu.core_type<tc>, window_params = [{transform_indices = @transform_0, window_bounds = array<i64: 1, 128, 64>}, {pipeline_mode = #tpu.pipeline_mode<synchronous>, transform_indices = @transform_1, window_bounds = array<i64: 128, 128>}, {pipeline_mode = #tpu.pipeline_mode<synchronous>, transform_indices = @transform_2, window_bounds = array<i64: 128, 1>}, {transform_indices = @transform_3, window_bounds = array<i64: 1, 128, 64>}]} {
    %c0 = arith.constant 0 : index
    %c0_0 = arith.constant 0 : index
    %c0_1 = arith.constant 0 : index
    %0 = vector.load %arg2[%c0, %c0_0, %c0_1] : memref<1x128x64xf32, #tpu.memory_space<vmem>>, vector<1x128x64xf32>
    %1 = vector.shape_cast %0 : vector<1x128x64xf32> to vector<128x64xf32>
    %2 = arith.truncf %1 : vector<128x64xf32> to vector<128x64xbf16>
    %c0_2 = arith.constant 0 : index
    %c0_3 = arith.constant 0 : index
    %3 = vector.load %arg3[%c0_2, %c0_3] : memref<128x128xbf16, #tpu.memory_space<vmem>>, vector<128x128xbf16>
    %cst = arith.constant dense<0.000000e+00> : vector<128x64xf32>
    %4 = tpu.matmul %3, %2, %cst {dimension_numbers = #tpu.dot_dimension_numbers<[1], [0], [0], [1], [0, 0, 1, 1], [], []>} : vector<128x128xbf16>, vector<128x64xbf16>, vector<128x64xf32> -> vector<128x64xf32>
    %c0_4 = arith.constant 0 : index
    %c0_5 = arith.constant 0 : index
    %5 = vector.load %arg4[%c0_4, %c0_5] : memref<128x1xf32, #tpu.memory_space<vmem>>, vector<128x1xf32>
    %6 = vector.broadcast %5 : vector<128x1xf32> to vector<128x64xf32>
    %7 = arith.addf %4, %6 : vector<128x64xf32>
    %8 = arith.truncf %7 : vector<128x64xf32> to vector<128x64xbf16>
    %c0_6 = arith.constant 0 : index
    %c0_7 = arith.constant 0 : index
    %c0_8 = arith.constant 0 : index
    %9 = vector.load %arg5[%c0_6, %c0_7, %c0_8] : memref<1x128x64xbf16, #tpu.memory_space<vmem>>, vector<1x128x64xbf16>
    %10 = vector.shape_cast %9 : vector<1x128x64xbf16> to vector<128x64xbf16>
    %11 = vector.shape_cast %8 : vector<128x64xbf16> to vector<1x128x64xbf16>
    tpu.vector_store %arg5[%c0_6, %c0_7, %c0_8], %11 {strides = array<i32>} : memref<1x128x64xbf16, #tpu.memory_space<vmem>>, vector<1x128x64xbf16>,
    return
  }
  func.func @transform_0(%arg0: i32, %arg1: i32) -> (i32, i32, i32) {
    %c0_i32 = arith.constant 0 : i32
    %c0_i32_0 = arith.constant 0 : i32
    return %arg0, %c0_i32, %arg1 : i32, i32, i32
  }
  func.func @transform_1(%arg0: i32, %arg1: i32) -> (i32, i32) {
    %c0_i32 = arith.constant 0 : i32
    %c0_i32_0 = arith.constant 0 : i32
    %c0_i32_1 = arith.constant 0 : i32
    return %c0_i32, %c0_i32_0 : i32, i32
  }
  func.func @transform_2(%arg0: i32, %arg1: i32) -> (i32, i32) {
    %c0_i32 = arith.constant 0 : i32
    %c0_i32_0 = arith.constant 0 : i32
    %c0_i32_1 = arith.constant 0 : i32
    return %c0_i32, %c0_i32_0 : i32, i32
  }
  func.func @transform_3(%arg0: i32, %arg1: i32) -> (i32, i32, i32) {
    %c0_i32 = arith.constant 0 : i32
    %c0_i32_0 = arith.constant 0 : i32
    return %arg0, %c0_i32, %arg1 : i32, i32, i32
  }
}

module attributes {stable_mosaic.version = 11 : i64} {
  func.func @_mha_attention_kernel(%arg0: i32, %arg1: i32, %arg2: memref<1x128x64xbf16, #tpu.memory_space<vmem>>, %arg3: memref<1x256x64xbf16, #tpu.memory_space<vmem>>, %arg4: memref<128x128xbf16, #tpu.memory_space<vmem>>, %arg5: memref<128x1xf32, #tpu.memory_space<vmem>>, %arg6: memref<1x128x64xf32, #tpu.memory_space<vmem>>, %arg7: memref<128x64xbf16, #tpu.memory_space<vmem>>) attributes {dimension_semantics = [#tpu.dimension_semantics<parallel>, #tpu.dimension_semantics<parallel>], iteration_bounds = array<i64: 2, 1>, scalar_prefetch = 0 : i64, scratch_operands = 1 : i64, tpu.core_type = #tpu.core_type<tc>, window_params = [{transform_indices = @transform_0, window_bounds = array<i64: 1, 128, 64>}, {transform_indices = @transform_1, window_bounds = array<i64: 1, 256, 64>}, {pipeline_mode = #tpu.pipeline_mode<synchronous>, transform_indices = @transform_2, window_bounds = array<i64: 128, 128>}, {pipeline_mode = #tpu.pipeline_mode<synchronous>, transform_indices = @transform_3, window_bounds = array<i64: 128, 1>}, {transform_indices = @transform_4, window_bounds = array<i64: 1, 128, 64>}]} {
    %c0 = arith.constant 0 : index
    %c0_0 = arith.constant 0 : index
    %c0_1 = arith.constant 0 : index
    %0 = vector.load %arg2[%c0, %c0_0, %c0_1] : memref<1x128x64xbf16, #tpu.memory_space<vmem>>, vector<1x32x64xbf16>
    %1 = vector.shape_cast %0 : vector<1x32x64xbf16> to vector<32x64xbf16>
    %c0_2 = arith.constant 0 : index
    %c0_3 = arith.constant 0 : index
    %c0_4 = arith.constant 0 : index
    %2 = vector.load %arg3[%c0_2, %c0_3, %c0_4] : memref<1x256x64xbf16, #tpu.memory_space<vmem>>, vector<1x32x64xbf16>
    %3 = vector.shape_cast %2 : vector<1x32x64xbf16> to vector<32x64xbf16>
    %c0_5 = arith.constant 0 : index
    %c128 = arith.constant 128 : index
    %c0_6 = arith.constant 0 : index
    %4 = vector.load %arg3[%c0_5, %c128, %c0_6] : memref<1x256x64xbf16, #tpu.memory_space<vmem>>, vector<1x32x64xbf16>
    %5 = vector.shape_cast %4 : vector<1x32x64xbf16> to vector<32x64xbf16>
    %cst = arith.constant dense<0.000000e+00> : vector<64x64xf32>
    %6 = tpu.matmul %1, %3, %cst {dimension_numbers = #tpu.dot_dimension_numbers<[0], [0], [1], [1], [0, 1, 1, 1], [], []>} : vector<32x64xbf16>, vector<32x64xbf16>, vector<64x64xf32> -> vector<64x64xf32>
    %cst_7 = arith.constant dense<0xFF800000> : vector<64xf32>
    %7 = vector.multi_reduction <maximumf>, %6, %cst_7 [1] : vector<64x64xf32> to vector<64xf32>
    %8 = vector.shape_cast %7 : vector<64xf32> to vector<64x1xf32>
    %9 = vector.broadcast %8 : vector<64x1xf32> to vector<64x64xf32>
    %10 = arith.subf %6, %9 : vector<64x64xf32>
    %11 = math.exp %10 : vector<64x64xf32>
    %cst_8 = arith.constant dense<0.000000e+00> : vector<64xf32>
    %12 = vector.multi_reduction <add>, %11, %cst_8 [1] : vector<64x64xf32> to vector<64xf32>
    %13 = vector.shape_cast %12 : vector<64xf32> to vector<64x1xf32>
    %14 = tpu.reciprocal %13 {approx = true} : vector<64x1xf32> -> vector<64x1xf32>
    %15 = vector.broadcast %14 : vector<64x1xf32> to vector<64x64xf32>
    %16 = arith.mulf %11, %15 : vector<64x64xf32>
    %17 = arith.truncf %16 : vector<64x64xf32> to vector<64x64xbf16>
    %cst_9 = arith.constant dense<0.000000e+00> : vector<32x64xf32>
    %18 = tpu.matmul %5, %17, %cst_9 {dimension_numbers = #tpu.dot_dimension_numbers<[1], [1], [0], [0], [0, 0, 1, 0], [], []>} : vector<32x64xbf16>, vector<64x64xbf16>, vector<32x64xf32> -> vector<32x64xf32>
    %19 = arith.truncf %18 : vector<32x64xf32> to vector<32x64xbf16>
    %c0_10 = arith.constant 0 : index
    %c0_11 = arith.constant 0 : index
    %20 = vector.load %arg7[%c0_10, %c0_11] : memref<128x64xbf16, #tpu.memory_space<vmem>>, vector<32x64xbf16>
    tpu.vector_store %arg7[%c0_10, %c0_11], %19 {strides = array<i32>} : memref<128x64xbf16, #tpu.memory_space<vmem>>, vector<32x64xbf16>,
    %c0_12 = arith.constant 0 : index
    %c32 = arith.constant 32 : index
    %c0_13 = arith.constant 0 : index
    %21 = vector.load %arg2[%c0_12, %c32, %c0_13] : memref<1x128x64xbf16, #tpu.memory_space<vmem>>, vector<1x32x64xbf16>
    %22 = vector.shape_cast %21 : vector<1x32x64xbf16> to vector<32x64xbf16>
    %c0_14 = arith.constant 0 : index
    %c32_15 = arith.constant 32 : index
    %c0_16 = arith.constant 0 : index
    %23 = vector.load %arg3[%c0_14, %c32_15, %c0_16] : memref<1x256x64xbf16, #tpu.memory_space<vmem>>, vector<1x32x64xbf16>
    %24 = vector.shape_cast %23 : vector<1x32x64xbf16> to vector<32x64xbf16>
    %c0_17 = arith.constant 0 : index
    %c160 = arith.constant 160 : index
    %c0_18 = arith.constant 0 : index
    %25 = vector.load %arg3[%c0_17, %c160, %c0_18] : memref<1x256x64xbf16, #tpu.memory_space<vmem>>, vector<1x32x64xbf16>
    %26 = vector.shape_cast %25 : vector<1x32x64xbf16> to vector<32x64xbf16>
    %cst_19 = arith.constant dense<0.000000e+00> : vector<64x64xf32>
    %27 = tpu.matmul %22, %24, %cst_19 {dimension_numbers = #tpu.dot_dimension_numbers<[0], [0], [1], [1], [0, 1, 1, 1], [], []>} : vector<32x64xbf16>, vector<32x64xbf16>, vector<64x64xf32> -> vector<64x64xf32>
    %cst_20 = arith.constant dense<0xFF800000> : vector<64xf32>
    %28 = vector.multi_reduction <maximumf>, %27, %cst_20 [1] : vector<64x64xf32> to vector<64xf32>
    %29 = vector.shape_cast %28 : vector<64xf32> to vector<64x1xf32>
    %30 = vector.broadcast %29 : vector<64x1xf32> to vector<64x64xf32>
    %31 = arith.subf %27, %30 : vector<64x64xf32>
    %32 = math.exp %31 : vector<64x64xf32>
    %cst_21 = arith.constant dense<0.000000e+00> : vector<64xf32>
    %33 = vector.multi_reduction <add>, %32, %cst_21 [1] : vector<64x64xf32> to vector<64xf32>
    %34 = vector.shape_cast %33 : vector<64xf32> to vector<64x1xf32>
    %35 = tpu.reciprocal %34 {approx = true} : vector<64x1xf32> -> vector<64x1xf32>
    %36 = vector.broadcast %35 : vector<64x1xf32> to vector<64x64xf32>
    %37 = arith.mulf %32, %36 : vector<64x64xf32>
    %38 = arith.truncf %37 : vector<64x64xf32> to vector<64x64xbf16>
    %cst_22 = arith.constant dense<0.000000e+00> : vector<32x64xf32>
    %39 = tpu.matmul %26, %38, %cst_22 {dimension_numbers = #tpu.dot_dimension_numbers<[1], [1], [0], [0], [0, 0, 1, 0], [], []>} : vector<32x64xbf16>, vector<64x64xbf16>, vector<32x64xf32> -> vector<32x64xf32>
    %40 = arith.truncf %39 : vector<32x64xf32> to vector<32x64xbf16>
    %c32_23 = arith.constant 32 : index
    %c0_24 = arith.constant 0 : index
    %41 = vector.load %arg7[%c32_23, %c0_24] : memref<128x64xbf16, #tpu.memory_space<vmem>>, vector<32x64xbf16>
    tpu.vector_store %arg7[%c32_23, %c0_24], %40 {strides = array<i32>} : memref<128x64xbf16, #tpu.memory_space<vmem>>, vector<32x64xbf16>,
    %c0_25 = arith.constant 0 : index
    %c64 = arith.constant 64 : index
    %c0_26 = arith.constant 0 : index
    %42 = vector.load %arg2[%c0_25, %c64, %c0_26] : memref<1x128x64xbf16, #tpu.memory_space<vmem>>, vector<1x32x64xbf16>
    %43 = vector.shape_cast %42 : vector<1x32x64xbf16> to vector<32x64xbf16>
    %c0_27 = arith.constant 0 : index
    %c64_28 = arith.constant 64 : index
    %c0_29 = arith.constant 0 : index
    %44 = vector.load %arg3[%c0_27, %c64_28, %c0_29] : memref<1x256x64xbf16, #tpu.memory_space<vmem>>, vector<1x32x64xbf16>
    %45 = vector.shape_cast %44 : vector<1x32x64xbf16> to vector<32x64xbf16>
    %c0_30 = arith.constant 0 : index
    %c192 = arith.constant 192 : index
    %c0_31 = arith.constant 0 : index
    %46 = vector.load %arg3[%c0_30, %c192, %c0_31] : memref<1x256x64xbf16, #tpu.memory_space<vmem>>, vector<1x32x64xbf16>
    %47 = vector.shape_cast %46 : vector<1x32x64xbf16> to vector<32x64xbf16>
    %cst_32 = arith.constant dense<0.000000e+00> : vector<64x64xf32>
    %48 = tpu.matmul %43, %45, %cst_32 {dimension_numbers = #tpu.dot_dimension_numbers<[0], [0], [1], [1], [0, 1, 1, 1], [], []>} : vector<32x64xbf16>, vector<32x64xbf16>, vector<64x64xf32> -> vector<64x64xf32>
    %cst_33 = arith.constant dense<0xFF800000> : vector<64xf32>
    %49 = vector.multi_reduction <maximumf>, %48, %cst_33 [1] : vector<64x64xf32> to vector<64xf32>
    %50 = vector.shape_cast %49 : vector<64xf32> to vector<64x1xf32>
    %51 = vector.broadcast %50 : vector<64x1xf32> to vector<64x64xf32>
    %52 = arith.subf %48, %51 : vector<64x64xf32>
    %53 = math.exp %52 : vector<64x64xf32>
    %cst_34 = arith.constant dense<0.000000e+00> : vector<64xf32>
    %54 = vector.multi_reduction <add>, %53, %cst_34 [1] : vector<64x64xf32> to vector<64xf32>
    %55 = vector.shape_cast %54 : vector<64xf32> to vector<64x1xf32>
    %56 = tpu.reciprocal %55 {approx = true} : vector<64x1xf32> -> vector<64x1xf32>
    %57 = vector.broadcast %56 : vector<64x1xf32> to vector<64x64xf32>
    %58 = arith.mulf %53, %57 : vector<64x64xf32>
    %59 = arith.truncf %58 : vector<64x64xf32> to vector<64x64xbf16>
    %cst_35 = arith.constant dense<0.000000e+00> : vector<32x64xf32>
    %60 = tpu.matmul %47, %59, %cst_35 {dimension_numbers = #tpu.dot_dimension_numbers<[1], [1], [0], [0], [0, 0, 1, 0], [], []>} : vector<32x64xbf16>, vector<64x64xbf16>, vector<32x64xf32> -> vector<32x64xf32>
    %61 = arith.truncf %60 : vector<32x64xf32> to vector<32x64xbf16>
    %c64_36 = arith.constant 64 : index
    %c0_37 = arith.constant 0 : index
    %62 = vector.load %arg7[%c64_36, %c0_37] : memref<128x64xbf16, #tpu.memory_space<vmem>>, vector<32x64xbf16>
    tpu.vector_store %arg7[%c64_36, %c0_37], %61 {strides = array<i32>} : memref<128x64xbf16, #tpu.memory_space<vmem>>, vector<32x64xbf16>,
    %c0_38 = arith.constant 0 : index
    %c96 = arith.constant 96 : index
    %c0_39 = arith.constant 0 : index
    %63 = vector.load %arg2[%c0_38, %c96, %c0_39] : memref<1x128x64xbf16, #tpu.memory_space<vmem>>, vector<1x32x64xbf16>
    %64 = vector.shape_cast %63 : vector<1x32x64xbf16> to vector<32x64xbf16>
    %c0_40 = arith.constant 0 : index
    %c96_41 = arith.constant 96 : index
    %c0_42 = arith.constant 0 : index
    %65 = vector.load %arg3[%c0_40, %c96_41, %c0_42] : memref<1x256x64xbf16, #tpu.memory_space<vmem>>, vector<1x32x64xbf16>
    %66 = vector.shape_cast %65 : vector<1x32x64xbf16> to vector<32x64xbf16>
    %c0_43 = arith.constant 0 : index
    %c224 = arith.constant 224 : index
    %c0_44 = arith.constant 0 : index
    %67 = vector.load %arg3[%c0_43, %c224, %c0_44] : memref<1x256x64xbf16, #tpu.memory_space<vmem>>, vector<1x32x64xbf16>
    %68 = vector.shape_cast %67 : vector<1x32x64xbf16> to vector<32x64xbf16>
    %cst_45 = arith.constant dense<0.000000e+00> : vector<64x64xf32>
    %69 = tpu.matmul %64, %66, %cst_45 {dimension_numbers = #tpu.dot_dimension_numbers<[0], [0], [1], [1], [0, 1, 1, 1], [], []>} : vector<32x64xbf16>, vector<32x64xbf16>, vector<64x64xf32> -> vector<64x64xf32>
    %cst_46 = arith.constant dense<0xFF800000> : vector<64xf32>
    %70 = vector.multi_reduction <maximumf>, %69, %cst_46 [1] : vector<64x64xf32> to vector<64xf32>
    %71 = vector.shape_cast %70 : vector<64xf32> to vector<64x1xf32>
    %72 = vector.broadcast %71 : vector<64x1xf32> to vector<64x64xf32>
    %73 = arith.subf %69, %72 : vector<64x64xf32>
    %74 = math.exp %73 : vector<64x64xf32>
    %cst_47 = arith.constant dense<0.000000e+00> : vector<64xf32>
    %75 = vector.multi_reduction <add>, %74, %cst_47 [1] : vector<64x64xf32> to vector<64xf32>
    %76 = vector.shape_cast %75 : vector<64xf32> to vector<64x1xf32>
    %77 = tpu.reciprocal %76 {approx = true} : vector<64x1xf32> -> vector<64x1xf32>
    %78 = vector.broadcast %77 : vector<64x1xf32> to vector<64x64xf32>
    %79 = arith.mulf %74, %78 : vector<64x64xf32>
    %80 = arith.truncf %79 : vector<64x64xf32> to vector<64x64xbf16>
    %cst_48 = arith.constant dense<0.000000e+00> : vector<32x64xf32>
    %81 = tpu.matmul %68, %80, %cst_48 {dimension_numbers = #tpu.dot_dimension_numbers<[1], [1], [0], [0], [0, 0, 1, 0], [], []>} : vector<32x64xbf16>, vector<64x64xbf16>, vector<32x64xf32> -> vector<32x64xf32>
    %82 = arith.truncf %81 : vector<32x64xf32> to vector<32x64xbf16>
    %c96_49 = arith.constant 96 : index
    %c0_50 = arith.constant 0 : index
    %83 = vector.load %arg7[%c96_49, %c0_50] : memref<128x64xbf16, #tpu.memory_space<vmem>>, vector<32x64xbf16>
    tpu.vector_store %arg7[%c96_49, %c0_50], %82 {strides = array<i32>} : memref<128x64xbf16, #tpu.memory_space<vmem>>, vector<32x64xbf16>,
    %c0_51 = arith.constant 0 : index
    %c0_52 = arith.constant 0 : index
    %84 = vector.load %arg4[%c0_51, %c0_52] : memref<128x128xbf16, #tpu.memory_space<vmem>>, vector<128x128xbf16>
    %c0_53 = arith.constant 0 : index
    %c0_54 = arith.constant 0 : index
    %85 = vector.load %arg7[%c0_53, %c0_54] : memref<128x64xbf16, #tpu.memory_space<vmem>>, vector<128x64xbf16>
    %cst_55 = arith.constant dense<0.000000e+00> : vector<128x64xf32>
    %86 = tpu.matmul %84, %85, %cst_55 {dimension_numbers = #tpu.dot_dimension_numbers<[1], [0], [0], [1], [0, 0, 1, 1], [], []>} : vector<128x128xbf16>, vector<128x64xbf16>, vector<128x64xf32> -> vector<128x64xf32>
    %c0_56 = arith.constant 0 : index
    %c0_57 = arith.constant 0 : index
    %87 = vector.load %arg5[%c0_56, %c0_57] : memref<128x1xf32, #tpu.memory_space<vmem>>, vector<128x1xf32>
    %88 = vector.broadcast %87 : vector<128x1xf32> to vector<128x64xf32>
    %89 = arith.addf %86, %88 : vector<128x64xf32>
    %c0_58 = arith.constant 0 : index
    %c0_59 = arith.constant 0 : index
    %c0_60 = arith.constant 0 : index
    %90 = vector.load %arg6[%c0_58, %c0_59, %c0_60] : memref<1x128x64xf32, #tpu.memory_space<vmem>>, vector<1x128x64xf32>
    %91 = vector.shape_cast %90 : vector<1x128x64xf32> to vector<128x64xf32>
    %92 = vector.shape_cast %89 : vector<128x64xf32> to vector<1x128x64xf32>
    tpu.vector_store %arg6[%c0_58, %c0_59, %c0_60], %92 {strides = array<i32>} : memref<1x128x64xf32, #tpu.memory_space<vmem>>, vector<1x128x64xf32>,
    return
  }
  func.func @transform_0(%arg0: i32, %arg1: i32) -> (i32, i32, i32) {
    %c0_i32 = arith.constant 0 : i32
    %c0_i32_0 = arith.constant 0 : i32
    return %arg0, %c0_i32, %arg1 : i32, i32, i32
  }
  func.func @transform_1(%arg0: i32, %arg1: i32) -> (i32, i32, i32) {
    %c0_i32 = arith.constant 0 : i32
    %c0_i32_0 = arith.constant 0 : i32
    %c0_i32_1 = arith.constant 0 : i32
    return %arg0, %c0_i32, %c0_i32_0 : i32, i32, i32
  }
  func.func @transform_2(%arg0: i32, %arg1: i32) -> (i32, i32) {
    %c0_i32 = arith.constant 0 : i32
    %c0_i32_0 = arith.constant 0 : i32
    %c0_i32_1 = arith.constant 0 : i32
    return %c0_i32, %c0_i32_0 : i32, i32
  }
  func.func @transform_3(%arg0: i32, %arg1: i32) -> (i32, i32) {
    %c0_i32 = arith.constant 0 : i32
    %c0_i32_0 = arith.constant 0 : i32
    %c0_i32_1 = arith.constant 0 : i32
    return %c0_i32, %c0_i32_0 : i32, i32
  }
  func.func @transform_4(%arg0: i32, %arg1: i32) -> (i32, i32, i32) {
    %c0_i32 = arith.constant 0 : i32
    %c0_i32_0 = arith.constant 0 : i32
    return %arg0, %c0_i32, %arg1 : i32, i32, i32
  }
}

</mosaic_0001>

<llo_original>
// kernel: multi_head_attention_forward.4
$region0: #{multi_head_attention_forward.4}
  #allocation0 [shape = 'u32[]', space=smem, size = 0x4, offset = 0x4, fixed_abs, tag = 'smem constant byte address 0x4 - core index']
  #allocation1 [shape = 'u32[144,128]{1,0:T(1,128)}', space=vmem, size = 0x12000, scoped, tag = 'internal scratch']
  %s0 = inlined_call_operand.vmem [shape: f32[2,128,64], index: 0, kind: input, shape index: {}]
  %s1 = inlined_call_operand.vmem [shape: bf16[256,128], index: 1, kind: input, shape index: {}]
  %s2 = inlined_call_operand.vmem [shape: f32[256,1], index: 2, kind: input, shape index: {}]
  %s3 = inlined_call_operand.vmem [shape: bf16[2,256,64], index: 3, kind: output, shape index: {}]
  %s4 = sld [smem:[#allocation0]]
  $region45: #{multi_head_attention_forward.4} parent=0
    _
  %s6 = ssub.s32 1, %s4
  %s7 = scalar_select 0, %s6, %s4
  loop: start=0, step=1, limit=4
  $region2: #{multi_head_attention_forward.4} parent=0 // loop_pre_header
    _
  $region3: #{multi_head_attention_forward.4} parent=0 // loop_header
    %s9 = sphi 0, %s13
    %p10 = scmp.ge.s32.totalorder %s9, 4
    %s16 = sphi 0, %s28
    %s17 = sphi 0, %s24
    %s18 = sphi 0, %s16
    %s19 = sphi 0, %s17
    %s20 = sphi 0, %s18
    %s21 = sphi 0, %s19
    %s33 = sphi 0, %s35
    %s36 = sphi 0, %s33
    %s37 = sphi 0, %s36
    %s53 = sphi 0, %s37
    %s57 = sphi 0, %s57
    %s59 = sphi 0, %s57
    %s60 = sphi 0, %s59
    %s74 = sphi 0, %s60
    %s78 = sphi 0, %s78
    %s80 = sphi 0, %s78
    %s81 = sphi 0, %s80
    %s95 = sphi 0, %s81
    %s103 = sphi 0, %s105
    %s106 = sphi 0, %s103
    %s107 = sphi 0, %s106
    %s123 = sphi 0, %s107
  $region4: #{multi_head_attention_forward.4} parent=0 // loop_header_branch
    %12 = sbr.rel (%p10) target = $region8
  $region5: #{multi_head_attention_forward.4} parent=0 // loop_body
    %s14 = ssub.s32 %s9, 1
    %s15 = ssub.s32 %s9, 2
    %s22 = sadd.s32 1, %s17
    %p23 = scmp.ge.s32.totalorder %s22, 1
    %s24 = scalar_select %p23, 0, %s22
    %s25 = sadd.s32 1, %s16
    %s26 = scalar_select %p23, %s25, %s16
    %p27 = scmp.ge.s32.totalorder %s26, 2
    %s28 = scalar_select %p27, 0, %s26
    %s29 = ssub.s32 %s16, %s28
    %s30 = ssub.s32 %s17, %s24
    %s31 = sor.u32 %s29, %s30
    %p32 = scmp.eq.s32.totalorder %s31, 0
    %s34 = sadd.s32 %s33, 1
    %s35 = scalar_select %p32, %s33, %s34
    %p38 = pneg %p32
    %p39 = scmp.eq.s32.totalorder %s9, 1
    %p40 = por %p38, %p39
    %p41 = scmp.ne.s32.totalorder %s33, %s36
    %p42 = scmp.eq.s32.totalorder %s9, 0
    %p43 = por %p41, %p42
    %p44 = scmp.ne.s32.totalorder %s33, %s36
    %p45 = scmp.eq.s32.totalorder %s14, 1
    %p46 = por %p44, %p45
    %p47 = scmp.ne.s32.totalorder %s36, %s37
    %p48 = scmp.eq.s32.totalorder %s14, 0
    %p49 = por %p47, %p48
    %p50 = scmp.ne.s32.totalorder %s36, %s37
    %p51 = scmp.eq.s32.totalorder %s15, 1
    %p52 = por %p50, %p51
    %p54 = scmp.ne.s32.totalorder %s37, %s53
    %p55 = scmp.eq.s32.totalorder %s15, 0
    %p56 = por %p54, %p55
    %s58 = sadd.s32 %s57, 1
    %p61 = scmp.eq.s32.totalorder %s9, 1
    %p62 = scmp.ne.s32.totalorder %s57, %s59
    %p63 = scmp.eq.s32.totalorder %s9, 0
    %p64 = por %p62, %p63
    %p65 = scmp.ne.s32.totalorder %s57, %s59
    %p66 = scmp.eq.s32.totalorder %s14, 1
    %p67 = por %p65, %p66
    %p68 = scmp.ne.s32.totalorder %s59, %s60
    %p69 = scmp.eq.s32.totalorder %s14, 0
    %p70 = por %p68, %p69
    %p71 = scmp.ne.s32.totalorder %s59, %s60
    %p72 = scmp.eq.s32.totalorder %s15, 1
    %p73 = por %p71, %p72
    %p75 = scmp.ne.s32.totalorder %s60, %s74
    %p76 = scmp.eq.s32.totalorder %s15, 0
    %p77 = por %p75, %p76
    %s79 = sadd.s32 %s78, 1
    %p82 = scmp.eq.s32.totalorder %s9, 1
    %p83 = scmp.ne.s32.totalorder %s78, %s80
    %p84 = scmp.eq.s32.totalorder %s9, 0
    %p85 = por %p83, %p84
    %p86 = scmp.ne.s32.totalorder %s78, %s80
    %p87 = scmp.eq.s32.totalorder %s14, 1
    %p88 = por %p86, %p87
    %p89 = scmp.ne.s32.totalorder %s80, %s81
    %p90 = scmp.eq.s32.totalorder %s14, 0
    %p91 = por %p89, %p90
    %p92 = scmp.ne.s32.totalorder %s80, %s81
    %p93 = scmp.eq.s32.totalorder %s15, 1
    %p94 = por %p92, %p93
    %p96 = scmp.ne.s32.totalorder %s81, %s95
    %p97 = scmp.eq.s32.totalorder %s15, 0
    %p98 = por %p96, %p97
    %s99 = ssub.s32 %s16, %s28
    %s100 = ssub.s32 %s17, %s24
    %s101 = sor.u32 %s99, %s100
    %p102 = scmp.eq.s32.totalorder %s101, 0
    %s104 = sadd.s32 %s103, 1
    %s105 = scalar_select %p102, %s103, %s104
    %p108 = pneg %p102
    %p109 = scmp.eq.s32.totalorder %s9, 1
    %p110 = por %p108, %p109
    %p111 = scmp.ne.s32.totalorder %s103, %s106
    %p112 = scmp.eq.s32.totalorder %s9, 0
    %p113 = por %p111, %p112
    %p114 = scmp.ne.s32.totalorder %s103, %s106
    %p115 = scmp.eq.s32.totalorder %s14, 1
    %p116 = por %p114, %p115
    %p117 = scmp.ne.s32.totalorder %s106, %s107
    %p118 = scmp.eq.s32.totalorder %s14, 0
    %p119 = por %p117, %p118
    %p120 = scmp.ne.s32.totalorder %s106, %s107
    %p121 = scmp.eq.s32.totalorder %s15, 1
    %p122 = por %p120, %p121
    %p124 = scmp.ne.s32.totalorder %s107, %s123
    %p125 = scmp.eq.s32.totalorder %s15, 0
    %p126 = por %p124, %p125
    %p127 = scmp.le.s32.totalorder 1, %s9
    %p128 = scmp.lt.s32.totalorder %s9, 3
    %p129 = pnand %p127, %p128
    %p130 = pneg %p129
    // Predicated region
    $region9: #{multi_head_attention_forward.4} parent=5 // pred_check
      _
    $region10: #{multi_head_attention_forward.4} parent=5 // pred_check_branch
      %132 = sbr.rel (%p129) target = $region12
    $region11: #{multi_head_attention_forward.4} parent=5 // pred_region
      %s133 = ssub.s32 %s9, 1
      // Predicated region
      $region13: #{multi_head_attention_forward.4} parent=11 // pred_check
        %p134 = pneg %p70
      $region14: #{multi_head_attention_forward.4} parent=11 // pred_check_branch
        %136 = sbr.rel (%p134) target = $region16
      $region15: #{multi_head_attention_forward.4} parent=11 // pred_region
        _
      $region16: #{multi_head_attention_forward.4} parent=11 // pred_fallthru
        _
      // Predicated region
      $region17: #{multi_head_attention_forward.4} parent=11 // pred_check
        %p137 = pneg %p91
      $region18: #{multi_head_attention_forward.4} parent=11 // pred_check_branch
        %139 = sbr.rel (%p137) target = $region20
      $region19: #{multi_head_attention_forward.4} parent=11 // pred_region
        _
      $region20: #{multi_head_attention_forward.4} parent=11 // pred_fallthru
        _
    $region12: #{multi_head_attention_forward.4} parent=5 // pred_fallthru
      _
    %p140 = scmp.lt.s32.totalorder %s9, 2
    // Predicated region
    $region21: #{multi_head_attention_forward.4} parent=5 // pred_check
      %p141 = pneg %p140
    $region22: #{multi_head_attention_forward.4} parent=5 // pred_check_branch
      %143 = sbr.rel (%p141) target = $region24
    $region23: #{multi_head_attention_forward.4} parent=5 // pred_region
      // Predicated region
      $region25: #{multi_head_attention_forward.4} parent=23 // pred_check
        %p144 = pneg %p43
      $region26: #{multi_head_attention_forward.4} parent=23 // pred_check_branch
        %146 = sbr.rel (%p144) target = $region28
      $region27: #{multi_head_attention_forward.4} parent=23 // pred_region
        %p147 = scmp.lt.s32.totalorder %s16, 1
        %s148 = scalar_select %p147, %s16, 1
        %p149 = scmp.lt.s32.totalorder %s17, 0
        %s150 = scalar_select %p149, %s17, 0
        %s151 = smul.addr %s148, 16
        %s152 = sadd.s32 %s150, %s151
        %s153 = smul.addr %s152, 8
        %s154 = scalar_lea.vmem %s0, %s153
      $region28: #{multi_head_attention_forward.4} parent=23 // pred_fallthru
        _
    $region24: #{multi_head_attention_forward.4} parent=5 // pred_fallthru
      _
    %p155 = scmp.le.s32.totalorder 1, %s9
    %p156 = scmp.lt.s32.totalorder %s9, 3
    %p157 = pnand %p155, %p156
    %p158 = pneg %p157
    // Predicated region
    $region29: #{multi_head_attention_forward.4} parent=5 // pred_check
      _
    $region30: #{multi_head_attention_forward.4} parent=5 // pred_check_branch
      %160 = sbr.rel (%p157) target = $region32
    $region31: #{multi_head_attention_forward.4} parent=5 // pred_region
      %s161 = ssub.s32 %s9, 1
      %p162 = scmp.lt.s32.totalorder %s18, 1
      %s163 = scalar_select %p162, %s18, 1
      %p164 = scmp.lt.s32.totalorder %s19, 0
      %s165 = scalar_select %p164, %s19, 0
      %s166 = smul.addr %s163, 16
      %s167 = sadd.s32 %s165, %s166
      %s168 = smul.addr %s167, 8
      %s169 = scalar_lea.vmem %s0, %s168
      %p170 = pneg %p49
      %p171 = pneg %p46
      %p172 = pneg %p70
      %p173 = pneg %p67
      %p174 = pneg %p91
      %p175 = pneg %p88
      %p176 = pneg %p119
      %p177 = pneg %p116
      %p178 = scmp.lt.s32.totalorder %s18, 1
      %s179 = scalar_select %p178, %s18, 1
      %p180 = scmp.lt.s32.totalorder %s19, 0
      %s181 = scalar_select %p180, %s19, 0
      %s182 = smul.addr %s179, 32
      %s183 = sadd.s32 %s181, %s182
      %s184 = smul.addr %s183, 4
      %s185 = scalar_lea.vmem %s3, %s184
      %p186 = scmp.lt.s32.totalorder %s18, 1
      %s187 = scalar_select %p186, %s18, 1
      %p188 = scmp.lt.s32.totalorder %s19, 0
      %s189 = scalar_select %p188, %s19, 0
      %s190 = smul.addr %s187, 16
      %s191 = sadd.s32 %s189, %s190
      %s192 = smul.addr %s191, 8
      %s193 = scalar_lea.vmem %s0, %s192
      %p194 = scmp.lt.s32.totalorder %s18, 1
      %s195 = scalar_select %p194, %s18, 1
      %p196 = scmp.lt.s32.totalorder %s19, 0
      %s197 = scalar_select %p196, %s19, 0
      %s198 = smul.addr %s195, 32
      %s199 = sadd.s32 %s197, %s198
      %s200 = smul.addr %s199, 4
      %s201 = scalar_lea.vmem %s3, %s200
      %v203 = vld [vmem:[%s193] sm:$0xff]
      %v204 = vld [vmem:[%s193 + $0x8] sm:$0xff]
      %v205 = vld [vmem:[%s193 + $0x10] sm:$0xff]
      %v206 = vld [vmem:[%s193 + $0x18] sm:$0xff]
      %v207 = vld [vmem:[%s193 + $0x20] sm:$0xff]
      %v208 = vld [vmem:[%s193 + $0x28] sm:$0xff]
      %v209 = vld [vmem:[%s193 + $0x30] sm:$0xff]
      %v210 = vld [vmem:[%s193 + $0x38] sm:$0xff]
      %v211 = vld [vmem:[%s193 + $0x40] sm:$0xff]
      %v212 = vld [vmem:[%s193 + $0x48] sm:$0xff]
      %v213 = vld [vmem:[%s193 + $0x50] sm:$0xff]
      %v214 = vld [vmem:[%s193 + $0x58] sm:$0xff]
      %v215 = vld [vmem:[%s193 + $0x60] sm:$0xff]
      %v216 = vld [vmem:[%s193 + $0x68] sm:$0xff]
      %v217 = vld [vmem:[%s193 + $0x70] sm:$0xff]
      %v218 = vld [vmem:[%s193 + $0x78] sm:$0xff]
      %v219 = vpack.c.bf16 %v204, %v203
      %v220 = vpack.c.bf16 %v206, %v205
      %v221 = vpack.c.bf16 %v208, %v207
      %v222 = vpack.c.bf16 %v210, %v209
      %v223 = vpack.c.bf16 %v212, %v211
      %v224 = vpack.c.bf16 %v214, %v213
      %v225 = vpack.c.bf16 %v216, %v215
      %v226 = vpack.c.bf16 %v218, %v217
      %v227 = vld [vmem:[%s1] sm:$0xf]
      %v228 = vld [vmem:[%s1 + $0x4] sm:$0xf]
      %v229 = vld [vmem:[%s1 + $0x8] sm:$0xf]
      %v230 = vld [vmem:[%s1 + $0xc] sm:$0xf]
      %v231 = vld [vmem:[%s1 + $0x10] sm:$0xf]
      %v232 = vld [vmem:[%s1 + $0x14] sm:$0xf]
      %v233 = vld [vmem:[%s1 + $0x18] sm:$0xf]
      %v234 = vld [vmem:[%s1 + $0x1c] sm:$0xf]
      %v235 = vld [vmem:[%s1 + $0x20] sm:$0xf]
      %v236 = vld [vmem:[%s1 + $0x24] sm:$0xf]
      %v237 = vld [vmem:[%s1 + $0x28] sm:$0xf]
      %v238 = vld [vmem:[%s1 + $0x2c] sm:$0xf]
      %v239 = vld [vmem:[%s1 + $0x30] sm:$0xf]
      %v240 = vld [vmem:[%s1 + $0x34] sm:$0xf]
      %v241 = vld [vmem:[%s1 + $0x38] sm:$0xf]
      %v242 = vld [vmem:[%s1 + $0x3c] sm:$0xf]
      %v243 = vld [vmem:[%s1 + $0x40] sm:$0xf]
      %v244 = vld [vmem:[%s1 + $0x44] sm:$0xf]
      %v245 = vld [vmem:[%s1 + $0x48] sm:$0xf]
      %v246 = vld [vmem:[%s1 + $0x4c] sm:$0xf]
      %v247 = vld [vmem:[%s1 + $0x50] sm:$0xf]
      %v248 = vld [vmem:[%s1 + $0x54] sm:$0xf]
      %v249 = vld [vmem:[%s1 + $0x58] sm:$0xf]
      %v250 = vld [vmem:[%s1 + $0x5c] sm:$0xf]
      %v251 = vld [vmem:[%s1 + $0x60] sm:$0xf]
      %v252 = vld [vmem:[%s1 + $0x64] sm:$0xf]
      %v253 = vld [vmem:[%s1 + $0x68] sm:$0xf]
      %v254 = vld [vmem:[%s1 + $0x6c] sm:$0xf]
      %v255 = vld [vmem:[%s1 + $0x70] sm:$0xf]
      %v256 = vld [vmem:[%s1 + $0x74] sm:$0xf]
      %v257 = vld [vmem:[%s1 + $0x78] sm:$0xf]
      %v258 = vld [vmem:[%s1 + $0x7c] sm:$0xf]
      %v259 = vld [vmem:[%s2] sm:$0xff]
      %v260 = vld [vmem:[%s2 + $0x8] sm:$0xff]
      %v261 = vld [vmem:[%s2 + $0x10] sm:$0xff]
      %v262 = vld [vmem:[%s2 + $0x18] sm:$0xff]
      %v263 = vld [vmem:[%s2 + $0x20] sm:$0xff]
      %v264 = vld [vmem:[%s2 + $0x28] sm:$0xff]
      %v265 = vld [vmem:[%s2 + $0x30] sm:$0xff]
      %v266 = vld [vmem:[%s2 + $0x38] sm:$0xff]
      %v267 = vld [vmem:[%s2 + $0x40] sm:$0xff]
      %v268 = vld [vmem:[%s2 + $0x48] sm:$0xff]
      %v269 = vld [vmem:[%s2 + $0x50] sm:$0xff]
      %v270 = vld [vmem:[%s2 + $0x58] sm:$0xff]
      %v271 = vld [vmem:[%s2 + $0x60] sm:$0xff]
      %v272 = vld [vmem:[%s2 + $0x68] sm:$0xff]
      %v273 = vld [vmem:[%s2 + $0x70] sm:$0xff]
      %v274 = vld [vmem:[%s2 + $0x78] sm:$0xff]
      %v275 = vld [vmem:[%s2 + $0x80] sm:$0xff]
      %v276 = vld [vmem:[%s2 + $0x88] sm:$0xff]
      %v277 = vld [vmem:[%s2 + $0x90] sm:$0xff]
      %v278 = vld [vmem:[%s2 + $0x98] sm:$0xff]
      %v279 = vld [vmem:[%s2 + $0xa0] sm:$0xff]
      %v280 = vld [vmem:[%s2 + $0xa8] sm:$0xff]
      %v281 = vld [vmem:[%s2 + $0xb0] sm:$0xff]
      %v282 = vld [vmem:[%s2 + $0xb8] sm:$0xff]
      %v283 = vld [vmem:[%s2 + $0xc0] sm:$0xff]
      %v284 = vld [vmem:[%s2 + $0xc8] sm:$0xff]
      %v285 = vld [vmem:[%s2 + $0xd0] sm:$0xff]
      %v286 = vld [vmem:[%s2 + $0xd8] sm:$0xff]
      %v287 = vld [vmem:[%s2 + $0xe0] sm:$0xff]
      %v288 = vld [vmem:[%s2 + $0xe8] sm:$0xff]
      %v289 = vld [vmem:[%s2 + $0xf0] sm:$0xff]
      %v290 = vld [vmem:[%s2 + $0xf8] sm:$0xff]
      %292 = vset.pattern.permute.xlu0 0
      %293 = vperm.xlu0 %292, %v259
      %v294 = vpop.permute.xlu0 %293
      %297 = vset.pattern.permute.xlu0 0
      %298 = vperm.xlu0 %297, %v260
      %v299 = vpop.permute.xlu0 %298
      %302 = vset.pattern.permute.xlu0 0
      %303 = vperm.xlu0 %302, %v261
      %v304 = vpop.permute.xlu0 %303
      %307 = vset.pattern.permute.xlu0 0
      %308 = vperm.xlu0 %307, %v262
      %v309 = vpop.permute.xlu0 %308
      %312 = vset.pattern.permute.xlu0 0
      %313 = vperm.xlu0 %312, %v263
      %v314 = vpop.permute.xlu0 %313
      %317 = vset.pattern.permute.xlu0 0
      %318 = vperm.xlu0 %317, %v264
      %v319 = vpop.permute.xlu0 %318
      %322 = vset.pattern.permute.xlu0 0
      %323 = vperm.xlu0 %322, %v265
      %v324 = vpop.permute.xlu0 %323
      %327 = vset.pattern.permute.xlu0 0
      %328 = vperm.xlu0 %327, %v266
      %v329 = vpop.permute.xlu0 %328
      %332 = vset.pattern.permute.xlu0 0
      %333 = vperm.xlu0 %332, %v267
      %v334 = vpop.permute.xlu0 %333
      %337 = vset.pattern.permute.xlu0 0
      %338 = vperm.xlu0 %337, %v268
      %v339 = vpop.permute.xlu0 %338
      %342 = vset.pattern.permute.xlu0 0
      %343 = vperm.xlu0 %342, %v269
      %v344 = vpop.permute.xlu0 %343
      %347 = vset.pattern.permute.xlu0 0
      %348 = vperm.xlu0 %347, %v270
      %v349 = vpop.permute.xlu0 %348
      %352 = vset.pattern.permute.xlu0 0
      %353 = vperm.xlu0 %352, %v271
      %v354 = vpop.permute.xlu0 %353
      %357 = vset.pattern.permute.xlu0 0
      %358 = vperm.xlu0 %357, %v272
      %v359 = vpop.permute.xlu0 %358
      %362 = vset.pattern.permute.xlu0 0
      %363 = vperm.xlu0 %362, %v273
      %v364 = vpop.permute.xlu0 %363
      %367 = vset.pattern.permute.xlu0 0
      %368 = vperm.xlu0 %367, %v274
      %v369 = vpop.permute.xlu0 %368
      %372 = vset.pattern.permute.xlu0 0
      %373 = vperm.xlu0 %372, %v275
      %v374 = vpop.permute.xlu0 %373
      %377 = vset.pattern.permute.xlu0 0
      %378 = vperm.xlu0 %377, %v276
      %v379 = vpop.permute.xlu0 %378
      %382 = vset.pattern.permute.xlu0 0
      %383 = vperm.xlu0 %382, %v277
      %v384 = vpop.permute.xlu0 %383
      %387 = vset.pattern.permute.xlu0 0
      %388 = vperm.xlu0 %387, %v278
      %v389 = vpop.permute.xlu0 %388
      %392 = vset.pattern.permute.xlu0 0
      %393 = vperm.xlu0 %392, %v279
      %v394 = vpop.permute.xlu0 %393
      %397 = vset.pattern.permute.xlu0 0
      %398 = vperm.xlu0 %397, %v280
      %v399 = vpop.permute.xlu0 %398
      %402 = vset.pattern.permute.xlu0 0
      %403 = vperm.xlu0 %402, %v281
      %v404 = vpop.permute.xlu0 %403
      %407 = vset.pattern.permute.xlu0 0
      %408 = vperm.xlu0 %407, %v282
      %v409 = vpop.permute.xlu0 %408
      %412 = vset.pattern.permute.xlu0 0
      %413 = vperm.xlu0 %412, %v283
      %v414 = vpop.permute.xlu0 %413
      %417 = vset.pattern.permute.xlu0 0
      %418 = vperm.xlu0 %417, %v284
      %v419 = vpop.permute.xlu0 %418
      %422 = vset.pattern.permute.xlu0 0
      %423 = vperm.xlu0 %422, %v285
      %v424 = vpop.permute.xlu0 %423
      %427 = vset.pattern.permute.xlu0 0
      %428 = vperm.xlu0 %427, %v286
      %v429 = vpop.permute.xlu0 %428
      %432 = vset.pattern.permute.xlu0 0
      %433 = vperm.xlu0 %432, %v287
      %v434 = vpop.permute.xlu0 %433
      %437 = vset.pattern.permute.xlu0 0
      %438 = vperm.xlu0 %437, %v288
      %v439 = vpop.permute.xlu0 %438
      %442 = vset.pattern.permute.xlu0 0
      %443 = vperm.xlu0 %442, %v289
      %v444 = vpop.permute.xlu0 %443
      %447 = vset.pattern.permute.xlu0 0
      %448 = vperm.xlu0 %447, %v290
      %v449 = vpop.permute.xlu0 %448
      %v483 = vunpack.c.l.b16 %v227
      %v484 = vunpack.c.l.b16 %v228
      %v485 = vunpack.c.l.b16 %v229
      %v486 = vunpack.c.l.b16 %v230
      %v487 = vunpack.c.l.b16 %v231
      %v488 = vunpack.c.l.b16 %v232
      %v489 = vunpack.c.l.b16 %v233
      %v490 = vunpack.c.l.b16 %v234
      %v491 = vunpack.c.l.b16 %v235
      %v492 = vunpack.c.l.b16 %v236
      %v493 = vunpack.c.l.b16 %v237
      %v494 = vunpack.c.l.b16 %v238
      %v495 = vunpack.c.l.b16 %v239
      %v496 = vunpack.c.l.b16 %v240
      %v497 = vunpack.c.l.b16 %v241
      %v498 = vunpack.c.l.b16 %v242
      %v499 = vunpack.c.l.b16 %v243
      %v500 = vunpack.c.l.b16 %v244
      %v501 = vunpack.c.l.b16 %v245
      %v502 = vunpack.c.l.b16 %v246
      %v503 = vunpack.c.l.b16 %v247
      %v504 = vunpack.c.l.b16 %v248
      %v505 = vunpack.c.l.b16 %v249
      %v506 = vunpack.c.l.b16 %v250
      %v507 = vunpack.c.l.b16 %v251
      %v508 = vunpack.c.l.b16 %v252
      %v509 = vunpack.c.l.b16 %v253
      %v510 = vunpack.c.l.b16 %v254
      %v511 = vunpack.c.l.b16 %v255
      %v512 = vunpack.c.l.b16 %v256
      %v513 = vunpack.c.l.b16 %v257
      %v514 = vunpack.c.l.b16 %v258
      %v515 = vpack.c.b16 %v484, %v483
      %v516 = vpack.c.b16 %v486, %v485
      %v517 = vpack.c.b16 %v488, %v487
      %v518 = vpack.c.b16 %v490, %v489
      %v519 = vpack.c.b16 %v492, %v491
      %v520 = vpack.c.b16 %v494, %v493
      %v521 = vpack.c.b16 %v496, %v495
      %v522 = vpack.c.b16 %v498, %v497
      %v523 = vpack.c.b16 %v500, %v499
      %v524 = vpack.c.b16 %v502, %v501
      %v525 = vpack.c.b16 %v504, %v503
      %v526 = vpack.c.b16 %v506, %v505
      %v527 = vpack.c.b16 %v508, %v507
      %v528 = vpack.c.b16 %v510, %v509
      %v529 = vpack.c.b16 %v512, %v511
      %v530 = vpack.c.b16 %v514, %v513
      %547 = vmatprep.subr.bf16.mxu0 0
      %548 = vmatpush1.bf16.msra.mxu0 %v219
      %549 = vmatprep.subr.bf16.mxu0 0
      %550 = vmatpush1.bf16.msra.mxu0 %v220
      %551 = vmatprep.subr.bf16.mxu0 0
      %552 = vmatpush1.bf16.msra.mxu0 %v221
      %553 = vmatprep.subr.bf16.mxu0 0
      %554 = vmatpush1.bf16.msra.mxu0 %v222
      %555 = vmatprep.subr.bf16.mxu0 0
      %556 = vmatpush1.bf16.msra.mxu0 %v223
      %557 = vmatprep.subr.bf16.mxu0 0
      %558 = vmatpush1.bf16.msra.mxu0 %v224
      %559 = vmatprep.subr.bf16.mxu0 0
      %560 = vmatpush1.bf16.msra.mxu0 %v225
      %561 = vmatprep.subr.bf16.mxu0 0
      %562 = vmatpush1.bf16.msra.mxu0 %v226
      %563 = vmatprep.subr.bf16.mxu0 0
      %564 = vmatpush1.bf16.msra.mxu0 0
      %565 = vmatprep.subr.bf16.mxu0 0
      %566 = vmatpush1.bf16.msra.mxu0 0
      %567 = vmatprep.subr.bf16.mxu0 0
      %568 = vmatpush1.bf16.msra.mxu0 0
      %569 = vmatprep.subr.bf16.mxu0 0
      %570 = vmatpush1.bf16.msra.mxu0 0
      %571 = vmatprep.subr.bf16.mxu0 0
      %572 = vmatpush1.bf16.msra.mxu0 0
      %573 = vmatprep.subr.bf16.mxu0 0
      %574 = vmatpush1.bf16.msra.mxu0 0
      %575 = vmatprep.subr.bf16.mxu0 0
      %576 = vmatpush1.bf16.msra.mxu0 0
      %577 = vmatprep.subr.bf16.mxu0 0
      %578 = vmatpush1.bf16.msra.mxu0 0
      %579 = vmatprep.mubr.bf16.mxu0 0
      %580 = vmatmul.mubr.bf16.gmra.mrb[0].mxu0 %v515
      %v581 = vpop.f32.mrb[0].mxu0
      %v582 = vadd.f32 %v294, %v581
      %v583 = vpop.f32.mrb[0].mxu0
      %v584 = vpop.f32.mrb[0].mxu0
      %v585 = vadd.f32 %v299, %v584
      %v586 = vpop.f32.mrb[0].mxu0
      %587 = vmatprep.mubr.bf16.mxu0 0
      %588 = vmatmul.mubr.bf16.gmra.mrb[0].mxu0 %v516
      %v589 = vpop.f32.mrb[0].mxu0
      %v590 = vadd.f32 %v304, %v589
      %v591 = vpop.f32.mrb[0].mxu0
      %v592 = vpop.f32.mrb[0].mxu0
      %v593 = vadd.f32 %v309, %v592
      %v594 = vpop.f32.mrb[0].mxu0
      %595 = vmatprep.mubr.bf16.mxu0 0
      %596 = vmatmul.mubr.bf16.gmra.mrb[0].mxu0 %v517
      %v597 = vpop.f32.mrb[0].mxu0
      %v598 = vadd.f32 %v314, %v597
      %v599 = vpop.f32.mrb[0].mxu0
      %v600 = vpop.f32.mrb[0].mxu0
      %v601 = vadd.f32 %v319, %v600
      %v602 = vpop.f32.mrb[0].mxu0
      %603 = vmatprep.mubr.bf16.mxu0 0
      %604 = vmatmul.mubr.bf16.gmra.mrb[0].mxu0 %v518
      %v605 = vpop.f32.mrb[0].mxu0
      %v606 = vadd.f32 %v324, %v605
      %v607 = vpop.f32.mrb[0].mxu0
      %v608 = vpop.f32.mrb[0].mxu0
      %v609 = vadd.f32 %v329, %v608
      %v610 = vpop.f32.mrb[0].mxu0
      %611 = vmatprep.mubr.bf16.mxu0 0
      %612 = vmatmul.mubr.bf16.gmra.mrb[0].mxu0 %v519
      %v613 = vpop.f32.mrb[0].mxu0
      %v614 = vadd.f32 %v334, %v613
      %v615 = vpop.f32.mrb[0].mxu0
      %v616 = vpop.f32.mrb[0].mxu0
      %v617 = vadd.f32 %v339, %v616
      %v618 = vpop.f32.mrb[0].mxu0
      %619 = vmatprep.mubr.bf16.mxu0 0
      %620 = vmatmul.mubr.bf16.gmra.mrb[0].mxu0 %v520
      %v621 = vpop.f32.mrb[0].mxu0
      %v622 = vadd.f32 %v344, %v621
      %v623 = vpop.f32.mrb[0].mxu0
      %v624 = vpop.f32.mrb[0].mxu0
      %v625 = vadd.f32 %v349, %v624
      %v626 = vpop.f32.mrb[0].mxu0
      %627 = vmatprep.mubr.bf16.mxu0 0
      %628 = vmatmul.mubr.bf16.gmra.mrb[0].mxu0 %v521
      %v629 = vpop.f32.mrb[0].mxu0
      %v630 = vadd.f32 %v354, %v629
      %v631 = vpop.f32.mrb[0].mxu0
      %v632 = vpop.f32.mrb[0].mxu0
      %v633 = vadd.f32 %v359, %v632
      %v634 = vpop.f32.mrb[0].mxu0
      %635 = vmatprep.mubr.bf16.mxu0 0
      %636 = vmatmul.mubr.bf16.gmra.mrb[0].mxu0 %v522
      %v637 = vpop.f32.mrb[0].mxu0
      %v638 = vadd.f32 %v364, %v637
      %v639 = vpop.f32.mrb[0].mxu0
      %v640 = vpop.f32.mrb[0].mxu0
      %v641 = vadd.f32 %v369, %v640
      %v642 = vpop.f32.mrb[0].mxu0
      %643 = vmatprep.mubr.bf16.mxu0 0
      %644 = vmatmul.mubr.bf16.gmra.mrb[0].mxu0 %v523
      %v645 = vpop.f32.mrb[0].mxu0
      %v646 = vadd.f32 %v374, %v645
      %v647 = vpop.f32.mrb[0].mxu0
      %v648 = vpop.f32.mrb[0].mxu0
      %v649 = vadd.f32 %v379, %v648
      %v650 = vpop.f32.mrb[0].mxu0
      %651 = vmatprep.mubr.bf16.mxu0 0
      %652 = vmatmul.mubr.bf16.gmra.mrb[0].mxu0 %v524
      %v653 = vpop.f32.mrb[0].mxu0
      %v654 = vadd.f32 %v384, %v653
      %v655 = vpop.f32.mrb[0].mxu0
      %v656 = vpop.f32.mrb[0].mxu0
      %v657 = vadd.f32 %v389, %v656
      %v658 = vpop.f32.mrb[0].mxu0
      %659 = vmatprep.mubr.bf16.mxu0 0
      %660 = vmatmul.mubr.bf16.gmra.mrb[0].mxu0 %v525
      %v661 = vpop.f32.mrb[0].mxu0
      %v662 = vadd.f32 %v394, %v661
      %v663 = vpop.f32.mrb[0].mxu0
      %v664 = vpop.f32.mrb[0].mxu0
      %v665 = vadd.f32 %v399, %v664
      %v666 = vpop.f32.mrb[0].mxu0
      %667 = vmatprep.mubr.bf16.mxu0 0
      %668 = vmatmul.mubr.bf16.gmra.mrb[0].mxu0 %v526
      %v669 = vpop.f32.mrb[0].mxu0
      %v670 = vadd.f32 %v404, %v669
      %v671 = vpop.f32.mrb[0].mxu0
      %v672 = vpop.f32.mrb[0].mxu0
      %v673 = vadd.f32 %v409, %v672
      %v674 = vpop.f32.mrb[0].mxu0
      %675 = vmatprep.mubr.bf16.mxu0 0
      %676 = vmatmul.mubr.bf16.gmra.mrb[0].mxu0 %v527
      %v677 = vpop.f32.mrb[0].mxu0
      %v678 = vadd.f32 %v414, %v677
      %v679 = vpop.f32.mrb[0].mxu0
      %v680 = vpop.f32.mrb[0].mxu0
      %v681 = vadd.f32 %v419, %v680
      %v682 = vpop.f32.mrb[0].mxu0
      %683 = vmatprep.mubr.bf16.mxu0 0
      %684 = vmatmul.mubr.bf16.gmra.mrb[0].mxu0 %v528
      %v685 = vpop.f32.mrb[0].mxu0
      %v686 = vadd.f32 %v424, %v685
      %v687 = vpop.f32.mrb[0].mxu0
      %v688 = vpop.f32.mrb[0].mxu0
      %v689 = vadd.f32 %v429, %v688
      %v690 = vpop.f32.mrb[0].mxu0
      %691 = vmatprep.mubr.bf16.mxu0 0
      %692 = vmatmul.mubr.bf16.gmra.mrb[0].mxu0 %v529
      %v693 = vpop.f32.mrb[0].mxu0
      %v694 = vadd.f32 %v434, %v693
      %v695 = vpop.f32.mrb[0].mxu0
      %v696 = vpop.f32.mrb[0].mxu0
      %v697 = vadd.f32 %v439, %v696
      %v698 = vpop.f32.mrb[0].mxu0
      %699 = vmatprep.mubr.bf16.mxu0 0
      %700 = vmatmul.mubr.bf16.gmra.mrb[0].mxu0 %v530
      %v701 = vpop.f32.mrb[0].mxu0
      %v702 = vadd.f32 %v444, %v701
      %v703 = vpop.f32.mrb[0].mxu0
      %v704 = vpop.f32.mrb[0].mxu0
      %v705 = vadd.f32 %v449, %v704
      %v706 = vpop.f32.mrb[0].mxu0
      %707 = vdwg.mxu0
      %v708 = vpack.c.bf16 %v585, %v582
      %v709 = vpack.c.bf16 %v593, %v590
      %v710 = vpack.c.bf16 %v601, %v598
      %v711 = vpack.c.bf16 %v609, %v606
      %v712 = vpack.c.bf16 %v617, %v614
      %v713 = vpack.c.bf16 %v625, %v622
      %v714 = vpack.c.bf16 %v633, %v630
      %v715 = vpack.c.bf16 %v641, %v638
      %v716 = vpack.c.bf16 %v649, %v646
      %v717 = vpack.c.bf16 %v657, %v654
      %v718 = vpack.c.bf16 %v665, %v662
      %v719 = vpack.c.bf16 %v673, %v670
      %v720 = vpack.c.bf16 %v681, %v678
      %v721 = vpack.c.bf16 %v689, %v686
      %v722 = vpack.c.bf16 %v697, %v694
      %v723 = vpack.c.bf16 %v705, %v702
      %v740 = vunpack.c.l.b16 %v708
      %v741 = vunpack.c.h.b16 %v708
      %v742 = vunpack.c.l.b16 %v709
      %v743 = vunpack.c.h.b16 %v709
      %v744 = vunpack.c.l.b16 %v710
      %v745 = vunpack.c.h.b16 %v710
      %v746 = vunpack.c.l.b16 %v711
      %v747 = vunpack.c.h.b16 %v711
      %v748 = vunpack.c.l.b16 %v712
      %v749 = vunpack.c.h.b16 %v712
      %v750 = vunpack.c.l.b16 %v713
      %v751 = vunpack.c.h.b16 %v713
      %v752 = vunpack.c.l.b16 %v714
      %v753 = vunpack.c.h.b16 %v714
      %v754 = vunpack.c.l.b16 %v715
      %v755 = vunpack.c.h.b16 %v715
      %v756 = vunpack.c.l.b16 %v716
      %v757 = vunpack.c.h.b16 %v716
      %v758 = vunpack.c.l.b16 %v717
      %v759 = vunpack.c.h.b16 %v717
      %v760 = vunpack.c.l.b16 %v718
      %v761 = vunpack.c.h.b16 %v718
      %v762 = vunpack.c.l.b16 %v719
      %v763 = vunpack.c.h.b16 %v719
      %v764 = vunpack.c.l.b16 %v720
      %v765 = vunpack.c.h.b16 %v720
      %v766 = vunpack.c.l.b16 %v721
      %v767 = vunpack.c.h.b16 %v721
      %v768 = vunpack.c.l.b16 %v722
      %v769 = vunpack.c.h.b16 %v722
      %v770 = vunpack.c.l.b16 %v723
      %v771 = vunpack.c.h.b16 %v723
      %v772 = vpack.c.b16 %v740, %v740
      %v773 = vpack.c.b16 %v741, %v741
      %v774 = vpack.c.b16 %v742, %v742
      %v775 = vpack.c.b16 %v743, %v743
      %v776 = vpack.c.b16 %v744, %v744
      %v777 = vpack.c.b16 %v745, %v745
      %v778 = vpack.c.b16 %v746, %v746
      %v779 = vpack.c.b16 %v747, %v747
      %v780 = vpack.c.b16 %v748, %v748
      %v781 = vpack.c.b16 %v749, %v749
      %v782 = vpack.c.b16 %v750, %v750
      %v783 = vpack.c.b16 %v751, %v751
      %v784 = vpack.c.b16 %v752, %v752
      %v785 = vpack.c.b16 %v753, %v753
      %v786 = vpack.c.b16 %v754, %v754
      %v787 = vpack.c.b16 %v755, %v755
      %v788 = vpack.c.b16 %v756, %v756
      %v789 = vpack.c.b16 %v757, %v757
      %v790 = vpack.c.b16 %v758, %v758
      %v791 = vpack.c.b16 %v759, %v759
      %v792 = vpack.c.b16 %v760, %v760
      %v793 = vpack.c.b16 %v761, %v761
      %v794 = vpack.c.b16 %v762, %v762
      %v795 = vpack.c.b16 %v763, %v763
      %v796 = vpack.c.b16 %v764, %v764
      %v797 = vpack.c.b16 %v765, %v765
      %v798 = vpack.c.b16 %v766, %v766
      %v799 = vpack.c.b16 %v767, %v767
      %v800 = vpack.c.b16 %v768, %v768
      %v801 = vpack.c.b16 %v769, %v769
      %v802 = vpack.c.b16 %v770, %v770
      %v803 = vpack.c.b16 %v771, %v771
      %vm836 = vcmask 519168
      %837 = vst.msk [vmem:[%s201] sm:$0xf] %vm836, %v772
      %838 = vst.msk [vmem:[%s201 + $0x4] sm:$0xf] %vm836, %v773
      %839 = vst.msk [vmem:[%s201 + $0x8] sm:$0xf] %vm836, %v774
      %840 = vst.msk [vmem:[%s201 + $0xc] sm:$0xf] %vm836, %v775
      %841 = vst.msk [vmem:[%s201 + $0x10] sm:$0xf] %vm836, %v776
      %842 = vst.msk [vmem:[%s201 + $0x14] sm:$0xf] %vm836, %v777
      %843 = vst.msk [vmem:[%s201 + $0x18] sm:$0xf] %vm836, %v778
      %844 = vst.msk [vmem:[%s201 + $0x1c] sm:$0xf] %vm836, %v779
      %845 = vst.msk [vmem:[%s201 + $0x20] sm:$0xf] %vm836, %v780
      %846 = vst.msk [vmem:[%s201 + $0x24] sm:$0xf] %vm836, %v781
      %847 = vst.msk [vmem:[%s201 + $0x28] sm:$0xf] %vm836, %v782
      %848 = vst.msk [vmem:[%s201 + $0x2c] sm:$0xf] %vm836, %v783
      %849 = vst.msk [vmem:[%s201 + $0x30] sm:$0xf] %vm836, %v784
      %850 = vst.msk [vmem:[%s201 + $0x34] sm:$0xf] %vm836, %v785
      %851 = vst.msk [vmem:[%s201 + $0x38] sm:$0xf] %vm836, %v786
      %852 = vst.msk [vmem:[%s201 + $0x3c] sm:$0xf] %vm836, %v787
      %853 = vst.msk [vmem:[%s201 + $0x40] sm:$0xf] %vm836, %v788
      %854 = vst.msk [vmem:[%s201 + $0x44] sm:$0xf] %vm836, %v789
      %855 = vst.msk [vmem:[%s201 + $0x48] sm:$0xf] %vm836, %v790
      %856 = vst.msk [vmem:[%s201 + $0x4c] sm:$0xf] %vm836, %v791
      %857 = vst.msk [vmem:[%s201 + $0x50] sm:$0xf] %vm836, %v792
      %858 = vst.msk [vmem:[%s201 + $0x54] sm:$0xf] %vm836, %v793
      %859 = vst.msk [vmem:[%s201 + $0x58] sm:$0xf] %vm836, %v794
      %860 = vst.msk [vmem:[%s201 + $0x5c] sm:$0xf] %vm836, %v795
      %861 = vst.msk [vmem:[%s201 + $0x60] sm:$0xf] %vm836, %v796
      %862 = vst.msk [vmem:[%s201 + $0x64] sm:$0xf] %vm836, %v797
      %863 = vst.msk [vmem:[%s201 + $0x68] sm:$0xf] %vm836, %v798
      %864 = vst.msk [vmem:[%s201 + $0x6c] sm:$0xf] %vm836, %v799
      %865 = vst.msk [vmem:[%s201 + $0x70] sm:$0xf] %vm836, %v800
      %866 = vst.msk [vmem:[%s201 + $0x74] sm:$0xf] %vm836, %v801
      %867 = vst.msk [vmem:[%s201 + $0x78] sm:$0xf] %vm836, %v802
      %868 = vst.msk [vmem:[%s201 + $0x7c] sm:$0xf] %vm836, %v803
      %p869 = scmp.lt.s32.totalorder %s18, 1
      %s870 = scalar_select %p869, %s18, 1
      %p871 = scmp.lt.s32.totalorder %s19, 0
      %s872 = scalar_select %p871, %s19, 0
      %s873 = smul.addr %s870, 32
      %s874 = sadd.s32 %s872, %s873
      %s875 = smul.addr %s874, 4
      %s876 = scalar_lea.vmem %s3, %s875
      // Predicated region
      $region33: #{multi_head_attention_forward.4} parent=31 // pred_check
        %p877 = pneg %p116
      $region34: #{multi_head_attention_forward.4} parent=31 // pred_check_branch
        %879 = sbr.rel (%p877) target = $region36
      $region35: #{multi_head_attention_forward.4} parent=31 // pred_region
        _
      $region36: #{multi_head_attention_forward.4} parent=31 // pred_fallthru
        _
    $region32: #{multi_head_attention_forward.4} parent=5 // pred_fallthru
      _
    %p880 = scmp.le.s32.totalorder 2, %s9
    // Predicated region
    $region37: #{multi_head_attention_forward.4} parent=5 // pred_check
      %p881 = pneg %p880
    $region38: #{multi_head_attention_forward.4} parent=5 // pred_check_branch
      %883 = sbr.rel (%p881) target = $region40
    $region39: #{multi_head_attention_forward.4} parent=5 // pred_region
      %s884 = ssub.s32 %s9, 2
      // Predicated region
      $region41: #{multi_head_attention_forward.4} parent=39 // pred_check
        %p885 = pneg %p122
      $region42: #{multi_head_attention_forward.4} parent=39 // pred_check_branch
        %887 = sbr.rel (%p885) target = $region44
      $region43: #{multi_head_attention_forward.4} parent=39 // pred_region
        %p888 = scmp.lt.s32.totalorder %s20, 1
        %s889 = scalar_select %p888, %s20, 1
        %p890 = scmp.lt.s32.totalorder %s21, 0
        %s891 = scalar_select %p890, %s21, 0
        %s892 = smul.addr %s889, 32
        %s893 = sadd.s32 %s891, %s892
        %s894 = smul.addr %s893, 4
        %s895 = scalar_lea.vmem %s3, %s894
      $region44: #{multi_head_attention_forward.4} parent=39 // pred_fallthru
        _
    $region40: #{multi_head_attention_forward.4} parent=5 // pred_fallthru
      _
  $region6: #{multi_head_attention_forward.4} parent=0 // loop_footer
    %s13 = sadd.s32 1, %s9
  $region7: #{multi_head_attention_forward.4} parent=0 // loop_footer_branch
    %8 = sbr.rel target = $region3
  $region8: #{multi_head_attention_forward.4} parent=0 // loop_exit
    _

// kernel: multi_head_attention_forward.3
$region0: #{multi_head_attention_forward.3}
  #allocation0 [shape = 'u32[]', space=smem, size = 0x4, offset = 0x4, fixed_abs, tag = 'smem constant byte address 0x4 - core index']
  #allocation1 [shape = 'u32[144,128]{1,0:T(1,128)}', space=vmem, size = 0x12000, scoped, tag = 'internal scratch']
  %s0 = inlined_call_operand.vmem [shape: f32[2,128,64], index: 0, kind: input, shape index: {}]
  %s1 = inlined_call_operand.vmem [shape: bf16[128,128], index: 1, kind: input, shape index: {}]
  %s2 = inlined_call_operand.vmem [shape: f32[128,1], index: 2, kind: input, shape index: {}]
  %s3 = inlined_call_operand.vmem [shape: bf16[2,128,64], index: 3, kind: output, shape index: {}]
  %s4 = sld [smem:[#allocation0]]
  $region45: #{multi_head_attention_forward.3} parent=0
    _
  %s6 = ssub.s32 1, %s4
  %s7 = scalar_select 0, %s6, %s4
  loop: start=0, step=1, limit=4
  $region2: #{multi_head_attention_forward.3} parent=0 // loop_pre_header
    _
  $region3: #{multi_head_attention_forward.3} parent=0 // loop_header
    %s9 = sphi 0, %s13
    %p10 = scmp.ge.s32.totalorder %s9, 4
    %s16 = sphi 0, %s28
    %s17 = sphi 0, %s24
    %s18 = sphi 0, %s16
    %s19 = sphi 0, %s17
    %s20 = sphi 0, %s18
    %s21 = sphi 0, %s19
    %s33 = sphi 0, %s35
    %s36 = sphi 0, %s33
    %s37 = sphi 0, %s36
    %s53 = sphi 0, %s37
    %s57 = sphi 0, %s57
    %s59 = sphi 0, %s57
    %s60 = sphi 0, %s59
    %s74 = sphi 0, %s60
    %s78 = sphi 0, %s78
    %s80 = sphi 0, %s78
    %s81 = sphi 0, %s80
    %s95 = sphi 0, %s81
    %s103 = sphi 0, %s105
    %s106 = sphi 0, %s103
    %s107 = sphi 0, %s106
    %s123 = sphi 0, %s107
  $region4: #{multi_head_attention_forward.3} parent=0 // loop_header_branch
    %12 = sbr.rel (%p10) target = $region8
  $region5: #{multi_head_attention_forward.3} parent=0 // loop_body
    %s14 = ssub.s32 %s9, 1
    %s15 = ssub.s32 %s9, 2
    %s22 = sadd.s32 1, %s17
    %p23 = scmp.ge.s32.totalorder %s22, 1
    %s24 = scalar_select %p23, 0, %s22
    %s25 = sadd.s32 1, %s16
    %s26 = scalar_select %p23, %s25, %s16
    %p27 = scmp.ge.s32.totalorder %s26, 2
    %s28 = scalar_select %p27, 0, %s26
    %s29 = ssub.s32 %s16, %s28
    %s30 = ssub.s32 %s17, %s24
    %s31 = sor.u32 %s29, %s30
    %p32 = scmp.eq.s32.totalorder %s31, 0
    %s34 = sadd.s32 %s33, 1
    %s35 = scalar_select %p32, %s33, %s34
    %p38 = pneg %p32
    %p39 = scmp.eq.s32.totalorder %s9, 1
    %p40 = por %p38, %p39
    %p41 = scmp.ne.s32.totalorder %s33, %s36
    %p42 = scmp.eq.s32.totalorder %s9, 0
    %p43 = por %p41, %p42
    %p44 = scmp.ne.s32.totalorder %s33, %s36
    %p45 = scmp.eq.s32.totalorder %s14, 1
    %p46 = por %p44, %p45
    %p47 = scmp.ne.s32.totalorder %s36, %s37
    %p48 = scmp.eq.s32.totalorder %s14, 0
    %p49 = por %p47, %p48
    %p50 = scmp.ne.s32.totalorder %s36, %s37
    %p51 = scmp.eq.s32.totalorder %s15, 1
    %p52 = por %p50, %p51
    %p54 = scmp.ne.s32.totalorder %s37, %s53
    %p55 = scmp.eq.s32.totalorder %s15, 0
    %p56 = por %p54, %p55
    %s58 = sadd.s32 %s57, 1
    %p61 = scmp.eq.s32.totalorder %s9, 1
    %p62 = scmp.ne.s32.totalorder %s57, %s59
    %p63 = scmp.eq.s32.totalorder %s9, 0
    %p64 = por %p62, %p63
    %p65 = scmp.ne.s32.totalorder %s57, %s59
    %p66 = scmp.eq.s32.totalorder %s14, 1
    %p67 = por %p65, %p66
    %p68 = scmp.ne.s32.totalorder %s59, %s60
    %p69 = scmp.eq.s32.totalorder %s14, 0
    %p70 = por %p68, %p69
    %p71 = scmp.ne.s32.totalorder %s59, %s60
    %p72 = scmp.eq.s32.totalorder %s15, 1
    %p73 = por %p71, %p72
    %p75 = scmp.ne.s32.totalorder %s60, %s74
    %p76 = scmp.eq.s32.totalorder %s15, 0
    %p77 = por %p75, %p76
    %s79 = sadd.s32 %s78, 1
    %p82 = scmp.eq.s32.totalorder %s9, 1
    %p83 = scmp.ne.s32.totalorder %s78, %s80
    %p84 = scmp.eq.s32.totalorder %s9, 0
    %p85 = por %p83, %p84
    %p86 = scmp.ne.s32.totalorder %s78, %s80
    %p87 = scmp.eq.s32.totalorder %s14, 1
    %p88 = por %p86, %p87
    %p89 = scmp.ne.s32.totalorder %s80, %s81
    %p90 = scmp.eq.s32.totalorder %s14, 0
    %p91 = por %p89, %p90
    %p92 = scmp.ne.s32.totalorder %s80, %s81
    %p93 = scmp.eq.s32.totalorder %s15, 1
    %p94 = por %p92, %p93
    %p96 = scmp.ne.s32.totalorder %s81, %s95
    %p97 = scmp.eq.s32.totalorder %s15, 0
    %p98 = por %p96, %p97
    %s99 = ssub.s32 %s16, %s28
    %s100 = ssub.s32 %s17, %s24
    %s101 = sor.u32 %s99, %s100
    %p102 = scmp.eq.s32.totalorder %s101, 0
    %s104 = sadd.s32 %s103, 1
    %s105 = scalar_select %p102, %s103, %s104
    %p108 = pneg %p102
    %p109 = scmp.eq.s32.totalorder %s9, 1
    %p110 = por %p108, %p109
    %p111 = scmp.ne.s32.totalorder %s103, %s106
    %p112 = scmp.eq.s32.totalorder %s9, 0
    %p113 = por %p111, %p112
    %p114 = scmp.ne.s32.totalorder %s103, %s106
    %p115 = scmp.eq.s32.totalorder %s14, 1
    %p116 = por %p114, %p115
    %p117 = scmp.ne.s32.totalorder %s106, %s107
    %p118 = scmp.eq.s32.totalorder %s14, 0
    %p119 = por %p117, %p118
    %p120 = scmp.ne.s32.totalorder %s106, %s107
    %p121 = scmp.eq.s32.totalorder %s15, 1
    %p122 = por %p120, %p121
    %p124 = scmp.ne.s32.totalorder %s107, %s123
    %p125 = scmp.eq.s32.totalorder %s15, 0
    %p126 = por %p124, %p125
    %p127 = scmp.le.s32.totalorder 1, %s9
    %p128 = scmp.lt.s32.totalorder %s9, 3
    %p129 = pnand %p127, %p128
    %p130 = pneg %p129
    // Predicated region
    $region9: #{multi_head_attention_forward.3} parent=5 // pred_check
      _
    $region10: #{multi_head_attention_forward.3} parent=5 // pred_check_branch
      %132 = sbr.rel (%p129) target = $region12
    $region11: #{multi_head_attention_forward.3} parent=5 // pred_region
      %s133 = ssub.s32 %s9, 1
      // Predicated region
      $region13: #{multi_head_attention_forward.3} parent=11 // pred_check
        %p134 = pneg %p70
      $region14: #{multi_head_attention_forward.3} parent=11 // pred_check_branch
        %136 = sbr.rel (%p134) target = $region16
      $region15: #{multi_head_attention_forward.3} parent=11 // pred_region
        _
      $region16: #{multi_head_attention_forward.3} parent=11 // pred_fallthru
        _
      // Predicated region
      $region17: #{multi_head_attention_forward.3} parent=11 // pred_check
        %p137 = pneg %p91
      $region18: #{multi_head_attention_forward.3} parent=11 // pred_check_branch
        %139 = sbr.rel (%p137) target = $region20
      $region19: #{multi_head_attention_forward.3} parent=11 // pred_region
        _
      $region20: #{multi_head_attention_forward.3} parent=11 // pred_fallthru
        _
    $region12: #{multi_head_attention_forward.3} parent=5 // pred_fallthru
      _
    %p140 = scmp.lt.s32.totalorder %s9, 2
    // Predicated region
    $region21: #{multi_head_attention_forward.3} parent=5 // pred_check
      %p141 = pneg %p140
    $region22: #{multi_head_attention_forward.3} parent=5 // pred_check_branch
      %143 = sbr.rel (%p141) target = $region24
    $region23: #{multi_head_attention_forward.3} parent=5 // pred_region
      // Predicated region
      $region25: #{multi_head_attention_forward.3} parent=23 // pred_check
        %p144 = pneg %p43
      $region26: #{multi_head_attention_forward.3} parent=23 // pred_check_branch
        %146 = sbr.rel (%p144) target = $region28
      $region27: #{multi_head_attention_forward.3} parent=23 // pred_region
        %p147 = scmp.lt.s32.totalorder %s16, 1
        %s148 = scalar_select %p147, %s16, 1
        %p149 = scmp.lt.s32.totalorder %s17, 0
        %s150 = scalar_select %p149, %s17, 0
        %s151 = smul.addr %s148, 16
        %s152 = sadd.s32 %s150, %s151
        %s153 = smul.addr %s152, 8
        %s154 = scalar_lea.vmem %s0, %s153
      $region28: #{multi_head_attention_forward.3} parent=23 // pred_fallthru
        _
    $region24: #{multi_head_attention_forward.3} parent=5 // pred_fallthru
      _
    %p155 = scmp.le.s32.totalorder 1, %s9
    %p156 = scmp.lt.s32.totalorder %s9, 3
    %p157 = pnand %p155, %p156
    %p158 = pneg %p157
    // Predicated region
    $region29: #{multi_head_attention_forward.3} parent=5 // pred_check
      _
    $region30: #{multi_head_attention_forward.3} parent=5 // pred_check_branch
      %160 = sbr.rel (%p157) target = $region32
    $region31: #{multi_head_attention_forward.3} parent=5 // pred_region
      %s161 = ssub.s32 %s9, 1
      %p162 = scmp.lt.s32.totalorder %s18, 1
      %s163 = scalar_select %p162, %s18, 1
      %p164 = scmp.lt.s32.totalorder %s19, 0
      %s165 = scalar_select %p164, %s19, 0
      %s166 = smul.addr %s163, 16
      %s167 = sadd.s32 %s165, %s166
      %s168 = smul.addr %s167, 8
      %s169 = scalar_lea.vmem %s0, %s168
      %p170 = pneg %p49
      %p171 = pneg %p46
      %p172 = pneg %p70
      %p173 = pneg %p67
      %p174 = pneg %p91
      %p175 = pneg %p88
      %p176 = pneg %p119
      %p177 = pneg %p116
      %p178 = scmp.lt.s32.totalorder %s18, 1
      %s179 = scalar_select %p178, %s18, 1
      %p180 = scmp.lt.s32.totalorder %s19, 0
      %s181 = scalar_select %p180, %s19, 0
      %s182 = smul.addr %s179, 16
      %s183 = sadd.s32 %s181, %s182
      %s184 = smul.addr %s183, 4
      %s185 = scalar_lea.vmem %s3, %s184
      %p186 = scmp.lt.s32.totalorder %s18, 1
      %s187 = scalar_select %p186, %s18, 1
      %p188 = scmp.lt.s32.totalorder %s19, 0
      %s189 = scalar_select %p188, %s19, 0
      %s190 = smul.addr %s187, 16
      %s191 = sadd.s32 %s189, %s190
      %s192 = smul.addr %s191, 8
      %s193 = scalar_lea.vmem %s0, %s192
      %p194 = scmp.lt.s32.totalorder %s18, 1
      %s195 = scalar_select %p194, %s18, 1
      %p196 = scmp.lt.s32.totalorder %s19, 0
      %s197 = scalar_select %p196, %s19, 0
      %s198 = smul.addr %s195, 16
      %s199 = sadd.s32 %s197, %s198
      %s200 = smul.addr %s199, 4
      %s201 = scalar_lea.vmem %s3, %s200
      %v203 = vld [vmem:[%s193] sm:$0xff]
      %v204 = vld [vmem:[%s193 + $0x8] sm:$0xff]
      %v205 = vld [vmem:[%s193 + $0x10] sm:$0xff]
      %v206 = vld [vmem:[%s193 + $0x18] sm:$0xff]
      %v207 = vld [vmem:[%s193 + $0x20] sm:$0xff]
      %v208 = vld [vmem:[%s193 + $0x28] sm:$0xff]
      %v209 = vld [vmem:[%s193 + $0x30] sm:$0xff]
      %v210 = vld [vmem:[%s193 + $0x38] sm:$0xff]
      %v211 = vld [vmem:[%s193 + $0x40] sm:$0xff]
      %v212 = vld [vmem:[%s193 + $0x48] sm:$0xff]
      %v213 = vld [vmem:[%s193 + $0x50] sm:$0xff]
      %v214 = vld [vmem:[%s193 + $0x58] sm:$0xff]
      %v215 = vld [vmem:[%s193 + $0x60] sm:$0xff]
      %v216 = vld [vmem:[%s193 + $0x68] sm:$0xff]
      %v217 = vld [vmem:[%s193 + $0x70] sm:$0xff]
      %v218 = vld [vmem:[%s193 + $0x78] sm:$0xff]
      %v219 = vpack.c.bf16 %v204, %v203
      %v220 = vpack.c.bf16 %v206, %v205
      %v221 = vpack.c.bf16 %v208, %v207
      %v222 = vpack.c.bf16 %v210, %v209
      %v223 = vpack.c.bf16 %v212, %v211
      %v224 = vpack.c.bf16 %v214, %v213
      %v225 = vpack.c.bf16 %v216, %v215
      %v226 = vpack.c.bf16 %v218, %v217
      %v227 = vld [vmem:[%s1] sm:$0xf]
      %v228 = vld [vmem:[%s1 + $0x4] sm:$0xf]
      %v229 = vld [vmem:[%s1 + $0x8] sm:$0xf]
      %v230 = vld [vmem:[%s1 + $0xc] sm:$0xf]
      %v231 = vld [vmem:[%s1 + $0x10] sm:$0xf]
      %v232 = vld [vmem:[%s1 + $0x14] sm:$0xf]
      %v233 = vld [vmem:[%s1 + $0x18] sm:$0xf]
      %v234 = vld [vmem:[%s1 + $0x1c] sm:$0xf]
      %v235 = vld [vmem:[%s1 + $0x20] sm:$0xf]
      %v236 = vld [vmem:[%s1 + $0x24] sm:$0xf]
      %v237 = vld [vmem:[%s1 + $0x28] sm:$0xf]
      %v238 = vld [vmem:[%s1 + $0x2c] sm:$0xf]
      %v239 = vld [vmem:[%s1 + $0x30] sm:$0xf]
      %v240 = vld [vmem:[%s1 + $0x34] sm:$0xf]
      %v241 = vld [vmem:[%s1 + $0x38] sm:$0xf]
      %v242 = vld [vmem:[%s1 + $0x3c] sm:$0xf]
      %v243 = vld [vmem:[%s2] sm:$0xff]
      %v244 = vld [vmem:[%s2 + $0x8] sm:$0xff]
      %v245 = vld [vmem:[%s2 + $0x10] sm:$0xff]
      %v246 = vld [vmem:[%s2 + $0x18] sm:$0xff]
      %v247 = vld [vmem:[%s2 + $0x20] sm:$0xff]
      %v248 = vld [vmem:[%s2 + $0x28] sm:$0xff]
      %v249 = vld [vmem:[%s2 + $0x30] sm:$0xff]
      %v250 = vld [vmem:[%s2 + $0x38] sm:$0xff]
      %v251 = vld [vmem:[%s2 + $0x40] sm:$0xff]
      %v252 = vld [vmem:[%s2 + $0x48] sm:$0xff]
      %v253 = vld [vmem:[%s2 + $0x50] sm:$0xff]
      %v254 = vld [vmem:[%s2 + $0x58] sm:$0xff]
      %v255 = vld [vmem:[%s2 + $0x60] sm:$0xff]
      %v256 = vld [vmem:[%s2 + $0x68] sm:$0xff]
      %v257 = vld [vmem:[%s2 + $0x70] sm:$0xff]
      %v258 = vld [vmem:[%s2 + $0x78] sm:$0xff]
      %260 = vset.pattern.permute.xlu0 0
      %261 = vperm.xlu0 %260, %v243
      %v262 = vpop.permute.xlu0 %261
      %265 = vset.pattern.permute.xlu0 0
      %266 = vperm.xlu0 %265, %v244
      %v267 = vpop.permute.xlu0 %266
      %270 = vset.pattern.permute.xlu0 0
      %271 = vperm.xlu0 %270, %v245
      %v272 = vpop.permute.xlu0 %271
      %275 = vset.pattern.permute.xlu0 0
      %276 = vperm.xlu0 %275, %v246
      %v277 = vpop.permute.xlu0 %276
      %280 = vset.pattern.permute.xlu0 0
      %281 = vperm.xlu0 %280, %v247
      %v282 = vpop.permute.xlu0 %281
      %285 = vset.pattern.permute.xlu0 0
      %286 = vperm.xlu0 %285, %v248
      %v287 = vpop.permute.xlu0 %286
      %290 = vset.pattern.permute.xlu0 0
      %291 = vperm.xlu0 %290, %v249
      %v292 = vpop.permute.xlu0 %291
      %295 = vset.pattern.permute.xlu0 0
      %296 = vperm.xlu0 %295, %v250
      %v297 = vpop.permute.xlu0 %296
      %300 = vset.pattern.permute.xlu0 0
      %301 = vperm.xlu0 %300, %v251
      %v302 = vpop.permute.xlu0 %301
      %305 = vset.pattern.permute.xlu0 0
      %306 = vperm.xlu0 %305, %v252
      %v307 = vpop.permute.xlu0 %306
      %310 = vset.pattern.permute.xlu0 0
      %311 = vperm.xlu0 %310, %v253
      %v312 = vpop.permute.xlu0 %311
      %315 = vset.pattern.permute.xlu0 0
      %316 = vperm.xlu0 %315, %v254
      %v317 = vpop.permute.xlu0 %316
      %320 = vset.pattern.permute.xlu0 0
      %321 = vperm.xlu0 %320, %v255
      %v322 = vpop.permute.xlu0 %321
      %325 = vset.pattern.permute.xlu0 0
      %326 = vperm.xlu0 %325, %v256
      %v327 = vpop.permute.xlu0 %326
      %330 = vset.pattern.permute.xlu0 0
      %331 = vperm.xlu0 %330, %v257
      %v332 = vpop.permute.xlu0 %331
      %335 = vset.pattern.permute.xlu0 0
      %336 = vperm.xlu0 %335, %v258
      %v337 = vpop.permute.xlu0 %336
      %v355 = vunpack.c.l.b16 %v227
      %v356 = vunpack.c.l.b16 %v228
      %v357 = vunpack.c.l.b16 %v229
      %v358 = vunpack.c.l.b16 %v230
      %v359 = vunpack.c.l.b16 %v231
      %v360 = vunpack.c.l.b16 %v232
      %v361 = vunpack.c.l.b16 %v233
      %v362 = vunpack.c.l.b16 %v234
      %v363 = vunpack.c.l.b16 %v235
      %v364 = vunpack.c.l.b16 %v236
      %v365 = vunpack.c.l.b16 %v237
      %v366 = vunpack.c.l.b16 %v238
      %v367 = vunpack.c.l.b16 %v239
      %v368 = vunpack.c.l.b16 %v240
      %v369 = vunpack.c.l.b16 %v241
      %v370 = vunpack.c.l.b16 %v242
      %v371 = vpack.c.b16 %v356, %v355
      %v372 = vpack.c.b16 %v358, %v357
      %v373 = vpack.c.b16 %v360, %v359
      %v374 = vpack.c.b16 %v362, %v361
      %v375 = vpack.c.b16 %v364, %v363
      %v376 = vpack.c.b16 %v366, %v365
      %v377 = vpack.c.b16 %v368, %v367
      %v378 = vpack.c.b16 %v370, %v369
      %387 = vmatprep.subr.bf16.mxu0 0
      %388 = vmatpush1.bf16.msra.mxu0 %v219
      %389 = vmatprep.subr.bf16.mxu0 0
      %390 = vmatpush1.bf16.msra.mxu0 %v220
      %391 = vmatprep.subr.bf16.mxu0 0
      %392 = vmatpush1.bf16.msra.mxu0 %v221
      %393 = vmatprep.subr.bf16.mxu0 0
      %394 = vmatpush1.bf16.msra.mxu0 %v222
      %395 = vmatprep.subr.bf16.mxu0 0
      %396 = vmatpush1.bf16.msra.mxu0 %v223
      %397 = vmatprep.subr.bf16.mxu0 0
      %398 = vmatpush1.bf16.msra.mxu0 %v224
      %399 = vmatprep.subr.bf16.mxu0 0
      %400 = vmatpush1.bf16.msra.mxu0 %v225
      %401 = vmatprep.subr.bf16.mxu0 0
      %402 = vmatpush1.bf16.msra.mxu0 %v226
      %403 = vmatprep.subr.bf16.mxu0 0
      %404 = vmatpush1.bf16.msra.mxu0 0
      %405 = vmatprep.subr.bf16.mxu0 0
      %406 = vmatpush1.bf16.msra.mxu0 0
      %407 = vmatprep.subr.bf16.mxu0 0
      %408 = vmatpush1.bf16.msra.mxu0 0
      %409 = vmatprep.subr.bf16.mxu0 0
      %410 = vmatpush1.bf16.msra.mxu0 0
      %411 = vmatprep.subr.bf16.mxu0 0
      %412 = vmatpush1.bf16.msra.mxu0 0
      %413 = vmatprep.subr.bf16.mxu0 0
      %414 = vmatpush1.bf16.msra.mxu0 0
      %415 = vmatprep.subr.bf16.mxu0 0
      %416 = vmatpush1.bf16.msra.mxu0 0
      %417 = vmatprep.subr.bf16.mxu0 0
      %418 = vmatpush1.bf16.msra.mxu0 0
      %419 = vmatprep.mubr.bf16.mxu0 0
      %420 = vmatmul.mubr.bf16.gmra.mrb[0].mxu0 %v371
      %v421 = vpop.f32.mrb[0].mxu0
      %v422 = vadd.f32 %v262, %v421
      %v423 = vpop.f32.mrb[0].mxu0
      %v424 = vpop.f32.mrb[0].mxu0
      %v425 = vadd.f32 %v267, %v424
      %v426 = vpop.f32.mrb[0].mxu0
      %427 = vmatprep.mubr.bf16.mxu0 0
      %428 = vmatmul.mubr.bf16.gmra.mrb[0].mxu0 %v372
      %v429 = vpop.f32.mrb[0].mxu0
      %v430 = vadd.f32 %v272, %v429
      %v431 = vpop.f32.mrb[0].mxu0
      %v432 = vpop.f32.mrb[0].mxu0
      %v433 = vadd.f32 %v277, %v432
      %v434 = vpop.f32.mrb[0].mxu0
      %435 = vmatprep.mubr.bf16.mxu0 0
      %436 = vmatmul.mubr.bf16.gmra.mrb[0].mxu0 %v373
      %v437 = vpop.f32.mrb[0].mxu0
      %v438 = vadd.f32 %v282, %v437
      %v439 = vpop.f32.mrb[0].mxu0
      %v440 = vpop.f32.mrb[0].mxu0
      %v441 = vadd.f32 %v287, %v440
      %v442 = vpop.f32.mrb[0].mxu0
      %443 = vmatprep.mubr.bf16.mxu0 0
      %444 = vmatmul.mubr.bf16.gmra.mrb[0].mxu0 %v374
      %v445 = vpop.f32.mrb[0].mxu0
      %v446 = vadd.f32 %v292, %v445
      %v447 = vpop.f32.mrb[0].mxu0
      %v448 = vpop.f32.mrb[0].mxu0
      %v449 = vadd.f32 %v297, %v448
      %v450 = vpop.f32.mrb[0].mxu0
      %451 = vmatprep.mubr.bf16.mxu0 0
      %452 = vmatmul.mubr.bf16.gmra.mrb[0].mxu0 %v375
      %v453 = vpop.f32.mrb[0].mxu0
      %v454 = vadd.f32 %v302, %v453
      %v455 = vpop.f32.mrb[0].mxu0
      %v456 = vpop.f32.mrb[0].mxu0
      %v457 = vadd.f32 %v307, %v456
      %v458 = vpop.f32.mrb[0].mxu0
      %459 = vmatprep.mubr.bf16.mxu0 0
      %460 = vmatmul.mubr.bf16.gmra.mrb[0].mxu0 %v376
      %v461 = vpop.f32.mrb[0].mxu0
      %v462 = vadd.f32 %v312, %v461
      %v463 = vpop.f32.mrb[0].mxu0
      %v464 = vpop.f32.mrb[0].mxu0
      %v465 = vadd.f32 %v317, %v464
      %v466 = vpop.f32.mrb[0].mxu0
      %467 = vmatprep.mubr.bf16.mxu0 0
      %468 = vmatmul.mubr.bf16.gmra.mrb[0].mxu0 %v377
      %v469 = vpop.f32.mrb[0].mxu0
      %v470 = vadd.f32 %v322, %v469
      %v471 = vpop.f32.mrb[0].mxu0
      %v472 = vpop.f32.mrb[0].mxu0
      %v473 = vadd.f32 %v327, %v472
      %v474 = vpop.f32.mrb[0].mxu0
      %475 = vmatprep.mubr.bf16.mxu0 0
      %476 = vmatmul.mubr.bf16.gmra.mrb[0].mxu0 %v378
      %v477 = vpop.f32.mrb[0].mxu0
      %v478 = vadd.f32 %v332, %v477
      %v479 = vpop.f32.mrb[0].mxu0
      %v480 = vpop.f32.mrb[0].mxu0
      %v481 = vadd.f32 %v337, %v480
      %v482 = vpop.f32.mrb[0].mxu0
      %483 = vdwg.mxu0
      %v484 = vpack.c.bf16 %v425, %v422
      %v485 = vpack.c.bf16 %v433, %v430
      %v486 = vpack.c.bf16 %v441, %v438
      %v487 = vpack.c.bf16 %v449, %v446
      %v488 = vpack.c.bf16 %v457, %v454
      %v489 = vpack.c.bf16 %v465, %v462
      %v490 = vpack.c.bf16 %v473, %v470
      %v491 = vpack.c.bf16 %v481, %v478
      %v500 = vunpack.c.l.b16 %v484
      %v501 = vunpack.c.h.b16 %v484
      %v502 = vunpack.c.l.b16 %v485
      %v503 = vunpack.c.h.b16 %v485
      %v504 = vunpack.c.l.b16 %v486
      %v505 = vunpack.c.h.b16 %v486
      %v506 = vunpack.c.l.b16 %v487
      %v507 = vunpack.c.h.b16 %v487
      %v508 = vunpack.c.l.b16 %v488
      %v509 = vunpack.c.h.b16 %v488
      %v510 = vunpack.c.l.b16 %v489
      %v511 = vunpack.c.h.b16 %v489
      %v512 = vunpack.c.l.b16 %v490
      %v513 = vunpack.c.h.b16 %v490
      %v514 = vunpack.c.l.b16 %v491
      %v515 = vunpack.c.h.b16 %v491
      %v516 = vpack.c.b16 %v500, %v500
      %v517 = vpack.c.b16 %v501, %v501
      %v518 = vpack.c.b16 %v502, %v502
      %v519 = vpack.c.b16 %v503, %v503
      %v520 = vpack.c.b16 %v504, %v504
      %v521 = vpack.c.b16 %v505, %v505
      %v522 = vpack.c.b16 %v506, %v506
      %v523 = vpack.c.b16 %v507, %v507
      %v524 = vpack.c.b16 %v508, %v508
      %v525 = vpack.c.b16 %v509, %v509
      %v526 = vpack.c.b16 %v510, %v510
      %v527 = vpack.c.b16 %v511, %v511
      %v528 = vpack.c.b16 %v512, %v512
      %v529 = vpack.c.b16 %v513, %v513
      %v530 = vpack.c.b16 %v514, %v514
      %v531 = vpack.c.b16 %v515, %v515
      %vm548 = vcmask 519168
      %549 = vst.msk [vmem:[%s201] sm:$0xf] %vm548, %v516
      %550 = vst.msk [vmem:[%s201 + $0x4] sm:$0xf] %vm548, %v517
      %551 = vst.msk [vmem:[%s201 + $0x8] sm:$0xf] %vm548, %v518
      %552 = vst.msk [vmem:[%s201 + $0xc] sm:$0xf] %vm548, %v519
      %553 = vst.msk [vmem:[%s201 + $0x10] sm:$0xf] %vm548, %v520
      %554 = vst.msk [vmem:[%s201 + $0x14] sm:$0xf] %vm548, %v521
      %555 = vst.msk [vmem:[%s201 + $0x18] sm:$0xf] %vm548, %v522
      %556 = vst.msk [vmem:[%s201 + $0x1c] sm:$0xf] %vm548, %v523
      %557 = vst.msk [vmem:[%s201 + $0x20] sm:$0xf] %vm548, %v524
      %558 = vst.msk [vmem:[%s201 + $0x24] sm:$0xf] %vm548, %v525
      %559 = vst.msk [vmem:[%s201 + $0x28] sm:$0xf] %vm548, %v526
      %560 = vst.msk [vmem:[%s201 + $0x2c] sm:$0xf] %vm548, %v527
      %561 = vst.msk [vmem:[%s201 + $0x30] sm:$0xf] %vm548, %v528
      %562 = vst.msk [vmem:[%s201 + $0x34] sm:$0xf] %vm548, %v529
      %563 = vst.msk [vmem:[%s201 + $0x38] sm:$0xf] %vm548, %v530
      %564 = vst.msk [vmem:[%s201 + $0x3c] sm:$0xf] %vm548, %v531
      %p565 = scmp.lt.s32.totalorder %s18, 1
      %s566 = scalar_select %p565, %s18, 1
      %p567 = scmp.lt.s32.totalorder %s19, 0
      %s568 = scalar_select %p567, %s19, 0
      %s569 = smul.addr %s566, 16
      %s570 = sadd.s32 %s568, %s569
      %s571 = smul.addr %s570, 4
      %s572 = scalar_lea.vmem %s3, %s571
      // Predicated region
      $region33: #{multi_head_attention_forward.3} parent=31 // pred_check
        %p573 = pneg %p116
      $region34: #{multi_head_attention_forward.3} parent=31 // pred_check_branch
        %575 = sbr.rel (%p573) target = $region36
      $region35: #{multi_head_attention_forward.3} parent=31 // pred_region
        _
      $region36: #{multi_head_attention_forward.3} parent=31 // pred_fallthru
        _
    $region32: #{multi_head_attention_forward.3} parent=5 // pred_fallthru
      _
    %p576 = scmp.le.s32.totalorder 2, %s9
    // Predicated region
    $region37: #{multi_head_attention_forward.3} parent=5 // pred_check
      %p577 = pneg %p576
    $region38: #{multi_head_attention_forward.3} parent=5 // pred_check_branch
      %579 = sbr.rel (%p577) target = $region40
    $region39: #{multi_head_attention_forward.3} parent=5 // pred_region
      %s580 = ssub.s32 %s9, 2
      // Predicated region
      $region41: #{multi_head_attention_forward.3} parent=39 // pred_check
        %p581 = pneg %p122
      $region42: #{multi_head_attention_forward.3} parent=39 // pred_check_branch
        %583 = sbr.rel (%p581) target = $region44
      $region43: #{multi_head_attention_forward.3} parent=39 // pred_region
        %p584 = scmp.lt.s32.totalorder %s20, 1
        %s585 = scalar_select %p584, %s20, 1
        %p586 = scmp.lt.s32.totalorder %s21, 0
        %s587 = scalar_select %p586, %s21, 0
        %s588 = smul.addr %s585, 16
        %s589 = sadd.s32 %s587, %s588
        %s590 = smul.addr %s589, 4
        %s591 = scalar_lea.vmem %s3, %s590
      $region44: #{multi_head_attention_forward.3} parent=39 // pred_fallthru
        _
    $region40: #{multi_head_attention_forward.3} parent=5 // pred_fallthru
      _
  $region6: #{multi_head_attention_forward.3} parent=0 // loop_footer
    %s13 = sadd.s32 1, %s9
  $region7: #{multi_head_attention_forward.3} parent=0 // loop_footer_branch
    %8 = sbr.rel target = $region3
  $region8: #{multi_head_attention_forward.3} parent=0 // loop_exit
    _

// kernel: multi_head_attention_forward.5
$region0: #{multi_head_attention_forward.5}
  #allocation0 [shape = 'u32[]', space=smem, size = 0x4, offset = 0x4, fixed_abs, tag = 'smem constant byte address 0x4 - core index']
  #allocation1 [shape = 'u32[144,128]{1,0:T(1,128)}', space=vmem, size = 0x12000, scoped, tag = 'internal scratch']
  #allocation2 [shape = 'bf16[128,64]{1,0:T(16,128)(2,1)}', space=vmem, size = 0x8000, scoped, tag = 'scratch operand']
  %s0 = inlined_call_operand.vmem [shape: bf16[2,128,64], index: 0, kind: input, shape index: {}]
  %s1 = inlined_call_operand.vmem [shape: bf16[2,256,64], index: 1, kind: input, shape index: {}]
  %s2 = inlined_call_operand.vmem [shape: bf16[128,128], index: 2, kind: input, shape index: {}]
  %s3 = inlined_call_operand.vmem [shape: f32[128,1], index: 3, kind: input, shape index: {}]
  %s4 = inlined_call_operand.vmem [shape: f32[2,128,64], index: 4, kind: output, shape index: {}]
  %s5 = sld [smem:[#allocation0]]
  $region49: #{multi_head_attention_forward.5} parent=0
    _
  %s7 = ssub.s32 1, %s5
  %s8 = scalar_select 0, %s7, %s5
  loop: start=0, step=1, limit=4
  $region2: #{multi_head_attention_forward.5} parent=0 // loop_pre_header
    _
  $region3: #{multi_head_attention_forward.5} parent=0 // loop_header
    %s10 = sphi 0, %s14
    %p11 = scmp.ge.s32.totalorder %s10, 4
    %s17 = sphi 0, %s29
    %s18 = sphi 0, %s25
    %s19 = sphi 0, %s17
    %s20 = sphi 0, %s18
    %s21 = sphi 0, %s19
    %s22 = sphi 0, %s20
    %s34 = sphi 0, %s36
    %s37 = sphi 0, %s34
    %s38 = sphi 0, %s37
    %s54 = sphi 0, %s38
    %s60 = sphi 0, %s62
    %s63 = sphi 0, %s60
    %s64 = sphi 0, %s63
    %s80 = sphi 0, %s64
    %s84 = sphi 0, %s84
    %s86 = sphi 0, %s84
    %s87 = sphi 0, %s86
    %s101 = sphi 0, %s87
    %s105 = sphi 0, %s105
    %s107 = sphi 0, %s105
    %s108 = sphi 0, %s107
    %s122 = sphi 0, %s108
    %s130 = sphi 0, %s132
    %s133 = sphi 0, %s130
    %s134 = sphi 0, %s133
    %s150 = sphi 0, %s134
  $region4: #{multi_head_attention_forward.5} parent=0 // loop_header_branch
    %13 = sbr.rel (%p11) target = $region8
  $region5: #{multi_head_attention_forward.5} parent=0 // loop_body
    %s15 = ssub.s32 %s10, 1
    %s16 = ssub.s32 %s10, 2
    %s23 = sadd.s32 1, %s18
    %p24 = scmp.ge.s32.totalorder %s23, 1
    %s25 = scalar_select %p24, 0, %s23
    %s26 = sadd.s32 1, %s17
    %s27 = scalar_select %p24, %s26, %s17
    %p28 = scmp.ge.s32.totalorder %s27, 2
    %s29 = scalar_select %p28, 0, %s27
    %s30 = ssub.s32 %s17, %s29
    %s31 = ssub.s32 %s18, %s25
    %s32 = sor.u32 %s30, %s31
    %p33 = scmp.eq.s32.totalorder %s32, 0
    %s35 = sadd.s32 %s34, 1
    %s36 = scalar_select %p33, %s34, %s35
    %p39 = pneg %p33
    %p40 = scmp.eq.s32.totalorder %s10, 1
    %p41 = por %p39, %p40
    %p42 = scmp.ne.s32.totalorder %s34, %s37
    %p43 = scmp.eq.s32.totalorder %s10, 0
    %p44 = por %p42, %p43
    %p45 = scmp.ne.s32.totalorder %s34, %s37
    %p46 = scmp.eq.s32.totalorder %s15, 1
    %p47 = por %p45, %p46
    %p48 = scmp.ne.s32.totalorder %s37, %s38
    %p49 = scmp.eq.s32.totalorder %s15, 0
    %p50 = por %p48, %p49
    %p51 = scmp.ne.s32.totalorder %s37, %s38
    %p52 = scmp.eq.s32.totalorder %s16, 1
    %p53 = por %p51, %p52
    %p55 = scmp.ne.s32.totalorder %s38, %s54
    %p56 = scmp.eq.s32.totalorder %s16, 0
    %p57 = por %p55, %p56
    %s58 = ssub.s32 %s17, %s29
    %p59 = scmp.eq.s32.totalorder %s58, 0
    %s61 = sadd.s32 %s60, 1
    %s62 = scalar_select %p59, %s60, %s61
    %p65 = pneg %p59
    %p66 = scmp.eq.s32.totalorder %s10, 1
    %p67 = por %p65, %p66
    %p68 = scmp.ne.s32.totalorder %s60, %s63
    %p69 = scmp.eq.s32.totalorder %s10, 0
    %p70 = por %p68, %p69
    %p71 = scmp.ne.s32.totalorder %s60, %s63
    %p72 = scmp.eq.s32.totalorder %s15, 1
    %p73 = por %p71, %p72
    %p74 = scmp.ne.s32.totalorder %s63, %s64
    %p75 = scmp.eq.s32.totalorder %s15, 0
    %p76 = por %p74, %p75
    %p77 = scmp.ne.s32.totalorder %s63, %s64
    %p78 = scmp.eq.s32.totalorder %s16, 1
    %p79 = por %p77, %p78
    %p81 = scmp.ne.s32.totalorder %s64, %s80
    %p82 = scmp.eq.s32.totalorder %s16, 0
    %p83 = por %p81, %p82
    %s85 = sadd.s32 %s84, 1
    %p88 = scmp.eq.s32.totalorder %s10, 1
    %p89 = scmp.ne.s32.totalorder %s84, %s86
    %p90 = scmp.eq.s32.totalorder %s10, 0
    %p91 = por %p89, %p90
    %p92 = scmp.ne.s32.totalorder %s84, %s86
    %p93 = scmp.eq.s32.totalorder %s15, 1
    %p94 = por %p92, %p93
    %p95 = scmp.ne.s32.totalorder %s86, %s87
    %p96 = scmp.eq.s32.totalorder %s15, 0
    %p97 = por %p95, %p96
    %p98 = scmp.ne.s32.totalorder %s86, %s87
    %p99 = scmp.eq.s32.totalorder %s16, 1
    %p100 = por %p98, %p99
    %p102 = scmp.ne.s32.totalorder %s87, %s101
    %p103 = scmp.eq.s32.totalorder %s16, 0
    %p104 = por %p102, %p103
    %s106 = sadd.s32 %s105, 1
    %p109 = scmp.eq.s32.totalorder %s10, 1
    %p110 = scmp.ne.s32.totalorder %s105, %s107
    %p111 = scmp.eq.s32.totalorder %s10, 0
    %p112 = por %p110, %p111
    %p113 = scmp.ne.s32.totalorder %s105, %s107
    %p114 = scmp.eq.s32.totalorder %s15, 1
    %p115 = por %p113, %p114
    %p116 = scmp.ne.s32.totalorder %s107, %s108
    %p117 = scmp.eq.s32.totalorder %s15, 0
    %p118 = por %p116, %p117
    %p119 = scmp.ne.s32.totalorder %s107, %s108
    %p120 = scmp.eq.s32.totalorder %s16, 1
    %p121 = por %p119, %p120
    %p123 = scmp.ne.s32.totalorder %s108, %s122
    %p124 = scmp.eq.s32.totalorder %s16, 0
    %p125 = por %p123, %p124
    %s126 = ssub.s32 %s17, %s29
    %s127 = ssub.s32 %s18, %s25
    %s128 = sor.u32 %s126, %s127
    %p129 = scmp.eq.s32.totalorder %s128, 0
    %s131 = sadd.s32 %s130, 1
    %s132 = scalar_select %p129, %s130, %s131
    %p135 = pneg %p129
    %p136 = scmp.eq.s32.totalorder %s10, 1
    %p137 = por %p135, %p136
    %p138 = scmp.ne.s32.totalorder %s130, %s133
    %p139 = scmp.eq.s32.totalorder %s10, 0
    %p140 = por %p138, %p139
    %p141 = scmp.ne.s32.totalorder %s130, %s133
    %p142 = scmp.eq.s32.totalorder %s15, 1
    %p143 = por %p141, %p142
    %p144 = scmp.ne.s32.totalorder %s133, %s134
    %p145 = scmp.eq.s32.totalorder %s15, 0
    %p146 = por %p144, %p145
    %p147 = scmp.ne.s32.totalorder %s133, %s134
    %p148 = scmp.eq.s32.totalorder %s16, 1
    %p149 = por %p147, %p148
    %p151 = scmp.ne.s32.totalorder %s134, %s150
    %p152 = scmp.eq.s32.totalorder %s16, 0
    %p153 = por %p151, %p152
    %p154 = scmp.le.s32.totalorder 1, %s10
    %p155 = scmp.lt.s32.totalorder %s10, 3
    %p156 = pnand %p154, %p155
    %p157 = pneg %p156
    // Predicated region
    $region9: #{multi_head_attention_forward.5} parent=5 // pred_check
      _
    $region10: #{multi_head_attention_forward.5} parent=5 // pred_check_branch
      %159 = sbr.rel (%p156) target = $region12
    $region11: #{multi_head_attention_forward.5} parent=5 // pred_region
      %s160 = ssub.s32 %s10, 1
      // Predicated region
      $region13: #{multi_head_attention_forward.5} parent=11 // pred_check
        %p161 = pneg %p97
      $region14: #{multi_head_attention_forward.5} parent=11 // pred_check_branch
        %163 = sbr.rel (%p161) target = $region16
      $region15: #{multi_head_attention_forward.5} parent=11 // pred_region
        _
      $region16: #{multi_head_attention_forward.5} parent=11 // pred_fallthru
        _
      // Predicated region
      $region17: #{multi_head_attention_forward.5} parent=11 // pred_check
        %p164 = pneg %p118
      $region18: #{multi_head_attention_forward.5} parent=11 // pred_check_branch
        %166 = sbr.rel (%p164) target = $region20
      $region19: #{multi_head_attention_forward.5} parent=11 // pred_region
        _
      $region20: #{multi_head_attention_forward.5} parent=11 // pred_fallthru
        _
    $region12: #{multi_head_attention_forward.5} parent=5 // pred_fallthru
      _
    %p167 = scmp.lt.s32.totalorder %s10, 2
    // Predicated region
    $region21: #{multi_head_attention_forward.5} parent=5 // pred_check
      %p168 = pneg %p167
    $region22: #{multi_head_attention_forward.5} parent=5 // pred_check_branch
      %170 = sbr.rel (%p168) target = $region24
    $region23: #{multi_head_attention_forward.5} parent=5 // pred_region
      // Predicated region
      $region25: #{multi_head_attention_forward.5} parent=23 // pred_check
        %p171 = pneg %p44
      $region26: #{multi_head_attention_forward.5} parent=23 // pred_check_branch
        %173 = sbr.rel (%p171) target = $region28
      $region27: #{multi_head_attention_forward.5} parent=23 // pred_region
        %p174 = scmp.lt.s32.totalorder %s17, 1
        %s175 = scalar_select %p174, %s17, 1
        %p176 = scmp.lt.s32.totalorder %s18, 0
        %s177 = scalar_select %p176, %s18, 0
        %s178 = smul.addr %s175, 16
        %s179 = sadd.s32 %s177, %s178
        %s180 = smul.addr %s179, 4
        %s181 = scalar_lea.vmem %s0, %s180
      $region28: #{multi_head_attention_forward.5} parent=23 // pred_fallthru
        _
      // Predicated region
      $region29: #{multi_head_attention_forward.5} parent=23 // pred_check
        %p182 = pneg %p70
      $region30: #{multi_head_attention_forward.5} parent=23 // pred_check_branch
        %184 = sbr.rel (%p182) target = $region32
      $region31: #{multi_head_attention_forward.5} parent=23 // pred_region
        %p185 = scmp.lt.s32.totalorder %s17, 1
        %s186 = scalar_select %p185, %s17, 1
        %s187 = smul.addr %s186, 32
        %s188 = smul.addr %s187, 4
        %s189 = scalar_lea.vmem %s1, %s188
      $region32: #{multi_head_attention_forward.5} parent=23 // pred_fallthru
        _
    $region24: #{multi_head_attention_forward.5} parent=5 // pred_fallthru
      _
    %p190 = scmp.le.s32.totalorder 1, %s10
    %p191 = scmp.lt.s32.totalorder %s10, 3
    %p192 = pnand %p190, %p191
    %p193 = pneg %p192
    // Predicated region
    $region33: #{multi_head_attention_forward.5} parent=5 // pred_check
      _
    $region34: #{multi_head_attention_forward.5} parent=5 // pred_check_branch
      %195 = sbr.rel (%p192) target = $region36
    $region35: #{multi_head_attention_forward.5} parent=5 // pred_region
      %s196 = ssub.s32 %s10, 1
      %p197 = scmp.lt.s32.totalorder %s19, 1
      %s198 = scalar_select %p197, %s19, 1
      %p199 = scmp.lt.s32.totalorder %s20, 0
      %s200 = scalar_select %p199, %s20, 0
      %s201 = smul.addr %s198, 16
      %s202 = sadd.s32 %s200, %s201
      %s203 = smul.addr %s202, 4
      %s204 = scalar_lea.vmem %s0, %s203
      %p205 = pneg %p50
      %p206 = pneg %p47
      %p207 = scmp.lt.s32.totalorder %s19, 1
      %s208 = scalar_select %p207, %s19, 1
      %s209 = smul.addr %s208, 32
      %s210 = smul.addr %s209, 4
      %s211 = scalar_lea.vmem %s1, %s210
      %p212 = pneg %p76
      %p213 = pneg %p73
      %p214 = pneg %p97
      %p215 = pneg %p94
      %p216 = pneg %p118
      %p217 = pneg %p115
      %p218 = pneg %p146
      %p219 = pneg %p143
      %p220 = scmp.lt.s32.totalorder %s19, 1
      %s221 = scalar_select %p220, %s19, 1
      %p222 = scmp.lt.s32.totalorder %s20, 0
      %s223 = scalar_select %p222, %s20, 0
      %s224 = smul.addr %s221, 16
      %s225 = sadd.s32 %s223, %s224
      %s226 = smul.addr %s225, 8
      %s227 = scalar_lea.vmem %s4, %s226
      %p228 = scmp.lt.s32.totalorder %s19, 1
      %s229 = scalar_select %p228, %s19, 1
      %p230 = scmp.lt.s32.totalorder %s20, 0
      %s231 = scalar_select %p230, %s20, 0
      %s232 = smul.addr %s229, 16
      %s233 = sadd.s32 %s231, %s232
      %s234 = smul.addr %s233, 4
      %s235 = scalar_lea.vmem %s0, %s234
      %p236 = scmp.lt.s32.totalorder %s19, 1
      %s237 = scalar_select %p236, %s19, 1
      %s238 = smul.addr %s237, 32
      %s239 = smul.addr %s238, 4
      %s240 = scalar_lea.vmem %s1, %s239
      %p241 = scmp.lt.s32.totalorder %s19, 1
      %s242 = scalar_select %p241, %s19, 1
      %p243 = scmp.lt.s32.totalorder %s20, 0
      %s244 = scalar_select %p243, %s20, 0
      %s245 = smul.addr %s242, 16
      %s246 = sadd.s32 %s244, %s245
      %s247 = smul.addr %s246, 8
      %s248 = scalar_lea.vmem %s4, %s247
      %v250 = vld [vmem:[%s235] sm:$0xf]
      %v251 = vld [vmem:[%s235 + $0x4] sm:$0xf]
      %v252 = vld [vmem:[%s235 + $0x8] sm:$0xf]
      %v253 = vld [vmem:[%s235 + $0xc] sm:$0xf]
      %v254 = vld [vmem:[%s240] sm:$0xf]
      %v255 = vld [vmem:[%s240 + $0x4] sm:$0xf]
      %v256 = vld [vmem:[%s240 + $0x8] sm:$0xf]
      %v257 = vld [vmem:[%s240 + $0xc] sm:$0xf]
      %v258 = vld [vmem:[%s240 + $0x40] sm:$0xf]
      %v259 = vld [vmem:[%s240 + $0x44] sm:$0xf]
      %v260 = vld [vmem:[%s240 + $0x48] sm:$0xf]
      %v261 = vld [vmem:[%s240 + $0x4c] sm:$0xf]
      %v266 = vunpack.c.l.b16 %v250
      %v267 = vunpack.c.l.b16 %v251
      %v268 = vunpack.c.l.b16 %v252
      %v269 = vunpack.c.l.b16 %v253
      %v270 = vpack.c.b16 %v267, %v266
      %v271 = vpack.c.b16 %v269, %v268
      %274 = vxpose.xlu0.c.b16.start [1/8] %v270, 128
      %275 = vxpose.xlu0.c.b16.cont [2/8] %v271, 128
      %276 = vxpose.xlu0.c.b16.cont [3/8] 0, 128
      %277 = vxpose.xlu0.c.b16.cont [4/8] 0, 128
      %278 = vxpose.xlu0.c.b16.cont [5/8] 0, 128
      %279 = vxpose.xlu0.c.b16.cont [6/8] 0, 128
      %280 = vxpose.xlu0.c.b16.cont [7/8] 0, 128
      %281 = vxpose.xlu0.c.b16.end [8/8] 0, 128
      %v282 = vpop.trf.xlu0
      %v283 = vpop.trf.xlu0
      %v284 = vpop.trf.xlu0
      %v285 = vpop.trf.xlu0
      %v286 = vpop.trf.xlu0
      %v287 = vpop.trf.xlu0
      %v288 = vpop.trf.xlu0
      %v289 = vpop.trf.xlu0
      %v294 = vunpack.c.l.b16 %v254
      %v295 = vunpack.c.l.b16 %v255
      %v296 = vunpack.c.l.b16 %v256
      %v297 = vunpack.c.l.b16 %v257
      %v298 = vpack.c.b16 %v295, %v294
      %v299 = vpack.c.b16 %v297, %v296
      %vm302 = vcmask 261120
      %v304 = vsel %vm302, %v282, 0
      %v307 = vsel %vm302, %v283, 0
      %v310 = vsel %vm302, %v284, 0
      %v313 = vsel %vm302, %v285, 0
      %315 = vmatprep.subr.bf16.mxu0 0
      %316 = vmatpush1.bf16.msra.mxu0 %v298
      %317 = vmatprep.subr.bf16.mxu0 0
      %318 = vmatpush1.bf16.msra.mxu0 %v299
      %319 = vmatprep.subr.bf16.mxu0 0
      %320 = vmatpush1.bf16.msra.mxu0 0
      %321 = vmatprep.subr.bf16.mxu0 0
      %322 = vmatpush1.bf16.msra.mxu0 0
      %323 = vmatprep.subr.bf16.mxu0 0
      %324 = vmatpush1.bf16.msra.mxu0 0
      %325 = vmatprep.subr.bf16.mxu0 0
      %326 = vmatpush1.bf16.msra.mxu0 0
      %327 = vmatprep.subr.bf16.mxu0 0
      %328 = vmatpush1.bf16.msra.mxu0 0
      %329 = vmatprep.subr.bf16.mxu0 0
      %330 = vmatpush1.bf16.msra.mxu0 0
      %331 = vmatprep.subr.bf16.mxu0 0
      %332 = vmatpush1.bf16.msra.mxu0 0
      %333 = vmatprep.subr.bf16.mxu0 0
      %334 = vmatpush1.bf16.msra.mxu0 0
      %335 = vmatprep.subr.bf16.mxu0 0
      %336 = vmatpush1.bf16.msra.mxu0 0
      %337 = vmatprep.subr.bf16.mxu0 0
      %338 = vmatpush1.bf16.msra.mxu0 0
      %339 = vmatprep.subr.bf16.mxu0 0
      %340 = vmatpush1.bf16.msra.mxu0 0
      %341 = vmatprep.subr.bf16.mxu0 0
      %342 = vmatpush1.bf16.msra.mxu0 0
      %343 = vmatprep.subr.bf16.mxu0 0
      %344 = vmatpush1.bf16.msra.mxu0 0
      %345 = vmatprep.subr.bf16.mxu0 0
      %346 = vmatpush1.bf16.msra.mxu0 0
      %347 = vmatprep.mubr.bf16.mxu0 0
      %348 = vmatmul.mubr.bf16.gmra.mrb[0].mxu0 %v304
      %v349 = vpop.f32.mrb[0].mxu0
      %v350 = vadd.f32 0.0, %v349
      %v351 = vpop.f32.mrb[0].mxu0
      %v352 = vpop.f32.mrb[0].mxu0
      %v353 = vadd.f32 0.0, %v352
      %v354 = vpop.f32.mrb[0].mxu0
      %355 = vmatprep.mubr.bf16.mxu0 0
      %356 = vmatmul.mubr.bf16.gmra.mrb[0].mxu0 %v307
      %v357 = vpop.f32.mrb[0].mxu0
      %v358 = vadd.f32 0.0, %v357
      %v359 = vpop.f32.mrb[0].mxu0
      %v360 = vpop.f32.mrb[0].mxu0
      %v361 = vadd.f32 0.0, %v360
      %v362 = vpop.f32.mrb[0].mxu0
      %363 = vmatprep.mubr.bf16.mxu0 0
      %364 = vmatmul.mubr.bf16.gmra.mrb[0].mxu0 %v310
      %v365 = vpop.f32.mrb[0].mxu0
      %v366 = vadd.f32 0.0, %v365
      %v367 = vpop.f32.mrb[0].mxu0
      %v368 = vpop.f32.mrb[0].mxu0
      %v369 = vadd.f32 0.0, %v368
      %v370 = vpop.f32.mrb[0].mxu0
      %371 = vmatprep.mubr.bf16.mxu0 0
      %372 = vmatmul.mubr.bf16.gmra.mrb[0].mxu0 %v313
      %v373 = vpop.f32.mrb[0].mxu0
      %v374 = vadd.f32 0.0, %v373
      %v375 = vpop.f32.mrb[0].mxu0
      %v376 = vpop.f32.mrb[0].mxu0
      %v377 = vadd.f32 0.0, %v376
      %v378 = vpop.f32.mrb[0].mxu0
      %379 = vdwg.mxu0
      %vm380 = vcmask 523264
      %v381 = vsel %vm380, %v350, -inf
      %382 = vmax.xlane.f32.xlu0 %v381
      %v383 = vpop.xlane.xlu0 %382
      %v384 = vsel %vm380, %v353, -inf
      %385 = vmax.xlane.f32.xlu0 %v384
      %v386 = vpop.xlane.xlu0 %385
      %v387 = vsel %vm380, %v358, -inf
      %388 = vmax.xlane.f32.xlu0 %v387
      %v389 = vpop.xlane.xlu0 %388
      %v390 = vsel %vm380, %v361, -inf
      %391 = vmax.xlane.f32.xlu0 %v390
      %v392 = vpop.xlane.xlu0 %391
      %v393 = vsel %vm380, %v366, -inf
      %394 = vmax.xlane.f32.xlu0 %v393
      %v395 = vpop.xlane.xlu0 %394
      %v396 = vsel %vm380, %v369, -inf
      %397 = vmax.xlane.f32.xlu0 %v396
      %v398 = vpop.xlane.xlu0 %397
      %v399 = vsel %vm380, %v374, -inf
      %400 = vmax.xlane.f32.xlu0 %v399
      %v401 = vpop.xlane.xlu0 %400
      %v402 = vsel %vm380, %v377, -inf
      %403 = vmax.xlane.f32.xlu0 %v402
      %v404 = vpop.xlane.xlu0 %403
      %v405 = vsub.f32 %v350, %v383
      %v406 = vsub.f32 %v353, %v386
      %v407 = vsub.f32 %v358, %v389
      %v408 = vsub.f32 %v361, %v392
      %v409 = vsub.f32 %v366, %v395
      %v410 = vsub.f32 %v369, %v398
      %v411 = vsub.f32 %v374, %v401
      %v412 = vsub.f32 %v377, %v404
      %v413 = vmul.f32 %v405, 1.442695
      %v414 = vpow.pop %v413
      %v415 = vmul.f32 %v406, 1.442695
      %v416 = vpow.pop %v415
      %v417 = vmul.f32 %v407, 1.442695
      %v418 = vpow.pop %v417
      %v419 = vmul.f32 %v408, 1.442695
      %v420 = vpow.pop %v419
      %v421 = vmul.f32 %v409, 1.442695
      %v422 = vpow.pop %v421
      %v423 = vmul.f32 %v410, 1.442695
      %v424 = vpow.pop %v423
      %v425 = vmul.f32 %v411, 1.442695
      %v426 = vpow.pop %v425
      %v427 = vmul.f32 %v412, 1.442695
      %v428 = vpow.pop %v427
      %v429 = vsel %vm380, %v414, 0.0
      %430 = vadd.xlane.f32.xlu0 %v429
      %v431 = vpop.xlane.xlu0 %430
      %v432 = vsel %vm380, %v416, 0.0
      %433 = vadd.xlane.f32.xlu0 %v432
      %v434 = vpop.xlane.xlu0 %433
      %v435 = vsel %vm380, %v418, 0.0
      %436 = vadd.xlane.f32.xlu0 %v435
      %v437 = vpop.xlane.xlu0 %436
      %v438 = vsel %vm380, %v420, 0.0
      %439 = vadd.xlane.f32.xlu0 %v438
      %v440 = vpop.xlane.xlu0 %439
      %v441 = vsel %vm380, %v422, 0.0
      %442 = vadd.xlane.f32.xlu0 %v441
      %v443 = vpop.xlane.xlu0 %442
      %v444 = vsel %vm380, %v424, 0.0
      %445 = vadd.xlane.f32.xlu0 %v444
      %v446 = vpop.xlane.xlu0 %445
      %v447 = vsel %vm380, %v426, 0.0
      %448 = vadd.xlane.f32.xlu0 %v447
      %v449 = vpop.xlane.xlu0 %448
      %v450 = vsel %vm380, %v428, 0.0
      %451 = vadd.xlane.f32.xlu0 %v450
      %v452 = vpop.xlane.xlu0 %451
      %v453 = vrcp.pop %v431
      %v454 = vrcp.pop %v434
      %v455 = vrcp.pop %v437
      %v456 = vrcp.pop %v440
      %v457 = vrcp.pop %v443
      %v458 = vrcp.pop %v446
      %v459 = vrcp.pop %v449
      %v460 = vrcp.pop %v452
      %v461 = vmul.f32 %v414, %v453
      %v462 = vmul.f32 %v416, %v454
      %v463 = vmul.f32 %v418, %v455
      %v464 = vmul.f32 %v420, %v456
      %v465 = vmul.f32 %v422, %v457
      %v466 = vmul.f32 %v424, %v458
      %v467 = vmul.f32 %v426, %v459
      %v468 = vmul.f32 %v428, %v460
      %v469 = vpack.c.bf16 %v462, %v461
      %v470 = vpack.c.bf16 %v464, %v463
      %v471 = vpack.c.bf16 %v466, %v465
      %v472 = vpack.c.bf16 %v468, %v467
      %v477 = vunpack.c.l.b16 %v258
      %v478 = vunpack.c.l.b16 %v259
      %v479 = vunpack.c.l.b16 %v260
      %v480 = vunpack.c.l.b16 %v261
      %v481 = vpack.c.b16 %v478, %v477
      %v482 = vpack.c.b16 %v480, %v479
      %v484 = vsel %vm380, %v481, 0
      %v487 = vsel %vm380, %v482, 0
      %v490 = vsel %vm380, %v469, 0
      %v493 = vsel %vm380, %v470, 0
      %v496 = vsel %vm380, %v471, 0
      %v499 = vsel %vm380, %v472, 0
      %501 = vmatprep.subr.bf16.mxu0 0
      %502 = vmatpush1.bf16.xpose.msra.mxu0 %v490
      %503 = vmatprep.subr.bf16.mxu0 0
      %504 = vmatpush1.bf16.xpose.msra.mxu0 %v493
      %505 = vmatprep.subr.bf16.mxu0 0
      %506 = vmatpush1.bf16.xpose.msra.mxu0 %v496
      %507 = vmatprep.subr.bf16.mxu0 0
      %508 = vmatpush1.bf16.xpose.msra.mxu0 %v499
      %509 = vmatprep.subr.bf16.mxu0 0
      %510 = vmatpush1.bf16.xpose.msra.mxu0 0
      %511 = vmatprep.subr.bf16.mxu0 0
      %512 = vmatpush1.bf16.xpose.msra.mxu0 0
      %513 = vmatprep.subr.bf16.mxu0 0
      %514 = vmatpush1.bf16.xpose.msra.mxu0 0
      %515 = vmatprep.subr.bf16.mxu0 0
      %516 = vmatpush1.bf16.xpose.msra.mxu0 0
      %517 = vmatprep.subr.bf16.mxu0 0
      %518 = vmatpush1.bf16.xpose.msra.mxu0 0
      %519 = vmatprep.subr.bf16.mxu0 0
      %520 = vmatpush1.bf16.xpose.msra.mxu0 0
      %521 = vmatprep.subr.bf16.mxu0 0
      %522 = vmatpush1.bf16.xpose.msra.mxu0 0
      %523 = vmatprep.subr.bf16.mxu0 0
      %524 = vmatpush1.bf16.xpose.msra.mxu0 0
      %525 = vmatprep.subr.bf16.mxu0 0
      %526 = vmatpush1.bf16.xpose.msra.mxu0 0
      %527 = vmatprep.subr.bf16.mxu0 0
      %528 = vmatpush1.bf16.xpose.msra.mxu0 0
      %529 = vmatprep.subr.bf16.mxu0 0
      %530 = vmatpush1.bf16.xpose.msra.mxu0 0
      %531 = vmatprep.subr.bf16.mxu0 0
      %532 = vmatpush1.bf16.xpose.msra.mxu0 0
      %533 = vmatprep.mubr.bf16.mxu0 0
      %534 = vmatmul.mubr.bf16.gmra.mrb[0].mxu0 %v484
      %v535 = vpop.f32.mrb[0].mxu0
      %v536 = vadd.f32 0.0, %v535
      %v537 = vpop.f32.mrb[0].mxu0
      %v538 = vpop.f32.mrb[0].mxu0
      %v539 = vadd.f32 0.0, %v538
      %v540 = vpop.f32.mrb[0].mxu0
      %541 = vmatprep.mubr.bf16.mxu0 0
      %542 = vmatmul.mubr.bf16.gmra.mrb[0].mxu0 %v487
      %v543 = vpop.f32.mrb[0].mxu0
      %v544 = vadd.f32 0.0, %v543
      %v545 = vpop.f32.mrb[0].mxu0
      %v546 = vpop.f32.mrb[0].mxu0
      %v547 = vadd.f32 0.0, %v546
      %v548 = vpop.f32.mrb[0].mxu0
      %549 = vdwg.mxu0
      %v550 = vpack.c.bf16 %v539, %v536
      %v551 = vpack.c.bf16 %v547, %v544
      %552 = vst.msk [vmem:[#allocation2] sm:$0xff] %vm380, %v550
      %553 = vst.msk [vmem:[#allocation2 + $0x8] sm:$0xff] %vm380, %v551
      %v554 = vld [vmem:[%s235 + $0x10] sm:$0xf]
      %v555 = vld [vmem:[%s235 + $0x14] sm:$0xf]
      %v556 = vld [vmem:[%s235 + $0x18] sm:$0xf]
      %v557 = vld [vmem:[%s235 + $0x1c] sm:$0xf]
      %v558 = vld [vmem:[%s240 + $0x10] sm:$0xf]
      %v559 = vld [vmem:[%s240 + $0x14] sm:$0xf]
      %v560 = vld [vmem:[%s240 + $0x18] sm:$0xf]
      %v561 = vld [vmem:[%s240 + $0x1c] sm:$0xf]
      %v562 = vld [vmem:[%s240 + $0x50] sm:$0xf]
      %v563 = vld [vmem:[%s240 + $0x54] sm:$0xf]
      %v564 = vld [vmem:[%s240 + $0x58] sm:$0xf]
      %v565 = vld [vmem:[%s240 + $0x5c] sm:$0xf]
      %v570 = vunpack.c.l.b16 %v554
      %v571 = vunpack.c.l.b16 %v555
      %v572 = vunpack.c.l.b16 %v556
      %v573 = vunpack.c.l.b16 %v557
      %v574 = vpack.c.b16 %v571, %v570
      %v575 = vpack.c.b16 %v573, %v572
      %578 = vxpose.xlu0.c.b16.start [1/8] %v574, 128
      %579 = vxpose.xlu0.c.b16.cont [2/8] %v575, 128
      %580 = vxpose.xlu0.c.b16.cont [3/8] 0, 128
      %581 = vxpose.xlu0.c.b16.cont [4/8] 0, 128
      %582 = vxpose.xlu0.c.b16.cont [5/8] 0, 128
      %583 = vxpose.xlu0.c.b16.cont [6/8] 0, 128
      %584 = vxpose.xlu0.c.b16.cont [7/8] 0, 128
      %585 = vxpose.xlu0.c.b16.end [8/8] 0, 128
      %v586 = vpop.trf.xlu0
      %v587 = vpop.trf.xlu0
      %v588 = vpop.trf.xlu0
      %v589 = vpop.trf.xlu0
      %v590 = vpop.trf.xlu0
      %v591 = vpop.trf.xlu0
      %v592 = vpop.trf.xlu0
      %v593 = vpop.trf.xlu0
      %v598 = vunpack.c.l.b16 %v558
      %v599 = vunpack.c.l.b16 %v559
      %v600 = vunpack.c.l.b16 %v560
      %v601 = vunpack.c.l.b16 %v561
      %v602 = vpack.c.b16 %v599, %v598
      %v603 = vpack.c.b16 %v601, %v600
      %v607 = vsel %vm302, %v586, 0
      %v610 = vsel %vm302, %v587, 0
      %v613 = vsel %vm302, %v588, 0
      %v616 = vsel %vm302, %v589, 0
      %618 = vmatprep.subr.bf16.mxu0 0
      %619 = vmatpush1.bf16.msra.mxu0 %v602
      %620 = vmatprep.subr.bf16.mxu0 0
      %621 = vmatpush1.bf16.msra.mxu0 %v603
      %622 = vmatprep.subr.bf16.mxu0 0
      %623 = vmatpush1.bf16.msra.mxu0 0
      %624 = vmatprep.subr.bf16.mxu0 0
      %625 = vmatpush1.bf16.msra.mxu0 0
      %626 = vmatprep.subr.bf16.mxu0 0
      %627 = vmatpush1.bf16.msra.mxu0 0
      %628 = vmatprep.subr.bf16.mxu0 0
      %629 = vmatpush1.bf16.msra.mxu0 0
      %630 = vmatprep.subr.bf16.mxu0 0
      %631 = vmatpush1.bf16.msra.mxu0 0
      %632 = vmatprep.subr.bf16.mxu0 0
      %633 = vmatpush1.bf16.msra.mxu0 0
      %634 = vmatprep.subr.bf16.mxu0 0
      %635 = vmatpush1.bf16.msra.mxu0 0
      %636 = vmatprep.subr.bf16.mxu0 0
      %637 = vmatpush1.bf16.msra.mxu0 0
      %638 = vmatprep.subr.bf16.mxu0 0
      %639 = vmatpush1.bf16.msra.mxu0 0
      %640 = vmatprep.subr.bf16.mxu0 0
      %641 = vmatpush1.bf16.msra.mxu0 0
      %642 = vmatprep.subr.bf16.mxu0 0
      %643 = vmatpush1.bf16.msra.mxu0 0
      %644 = vmatprep.subr.bf16.mxu0 0
      %645 = vmatpush1.bf16.msra.mxu0 0
      %646 = vmatprep.subr.bf16.mxu0 0
      %647 = vmatpush1.bf16.msra.mxu0 0
      %648 = vmatprep.subr.bf16.mxu0 0
      %649 = vmatpush1.bf16.msra.mxu0 0
      %650 = vmatprep.mubr.bf16.mxu0 0
      %651 = vmatmul.mubr.bf16.gmra.mrb[0].mxu0 %v607
      %v652 = vpop.f32.mrb[0].mxu0
      %v653 = vadd.f32 0.0, %v652
      %v654 = vpop.f32.mrb[0].mxu0
      %v655 = vpop.f32.mrb[0].mxu0
      %v656 = vadd.f32 0.0, %v655
      %v657 = vpop.f32.mrb[0].mxu0
      %658 = vmatprep.mubr.bf16.mxu0 0
      %659 = vmatmul.mubr.bf16.gmra.mrb[0].mxu0 %v610
      %v660 = vpop.f32.mrb[0].mxu0
      %v661 = vadd.f32 0.0, %v660
      %v662 = vpop.f32.mrb[0].mxu0
      %v663 = vpop.f32.mrb[0].mxu0
      %v664 = vadd.f32 0.0, %v663
      %v665 = vpop.f32.mrb[0].mxu0
      %666 = vmatprep.mubr.bf16.mxu0 0
      %667 = vmatmul.mubr.bf16.gmra.mrb[0].mxu0 %v613
      %v668 = vpop.f32.mrb[0].mxu0
      %v669 = vadd.f32 0.0, %v668
      %v670 = vpop.f32.mrb[0].mxu0
      %v671 = vpop.f32.mrb[0].mxu0
      %v672 = vadd.f32 0.0, %v671
      %v673 = vpop.f32.mrb[0].mxu0
      %674 = vmatprep.mubr.bf16.mxu0 0
      %675 = vmatmul.mubr.bf16.gmra.mrb[0].mxu0 %v616
      %v676 = vpop.f32.mrb[0].mxu0
      %v677 = vadd.f32 0.0, %v676
      %v678 = vpop.f32.mrb[0].mxu0
      %v679 = vpop.f32.mrb[0].mxu0
      %v680 = vadd.f32 0.0, %v679
      %v681 = vpop.f32.mrb[0].mxu0
      %682 = vdwg.mxu0
      %v683 = vsel %vm380, %v653, -inf
      %684 = vmax.xlane.f32.xlu0 %v683
      %v685 = vpop.xlane.xlu0 %684
      %v686 = vsel %vm380, %v656, -inf
      %687 = vmax.xlane.f32.xlu0 %v686
      %v688 = vpop.xlane.xlu0 %687
      %v689 = vsel %vm380, %v661, -inf
      %690 = vmax.xlane.f32.xlu0 %v689
      %v691 = vpop.xlane.xlu0 %690
      %v692 = vsel %vm380, %v664, -inf
      %693 = vmax.xlane.f32.xlu0 %v692
      %v694 = vpop.xlane.xlu0 %693
      %v695 = vsel %vm380, %v669, -inf
      %696 = vmax.xlane.f32.xlu0 %v695
      %v697 = vpop.xlane.xlu0 %696
      %v698 = vsel %vm380, %v672, -inf
      %699 = vmax.xlane.f32.xlu0 %v698
      %v700 = vpop.xlane.xlu0 %699
      %v701 = vsel %vm380, %v677, -inf
      %702 = vmax.xlane.f32.xlu0 %v701
      %v703 = vpop.xlane.xlu0 %702
      %v704 = vsel %vm380, %v680, -inf
      %705 = vmax.xlane.f32.xlu0 %v704
      %v706 = vpop.xlane.xlu0 %705
      %v707 = vsub.f32 %v653, %v685
      %v708 = vsub.f32 %v656, %v688
      %v709 = vsub.f32 %v661, %v691
      %v710 = vsub.f32 %v664, %v694
      %v711 = vsub.f32 %v669, %v697
      %v712 = vsub.f32 %v672, %v700
      %v713 = vsub.f32 %v677, %v703
      %v714 = vsub.f32 %v680, %v706
      %v715 = vmul.f32 %v707, 1.442695
      %v716 = vpow.pop %v715
      %v717 = vmul.f32 %v708, 1.442695
      %v718 = vpow.pop %v717
      %v719 = vmul.f32 %v709, 1.442695
      %v720 = vpow.pop %v719
      %v721 = vmul.f32 %v710, 1.442695
      %v722 = vpow.pop %v721
      %v723 = vmul.f32 %v711, 1.442695
      %v724 = vpow.pop %v723
      %v725 = vmul.f32 %v712, 1.442695
      %v726 = vpow.pop %v725
      %v727 = vmul.f32 %v713, 1.442695
      %v728 = vpow.pop %v727
      %v729 = vmul.f32 %v714, 1.442695
      %v730 = vpow.pop %v729
      %v731 = vsel %vm380, %v716, 0.0
      %732 = vadd.xlane.f32.xlu0 %v731
      %v733 = vpop.xlane.xlu0 %732
      %v734 = vsel %vm380, %v718, 0.0
      %735 = vadd.xlane.f32.xlu0 %v734
      %v736 = vpop.xlane.xlu0 %735
      %v737 = vsel %vm380, %v720, 0.0
      %738 = vadd.xlane.f32.xlu0 %v737
      %v739 = vpop.xlane.xlu0 %738
      %v740 = vsel %vm380, %v722, 0.0
      %741 = vadd.xlane.f32.xlu0 %v740
      %v742 = vpop.xlane.xlu0 %741
      %v743 = vsel %vm380, %v724, 0.0
      %744 = vadd.xlane.f32.xlu0 %v743
      %v745 = vpop.xlane.xlu0 %744
      %v746 = vsel %vm380, %v726, 0.0
      %747 = vadd.xlane.f32.xlu0 %v746
      %v748 = vpop.xlane.xlu0 %747
      %v749 = vsel %vm380, %v728, 0.0
      %750 = vadd.xlane.f32.xlu0 %v749
      %v751 = vpop.xlane.xlu0 %750
      %v752 = vsel %vm380, %v730, 0.0
      %753 = vadd.xlane.f32.xlu0 %v752
      %v754 = vpop.xlane.xlu0 %753
      %v755 = vrcp.pop %v733
      %v756 = vrcp.pop %v736
      %v757 = vrcp.pop %v739
      %v758 = vrcp.pop %v742
      %v759 = vrcp.pop %v745
      %v760 = vrcp.pop %v748
      %v761 = vrcp.pop %v751
      %v762 = vrcp.pop %v754
      %v763 = vmul.f32 %v716, %v755
      %v764 = vmul.f32 %v718, %v756
      %v765 = vmul.f32 %v720, %v757
      %v766 = vmul.f32 %v722, %v758
      %v767 = vmul.f32 %v724, %v759
      %v768 = vmul.f32 %v726, %v760
      %v769 = vmul.f32 %v728, %v761
      %v770 = vmul.f32 %v730, %v762
      %v771 = vpack.c.bf16 %v764, %v763
      %v772 = vpack.c.bf16 %v766, %v765
      %v773 = vpack.c.bf16 %v768, %v767
      %v774 = vpack.c.bf16 %v770, %v769
      %v779 = vunpack.c.l.b16 %v562
      %v780 = vunpack.c.l.b16 %v563
      %v781 = vunpack.c.l.b16 %v564
      %v782 = vunpack.c.l.b16 %v565
      %v783 = vpack.c.b16 %v780, %v779
      %v784 = vpack.c.b16 %v782, %v781
      %v786 = vsel %vm380, %v783, 0
      %v789 = vsel %vm380, %v784, 0
      %v792 = vsel %vm380, %v771, 0
      %v795 = vsel %vm380, %v772, 0
      %v798 = vsel %vm380, %v773, 0
      %v801 = vsel %vm380, %v774, 0
      %803 = vmatprep.subr.bf16.mxu0 0
      %804 = vmatpush1.bf16.xpose.msra.mxu0 %v792
      %805 = vmatprep.subr.bf16.mxu0 0
      %806 = vmatpush1.bf16.xpose.msra.mxu0 %v795
      %807 = vmatprep.subr.bf16.mxu0 0
      %808 = vmatpush1.bf16.xpose.msra.mxu0 %v798
      %809 = vmatprep.subr.bf16.mxu0 0
      %810 = vmatpush1.bf16.xpose.msra.mxu0 %v801
      %811 = vmatprep.subr.bf16.mxu0 0
      %812 = vmatpush1.bf16.xpose.msra.mxu0 0
      %813 = vmatprep.subr.bf16.mxu0 0
      %814 = vmatpush1.bf16.xpose.msra.mxu0 0
      %815 = vmatprep.subr.bf16.mxu0 0
      %816 = vmatpush1.bf16.xpose.msra.mxu0 0
      %817 = vmatprep.subr.bf16.mxu0 0
      %818 = vmatpush1.bf16.xpose.msra.mxu0 0
      %819 = vmatprep.subr.bf16.mxu0 0
      %820 = vmatpush1.bf16.xpose.msra.mxu0 0
      %821 = vmatprep.subr.bf16.mxu0 0
      %822 = vmatpush1.bf16.xpose.msra.mxu0 0
      %823 = vmatprep.subr.bf16.mxu0 0
      %824 = vmatpush1.bf16.xpose.msra.mxu0 0
      %825 = vmatprep.subr.bf16.mxu0 0
      %826 = vmatpush1.bf16.xpose.msra.mxu0 0
      %827 = vmatprep.subr.bf16.mxu0 0
      %828 = vmatpush1.bf16.xpose.msra.mxu0 0
      %829 = vmatprep.subr.bf16.mxu0 0
      %830 = vmatpush1.bf16.xpose.msra.mxu0 0
      %831 = vmatprep.subr.bf16.mxu0 0
      %832 = vmatpush1.bf16.xpose.msra.mxu0 0
      %833 = vmatprep.subr.bf16.mxu0 0
      %834 = vmatpush1.bf16.xpose.msra.mxu0 0
      %835 = vmatprep.mubr.bf16.mxu0 0
      %836 = vmatmul.mubr.bf16.gmra.mrb[0].mxu0 %v786
      %v837 = vpop.f32.mrb[0].mxu0
      %v838 = vadd.f32 0.0, %v837
      %v839 = vpop.f32.mrb[0].mxu0
      %v840 = vpop.f32.mrb[0].mxu0
      %v841 = vadd.f32 0.0, %v840
      %v842 = vpop.f32.mrb[0].mxu0
      %843 = vmatprep.mubr.bf16.mxu0 0
      %844 = vmatmul.mubr.bf16.gmra.mrb[0].mxu0 %v789
      %v845 = vpop.f32.mrb[0].mxu0
      %v846 = vadd.f32 0.0, %v845
      %v847 = vpop.f32.mrb[0].mxu0
      %v848 = vpop.f32.mrb[0].mxu0
      %v849 = vadd.f32 0.0, %v848
      %v850 = vpop.f32.mrb[0].mxu0
      %851 = vdwg.mxu0
      %v852 = vpack.c.bf16 %v841, %v838
      %v853 = vpack.c.bf16 %v849, %v846
      %854 = vst.msk [vmem:[#allocation2 + $0x10] sm:$0xff] %vm380, %v852
      %855 = vst.msk [vmem:[#allocation2 + $0x18] sm:$0xff] %vm380, %v853
      %v856 = vld [vmem:[%s235 + $0x20] sm:$0xf]
      %v857 = vld [vmem:[%s235 + $0x24] sm:$0xf]
      %v858 = vld [vmem:[%s235 + $0x28] sm:$0xf]
      %v859 = vld [vmem:[%s235 + $0x2c] sm:$0xf]
      %v860 = vld [vmem:[%s240 + $0x20] sm:$0xf]
      %v861 = vld [vmem:[%s240 + $0x24] sm:$0xf]
      %v862 = vld [vmem:[%s240 + $0x28] sm:$0xf]
      %v863 = vld [vmem:[%s240 + $0x2c] sm:$0xf]
      %v864 = vld [vmem:[%s240 + $0x60] sm:$0xf]
      %v865 = vld [vmem:[%s240 + $0x64] sm:$0xf]
      %v866 = vld [vmem:[%s240 + $0x68] sm:$0xf]
      %v867 = vld [vmem:[%s240 + $0x6c] sm:$0xf]
      %v872 = vunpack.c.l.b16 %v856
      %v873 = vunpack.c.l.b16 %v857
      %v874 = vunpack.c.l.b16 %v858
      %v875 = vunpack.c.l.b16 %v859
      %v876 = vpack.c.b16 %v873, %v872
      %v877 = vpack.c.b16 %v875, %v874
      %880 = vxpose.xlu0.c.b16.start [1/8] %v876, 128
      %881 = vxpose.xlu0.c.b16.cont [2/8] %v877, 128
      %882 = vxpose.xlu0.c.b16.cont [3/8] 0, 128
      %883 = vxpose.xlu0.c.b16.cont [4/8] 0, 128
      %884 = vxpose.xlu0.c.b16.cont [5/8] 0, 128
      %885 = vxpose.xlu0.c.b16.cont [6/8] 0, 128
      %886 = vxpose.xlu0.c.b16.cont [7/8] 0, 128
      %887 = vxpose.xlu0.c.b16.end [8/8] 0, 128
      %v888 = vpop.trf.xlu0
      %v889 = vpop.trf.xlu0
      %v890 = vpop.trf.xlu0
      %v891 = vpop.trf.xlu0
      %v892 = vpop.trf.xlu0
      %v893 = vpop.trf.xlu0
      %v894 = vpop.trf.xlu0
      %v895 = vpop.trf.xlu0
      %v900 = vunpack.c.l.b16 %v860
      %v901 = vunpack.c.l.b16 %v861
      %v902 = vunpack.c.l.b16 %v862
      %v903 = vunpack.c.l.b16 %v863
      %v904 = vpack.c.b16 %v901, %v900
      %v905 = vpack.c.b16 %v903, %v902
      %v909 = vsel %vm302, %v888, 0
      %v912 = vsel %vm302, %v889, 0
      %v915 = vsel %vm302, %v890, 0
      %v918 = vsel %vm302, %v891, 0
      %920 = vmatprep.subr.bf16.mxu0 0
      %921 = vmatpush1.bf16.msra.mxu0 %v904
      %922 = vmatprep.subr.bf16.mxu0 0
      %923 = vmatpush1.bf16.msra.mxu0 %v905
      %924 = vmatprep.subr.bf16.mxu0 0
      %925 = vmatpush1.bf16.msra.mxu0 0
      %926 = vmatprep.subr.bf16.mxu0 0
      %927 = vmatpush1.bf16.msra.mxu0 0
      %928 = vmatprep.subr.bf16.mxu0 0
      %929 = vmatpush1.bf16.msra.mxu0 0
      %930 = vmatprep.subr.bf16.mxu0 0
      %931 = vmatpush1.bf16.msra.mxu0 0
      %932 = vmatprep.subr.bf16.mxu0 0
      %933 = vmatpush1.bf16.msra.mxu0 0
      %934 = vmatprep.subr.bf16.mxu0 0
      %935 = vmatpush1.bf16.msra.mxu0 0
      %936 = vmatprep.subr.bf16.mxu0 0
      %937 = vmatpush1.bf16.msra.mxu0 0
      %938 = vmatprep.subr.bf16.mxu0 0
      %939 = vmatpush1.bf16.msra.mxu0 0
      %940 = vmatprep.subr.bf16.mxu0 0
      %941 = vmatpush1.bf16.msra.mxu0 0
      %942 = vmatprep.subr.bf16.mxu0 0
      %943 = vmatpush1.bf16.msra.mxu0 0
      %944 = vmatprep.subr.bf16.mxu0 0
      %945 = vmatpush1.bf16.msra.mxu0 0
      %946 = vmatprep.subr.bf16.mxu0 0
      %947 = vmatpush1.bf16.msra.mxu0 0
      %948 = vmatprep.subr.bf16.mxu0 0
      %949 = vmatpush1.bf16.msra.mxu0 0
      %950 = vmatprep.subr.bf16.mxu0 0
      %951 = vmatpush1.bf16.msra.mxu0 0
      %952 = vmatprep.mubr.bf16.mxu0 0
      %953 = vmatmul.mubr.bf16.gmra.mrb[0].mxu0 %v909
      %v954 = vpop.f32.mrb[0].mxu0
      %v955 = vadd.f32 0.0, %v954
      %v956 = vpop.f32.mrb[0].mxu0
      %v957 = vpop.f32.mrb[0].mxu0
      %v958 = vadd.f32 0.0, %v957
      %v959 = vpop.f32.mrb[0].mxu0
      %960 = vmatprep.mubr.bf16.mxu0 0
      %961 = vmatmul.mubr.bf16.gmra.mrb[0].mxu0 %v912
      %v962 = vpop.f32.mrb[0].mxu0
      %v963 = vadd.f32 0.0, %v962
      %v964 = vpop.f32.mrb[0].mxu0
      %v965 = vpop.f32.mrb[0].mxu0
      %v966 = vadd.f32 0.0, %v965
      %v967 = vpop.f32.mrb[0].mxu0
      %968 = vmatprep.mubr.bf16.mxu0 0
      %969 = vmatmul.mubr.bf16.gmra.mrb[0].mxu0 %v915
      %v970 = vpop.f32.mrb[0].mxu0
      %v971 = vadd.f32 0.0, %v970
      %v972 = vpop.f32.mrb[0].mxu0
      %v973 = vpop.f32.mrb[0].mxu0
      %v974 = vadd.f32 0.0, %v973
      %v975 = vpop.f32.mrb[0].mxu0
      %976 = vmatprep.mubr.bf16.mxu0 0
      %977 = vmatmul.mubr.bf16.gmra.mrb[0].mxu0 %v918
      %v978 = vpop.f32.mrb[0].mxu0
      %v979 = vadd.f32 0.0, %v978
      %v980 = vpop.f32.mrb[0].mxu0
      %v981 = vpop.f32.mrb[0].mxu0
      %v982 = vadd.f32 0.0, %v981
      %v983 = vpop.f32.mrb[0].mxu0
      %984 = vdwg.mxu0
      %v985 = vsel %vm380, %v955, -inf
      %986 = vmax.xlane.f32.xlu0 %v985
      %v987 = vpop.xlane.xlu0 %986
      %v988 = vsel %vm380, %v958, -inf
      %989 = vmax.xlane.f32.xlu0 %v988
      %v990 = vpop.xlane.xlu0 %989
      %v991 = vsel %vm380, %v963, -inf
      %992 = vmax.xlane.f32.xlu0 %v991
      %v993 = vpop.xlane.xlu0 %992
      %v994 = vsel %vm380, %v966, -inf
      %995 = vmax.xlane.f32.xlu0 %v994
      %v996 = vpop.xlane.xlu0 %995
      %v997 = vsel %vm380, %v971, -inf
      %998 = vmax.xlane.f32.xlu0 %v997
      %v999 = vpop.xlane.xlu0 %998
      %v1000 = vsel %vm380, %v974, -inf
      %1001 = vmax.xlane.f32.xlu0 %v1000
      %v1002 = vpop.xlane.xlu0 %1001
      %v1003 = vsel %vm380, %v979, -inf
      %1004 = vmax.xlane.f32.xlu0 %v1003
      %v1005 = vpop.xlane.xlu0 %1004
      %v1006 = vsel %vm380, %v982, -inf
      %1007 = vmax.xlane.f32.xlu0 %v1006
      %v1008 = vpop.xlane.xlu0 %1007
      %v1009 = vsub.f32 %v955, %v987
      %v1010 = vsub.f32 %v958, %v990
      %v1011 = vsub.f32 %v963, %v993
      %v1012 = vsub.f32 %v966, %v996
      %v1013 = vsub.f32 %v971, %v999
      %v1014 = vsub.f32 %v974, %v1002
      %v1015 = vsub.f32 %v979, %v1005
      %v1016 = vsub.f32 %v982, %v1008
      %v1017 = vmul.f32 %v1009, 1.442695
      %v1018 = vpow.pop %v1017
      %v1019 = vmul.f32 %v1010, 1.442695
      %v1020 = vpow.pop %v1019
      %v1021 = vmul.f32 %v1011, 1.442695
      %v1022 = vpow.pop %v1021
      %v1023 = vmul.f32 %v1012, 1.442695
      %v1024 = vpow.pop %v1023
      %v1025 = vmul.f32 %v1013, 1.442695
      %v1026 = vpow.pop %v1025
      %v1027 = vmul.f32 %v1014, 1.442695
      %v1028 = vpow.pop %v1027
      %v1029 = vmul.f32 %v1015, 1.442695
      %v1030 = vpow.pop %v1029
      %v1031 = vmul.f32 %v1016, 1.442695
      %v1032 = vpow.pop %v1031
      %v1033 = vsel %vm380, %v1018, 0.0
      %1034 = vadd.xlane.f32.xlu0 %v1033
      %v1035 = vpop.xlane.xlu0 %1034
      %v1036 = vsel %vm380, %v1020, 0.0
      %1037 = vadd.xlane.f32.xlu0 %v1036
      %v1038 = vpop.xlane.xlu0 %1037
      %v1039 = vsel %vm380, %v1022, 0.0
      %1040 = vadd.xlane.f32.xlu0 %v1039
      %v1041 = vpop.xlane.xlu0 %1040
      %v1042 = vsel %vm380, %v1024, 0.0
      %1043 = vadd.xlane.f32.xlu0 %v1042
      %v1044 = vpop.xlane.xlu0 %1043
      %v1045 = vsel %vm380, %v1026, 0.0
      %1046 = vadd.xlane.f32.xlu0 %v1045
      %v1047 = vpop.xlane.xlu0 %1046
      %v1048 = vsel %vm380, %v1028, 0.0
      %1049 = vadd.xlane.f32.xlu0 %v1048
      %v1050 = vpop.xlane.xlu0 %1049
      %v1051 = vsel %vm380, %v1030, 0.0
      %1052 = vadd.xlane.f32.xlu0 %v1051
      %v1053 = vpop.xlane.xlu0 %1052
      %v1054 = vsel %vm380, %v1032, 0.0
      %1055 = vadd.xlane.f32.xlu0 %v1054
      %v1056 = vpop.xlane.xlu0 %1055
      %v1057 = vrcp.pop %v1035
      %v1058 = vrcp.pop %v1038
      %v1059 = vrcp.pop %v1041
      %v1060 = vrcp.pop %v1044
      %v1061 = vrcp.pop %v1047
      %v1062 = vrcp.pop %v1050
      %v1063 = vrcp.pop %v1053
      %v1064 = vrcp.pop %v1056
      %v1065 = vmul.f32 %v1018, %v1057
      %v1066 = vmul.f32 %v1020, %v1058
      %v1067 = vmul.f32 %v1022, %v1059
      %v1068 = vmul.f32 %v1024, %v1060
      %v1069 = vmul.f32 %v1026, %v1061
      %v1070 = vmul.f32 %v1028, %v1062
      %v1071 = vmul.f32 %v1030, %v1063
      %v1072 = vmul.f32 %v1032, %v1064
      %v1073 = vpack.c.bf16 %v1066, %v1065
      %v1074 = vpack.c.bf16 %v1068, %v1067
      %v1075 = vpack.c.bf16 %v1070, %v1069
      %v1076 = vpack.c.bf16 %v1072, %v1071
      %v1081 = vunpack.c.l.b16 %v864
      %v1082 = vunpack.c.l.b16 %v865
      %v1083 = vunpack.c.l.b16 %v866
      %v1084 = vunpack.c.l.b16 %v867
      %v1085 = vpack.c.b16 %v1082, %v1081
      %v1086 = vpack.c.b16 %v1084, %v1083
      %v1088 = vsel %vm380, %v1085, 0
      %v1091 = vsel %vm380, %v1086, 0
      %v1094 = vsel %vm380, %v1073, 0
      %v1097 = vsel %vm380, %v1074, 0
      %v1100 = vsel %vm380, %v1075, 0
      %v1103 = vsel %vm380, %v1076, 0
      %1105 = vmatprep.subr.bf16.mxu0 0
      %1106 = vmatpush1.bf16.xpose.msra.mxu0 %v1094
      %1107 = vmatprep.subr.bf16.mxu0 0
      %1108 = vmatpush1.bf16.xpose.msra.mxu0 %v1097
      %1109 = vmatprep.subr.bf16.mxu0 0
      %1110 = vmatpush1.bf16.xpose.msra.mxu0 %v1100
      %1111 = vmatprep.subr.bf16.mxu0 0
      %1112 = vmatpush1.bf16.xpose.msra.mxu0 %v1103
      %1113 = vmatprep.subr.bf16.mxu0 0
      %1114 = vmatpush1.bf16.xpose.msra.mxu0 0
      %1115 = vmatprep.subr.bf16.mxu0 0
      %1116 = vmatpush1.bf16.xpose.msra.mxu0 0
      %1117 = vmatprep.subr.bf16.mxu0 0
      %1118 = vmatpush1.bf16.xpose.msra.mxu0 0
      %1119 = vmatprep.subr.bf16.mxu0 0
      %1120 = vmatpush1.bf16.xpose.msra.mxu0 0
      %1121 = vmatprep.subr.bf16.mxu0 0
      %1122 = vmatpush1.bf16.xpose.msra.mxu0 0
      %1123 = vmatprep.subr.bf16.mxu0 0
      %1124 = vmatpush1.bf16.xpose.msra.mxu0 0
      %1125 = vmatprep.subr.bf16.mxu0 0
      %1126 = vmatpush1.bf16.xpose.msra.mxu0 0
      %1127 = vmatprep.subr.bf16.mxu0 0
      %1128 = vmatpush1.bf16.xpose.msra.mxu0 0
      %1129 = vmatprep.subr.bf16.mxu0 0
      %1130 = vmatpush1.bf16.xpose.msra.mxu0 0
      %1131 = vmatprep.subr.bf16.mxu0 0
      %1132 = vmatpush1.bf16.xpose.msra.mxu0 0
      %1133 = vmatprep.subr.bf16.mxu0 0
      %1134 = vmatpush1.bf16.xpose.msra.mxu0 0
      %1135 = vmatprep.subr.bf16.mxu0 0
      %1136 = vmatpush1.bf16.xpose.msra.mxu0 0
      %1137 = vmatprep.mubr.bf16.mxu0 0
      %1138 = vmatmul.mubr.bf16.gmra.mrb[0].mxu0 %v1088
      %v1139 = vpop.f32.mrb[0].mxu0
      %v1140 = vadd.f32 0.0, %v1139
      %v1141 = vpop.f32.mrb[0].mxu0
      %v1142 = vpop.f32.mrb[0].mxu0
      %v1143 = vadd.f32 0.0, %v1142
      %v1144 = vpop.f32.mrb[0].mxu0
      %1145 = vmatprep.mubr.bf16.mxu0 0
      %1146 = vmatmul.mubr.bf16.gmra.mrb[0].mxu0 %v1091
      %v1147 = vpop.f32.mrb[0].mxu0
      %v1148 = vadd.f32 0.0, %v1147
      %v1149 = vpop.f32.mrb[0].mxu0
      %v1150 = vpop.f32.mrb[0].mxu0
      %v1151 = vadd.f32 0.0, %v1150
      %v1152 = vpop.f32.mrb[0].mxu0
      %1153 = vdwg.mxu0
      %v1154 = vpack.c.bf16 %v1143, %v1140
      %v1155 = vpack.c.bf16 %v1151, %v1148
      %1156 = vst.msk [vmem:[#allocation2 + $0x20] sm:$0xff] %vm380, %v1154
      %1157 = vst.msk [vmem:[#allocation2 + $0x28] sm:$0xff] %vm380, %v1155
      %v1158 = vld [vmem:[%s235 + $0x30] sm:$0xf]
      %v1159 = vld [vmem:[%s235 + $0x34] sm:$0xf]
      %v1160 = vld [vmem:[%s235 + $0x38] sm:$0xf]
      %v1161 = vld [vmem:[%s235 + $0x3c] sm:$0xf]
      %v1162 = vld [vmem:[%s240 + $0x30] sm:$0xf]
      %v1163 = vld [vmem:[%s240 + $0x34] sm:$0xf]
      %v1164 = vld [vmem:[%s240 + $0x38] sm:$0xf]
      %v1165 = vld [vmem:[%s240 + $0x3c] sm:$0xf]
      %v1166 = vld [vmem:[%s240 + $0x70] sm:$0xf]
      %v1167 = vld [vmem:[%s240 + $0x74] sm:$0xf]
      %v1168 = vld [vmem:[%s240 + $0x78] sm:$0xf]
      %v1169 = vld [vmem:[%s240 + $0x7c] sm:$0xf]
      %v1174 = vunpack.c.l.b16 %v1158
      %v1175 = vunpack.c.l.b16 %v1159
      %v1176 = vunpack.c.l.b16 %v1160
      %v1177 = vunpack.c.l.b16 %v1161
      %v1178 = vpack.c.b16 %v1175, %v1174
      %v1179 = vpack.c.b16 %v1177, %v1176
      %1182 = vxpose.xlu0.c.b16.start [1/8] %v1178, 128
      %1183 = vxpose.xlu0.c.b16.cont [2/8] %v1179, 128
      %1184 = vxpose.xlu0.c.b16.cont [3/8] 0, 128
      %1185 = vxpose.xlu0.c.b16.cont [4/8] 0, 128
      %1186 = vxpose.xlu0.c.b16.cont [5/8] 0, 128
      %1187 = vxpose.xlu0.c.b16.cont [6/8] 0, 128
      %1188 = vxpose.xlu0.c.b16.cont [7/8] 0, 128
      %1189 = vxpose.xlu0.c.b16.end [8/8] 0, 128
      %v1190 = vpop.trf.xlu0
      %v1191 = vpop.trf.xlu0
      %v1192 = vpop.trf.xlu0
      %v1193 = vpop.trf.xlu0
      %v1194 = vpop.trf.xlu0
      %v1195 = vpop.trf.xlu0
      %v1196 = vpop.trf.xlu0
      %v1197 = vpop.trf.xlu0
      %v1202 = vunpack.c.l.b16 %v1162
      %v1203 = vunpack.c.l.b16 %v1163
      %v1204 = vunpack.c.l.b16 %v1164
      %v1205 = vunpack.c.l.b16 %v1165
      %v1206 = vpack.c.b16 %v1203, %v1202
      %v1207 = vpack.c.b16 %v1205, %v1204
      %v1211 = vsel %vm302, %v1190, 0
      %v1214 = vsel %vm302, %v1191, 0
      %v1217 = vsel %vm302, %v1192, 0
      %v1220 = vsel %vm302, %v1193, 0
      %1222 = vmatprep.subr.bf16.mxu0 0
      %1223 = vmatpush1.bf16.msra.mxu0 %v1206
      %1224 = vmatprep.subr.bf16.mxu0 0
      %1225 = vmatpush1.bf16.msra.mxu0 %v1207
      %1226 = vmatprep.subr.bf16.mxu0 0
      %1227 = vmatpush1.bf16.msra.mxu0 0
      %1228 = vmatprep.subr.bf16.mxu0 0
      %1229 = vmatpush1.bf16.msra.mxu0 0
      %1230 = vmatprep.subr.bf16.mxu0 0
      %1231 = vmatpush1.bf16.msra.mxu0 0
      %1232 = vmatprep.subr.bf16.mxu0 0
      %1233 = vmatpush1.bf16.msra.mxu0 0
      %1234 = vmatprep.subr.bf16.mxu0 0
      %1235 = vmatpush1.bf16.msra.mxu0 0
      %1236 = vmatprep.subr.bf16.mxu0 0
      %1237 = vmatpush1.bf16.msra.mxu0 0
      %1238 = vmatprep.subr.bf16.mxu0 0
      %1239 = vmatpush1.bf16.msra.mxu0 0
      %1240 = vmatprep.subr.bf16.mxu0 0
      %1241 = vmatpush1.bf16.msra.mxu0 0
      %1242 = vmatprep.subr.bf16.mxu0 0
      %1243 = vmatpush1.bf16.msra.mxu0 0
      %1244 = vmatprep.subr.bf16.mxu0 0
      %1245 = vmatpush1.bf16.msra.mxu0 0
      %1246 = vmatprep.subr.bf16.mxu0 0
      %1247 = vmatpush1.bf16.msra.mxu0 0
      %1248 = vmatprep.subr.bf16.mxu0 0
      %1249 = vmatpush1.bf16.msra.mxu0 0
      %1250 = vmatprep.subr.bf16.mxu0 0
      %1251 = vmatpush1.bf16.msra.mxu0 0
      %1252 = vmatprep.subr.bf16.mxu0 0
      %1253 = vmatpush1.bf16.msra.mxu0 0
      %1254 = vmatprep.mubr.bf16.mxu0 0
      %1255 = vmatmul.mubr.bf16.gmra.mrb[0].mxu0 %v1211
      %v1256 = vpop.f32.mrb[0].mxu0
      %v1257 = vadd.f32 0.0, %v1256
      %v1258 = vpop.f32.mrb[0].mxu0
      %v1259 = vpop.f32.mrb[0].mxu0
      %v1260 = vadd.f32 0.0, %v1259
      %v1261 = vpop.f32.mrb[0].mxu0
      %1262 = vmatprep.mubr.bf16.mxu0 0
      %1263 = vmatmul.mubr.bf16.gmra.mrb[0].mxu0 %v1214
      %v1264 = vpop.f32.mrb[0].mxu0
      %v1265 = vadd.f32 0.0, %v1264
      %v1266 = vpop.f32.mrb[0].mxu0
      %v1267 = vpop.f32.mrb[0].mxu0
      %v1268 = vadd.f32 0.0, %v1267
      %v1269 = vpop.f32.mrb[0].mxu0
      %1270 = vmatprep.mubr.bf16.mxu0 0
      %1271 = vmatmul.mubr.bf16.gmra.mrb[0].mxu0 %v1217
      %v1272 = vpop.f32.mrb[0].mxu0
      %v1273 = vadd.f32 0.0, %v1272
      %v1274 = vpop.f32.mrb[0].mxu0
      %v1275 = vpop.f32.mrb[0].mxu0
      %v1276 = vadd.f32 0.0, %v1275
      %v1277 = vpop.f32.mrb[0].mxu0
      %1278 = vmatprep.mubr.bf16.mxu0 0
      %1279 = vmatmul.mubr.bf16.gmra.mrb[0].mxu0 %v1220
      %v1280 = vpop.f32.mrb[0].mxu0
      %v1281 = vadd.f32 0.0, %v1280
      %v1282 = vpop.f32.mrb[0].mxu0
      %v1283 = vpop.f32.mrb[0].mxu0
      %v1284 = vadd.f32 0.0, %v1283
      %v1285 = vpop.f32.mrb[0].mxu0
      %1286 = vdwg.mxu0
      %v1287 = vsel %vm380, %v1257, -inf
      %1288 = vmax.xlane.f32.xlu0 %v1287
      %v1289 = vpop.xlane.xlu0 %1288
      %v1290 = vsel %vm380, %v1260, -inf
      %1291 = vmax.xlane.f32.xlu0 %v1290
      %v1292 = vpop.xlane.xlu0 %1291
      %v1293 = vsel %vm380, %v1265, -inf
      %1294 = vmax.xlane.f32.xlu0 %v1293
      %v1295 = vpop.xlane.xlu0 %1294
      %v1296 = vsel %vm380, %v1268, -inf
      %1297 = vmax.xlane.f32.xlu0 %v1296
      %v1298 = vpop.xlane.xlu0 %1297
      %v1299 = vsel %vm380, %v1273, -inf
      %1300 = vmax.xlane.f32.xlu0 %v1299
      %v1301 = vpop.xlane.xlu0 %1300
      %v1302 = vsel %vm380, %v1276, -inf
      %1303 = vmax.xlane.f32.xlu0 %v1302
      %v1304 = vpop.xlane.xlu0 %1303
      %v1305 = vsel %vm380, %v1281, -inf
      %1306 = vmax.xlane.f32.xlu0 %v1305
      %v1307 = vpop.xlane.xlu0 %1306
      %v1308 = vsel %vm380, %v1284, -inf
      %1309 = vmax.xlane.f32.xlu0 %v1308
      %v1310 = vpop.xlane.xlu0 %1309
      %v1311 = vsub.f32 %v1257, %v1289
      %v1312 = vsub.f32 %v1260, %v1292
      %v1313 = vsub.f32 %v1265, %v1295
      %v1314 = vsub.f32 %v1268, %v1298
      %v1315 = vsub.f32 %v1273, %v1301
      %v1316 = vsub.f32 %v1276, %v1304
      %v1317 = vsub.f32 %v1281, %v1307
      %v1318 = vsub.f32 %v1284, %v1310
      %v1319 = vmul.f32 %v1311, 1.442695
      %v1320 = vpow.pop %v1319
      %v1321 = vmul.f32 %v1312, 1.442695
      %v1322 = vpow.pop %v1321
      %v1323 = vmul.f32 %v1313, 1.442695
      %v1324 = vpow.pop %v1323
      %v1325 = vmul.f32 %v1314, 1.442695
      %v1326 = vpow.pop %v1325
      %v1327 = vmul.f32 %v1315, 1.442695
      %v1328 = vpow.pop %v1327
      %v1329 = vmul.f32 %v1316, 1.442695
      %v1330 = vpow.pop %v1329
      %v1331 = vmul.f32 %v1317, 1.442695
      %v1332 = vpow.pop %v1331
      %v1333 = vmul.f32 %v1318, 1.442695
      %v1334 = vpow.pop %v1333
      %v1335 = vsel %vm380, %v1320, 0.0
      %1336 = vadd.xlane.f32.xlu0 %v1335
      %v1337 = vpop.xlane.xlu0 %1336
      %v1338 = vsel %vm380, %v1322, 0.0
      %1339 = vadd.xlane.f32.xlu0 %v1338
      %v1340 = vpop.xlane.xlu0 %1339
      %v1341 = vsel %vm380, %v1324, 0.0
      %1342 = vadd.xlane.f32.xlu0 %v1341
      %v1343 = vpop.xlane.xlu0 %1342
      %v1344 = vsel %vm380, %v1326, 0.0
      %1345 = vadd.xlane.f32.xlu0 %v1344
      %v1346 = vpop.xlane.xlu0 %1345
      %v1347 = vsel %vm380, %v1328, 0.0
      %1348 = vadd.xlane.f32.xlu0 %v1347
      %v1349 = vpop.xlane.xlu0 %1348
      %v1350 = vsel %vm380, %v1330, 0.0
      %1351 = vadd.xlane.f32.xlu0 %v1350
      %v1352 = vpop.xlane.xlu0 %1351
      %v1353 = vsel %vm380, %v1332, 0.0
      %1354 = vadd.xlane.f32.xlu0 %v1353
      %v1355 = vpop.xlane.xlu0 %1354
      %v1356 = vsel %vm380, %v1334, 0.0
      %1357 = vadd.xlane.f32.xlu0 %v1356
      %v1358 = vpop.xlane.xlu0 %1357
      %v1359 = vrcp.pop %v1337
      %v1360 = vrcp.pop %v1340
      %v1361 = vrcp.pop %v1343
      %v1362 = vrcp.pop %v1346
      %v1363 = vrcp.pop %v1349
      %v1364 = vrcp.pop %v1352
      %v1365 = vrcp.pop %v1355
      %v1366 = vrcp.pop %v1358
      %v1367 = vmul.f32 %v1320, %v1359
      %v1368 = vmul.f32 %v1322, %v1360
      %v1369 = vmul.f32 %v1324, %v1361
      %v1370 = vmul.f32 %v1326, %v1362
      %v1371 = vmul.f32 %v1328, %v1363
      %v1372 = vmul.f32 %v1330, %v1364
      %v1373 = vmul.f32 %v1332, %v1365
      %v1374 = vmul.f32 %v1334, %v1366
      %v1375 = vpack.c.bf16 %v1368, %v1367
      %v1376 = vpack.c.bf16 %v1370, %v1369
      %v1377 = vpack.c.bf16 %v1372, %v1371
      %v1378 = vpack.c.bf16 %v1374, %v1373
      %v1383 = vunpack.c.l.b16 %v1166
      %v1384 = vunpack.c.l.b16 %v1167
      %v1385 = vunpack.c.l.b16 %v1168
      %v1386 = vunpack.c.l.b16 %v1169
      %v1387 = vpack.c.b16 %v1384, %v1383
      %v1388 = vpack.c.b16 %v1386, %v1385
      %v1390 = vsel %vm380, %v1387, 0
      %v1393 = vsel %vm380, %v1388, 0
      %v1396 = vsel %vm380, %v1375, 0
      %v1399 = vsel %vm380, %v1376, 0
      %v1402 = vsel %vm380, %v1377, 0
      %v1405 = vsel %vm380, %v1378, 0
      %1407 = vmatprep.subr.bf16.mxu0 0
      %1408 = vmatpush1.bf16.xpose.msra.mxu0 %v1396
      %1409 = vmatprep.subr.bf16.mxu0 0
      %1410 = vmatpush1.bf16.xpose.msra.mxu0 %v1399
      %1411 = vmatprep.subr.bf16.mxu0 0
      %1412 = vmatpush1.bf16.xpose.msra.mxu0 %v1402
      %1413 = vmatprep.subr.bf16.mxu0 0
      %1414 = vmatpush1.bf16.xpose.msra.mxu0 %v1405
      %1415 = vmatprep.subr.bf16.mxu0 0
      %1416 = vmatpush1.bf16.xpose.msra.mxu0 0
      %1417 = vmatprep.subr.bf16.mxu0 0
      %1418 = vmatpush1.bf16.xpose.msra.mxu0 0
      %1419 = vmatprep.subr.bf16.mxu0 0
      %1420 = vmatpush1.bf16.xpose.msra.mxu0 0
      %1421 = vmatprep.subr.bf16.mxu0 0
      %1422 = vmatpush1.bf16.xpose.msra.mxu0 0
      %1423 = vmatprep.subr.bf16.mxu0 0
      %1424 = vmatpush1.bf16.xpose.msra.mxu0 0
      %1425 = vmatprep.subr.bf16.mxu0 0
      %1426 = vmatpush1.bf16.xpose.msra.mxu0 0
      %1427 = vmatprep.subr.bf16.mxu0 0
      %1428 = vmatpush1.bf16.xpose.msra.mxu0 0
      %1429 = vmatprep.subr.bf16.mxu0 0
      %1430 = vmatpush1.bf16.xpose.msra.mxu0 0
      %1431 = vmatprep.subr.bf16.mxu0 0
      %1432 = vmatpush1.bf16.xpose.msra.mxu0 0
      %1433 = vmatprep.subr.bf16.mxu0 0
      %1434 = vmatpush1.bf16.xpose.msra.mxu0 0
      %1435 = vmatprep.subr.bf16.mxu0 0
      %1436 = vmatpush1.bf16.xpose.msra.mxu0 0
      %1437 = vmatprep.subr.bf16.mxu0 0
      %1438 = vmatpush1.bf16.xpose.msra.mxu0 0
      %1439 = vmatprep.mubr.bf16.mxu0 0
      %1440 = vmatmul.mubr.bf16.gmra.mrb[0].mxu0 %v1390
      %v1441 = vpop.f32.mrb[0].mxu0
      %v1442 = vadd.f32 0.0, %v1441
      %v1443 = vpop.f32.mrb[0].mxu0
      %v1444 = vpop.f32.mrb[0].mxu0
      %v1445 = vadd.f32 0.0, %v1444
      %v1446 = vpop.f32.mrb[0].mxu0
      %1447 = vmatprep.mubr.bf16.mxu0 0
      %1448 = vmatmul.mubr.bf16.gmra.mrb[0].mxu0 %v1393
      %v1449 = vpop.f32.mrb[0].mxu0
      %v1450 = vadd.f32 0.0, %v1449
      %v1451 = vpop.f32.mrb[0].mxu0
      %v1452 = vpop.f32.mrb[0].mxu0
      %v1453 = vadd.f32 0.0, %v1452
      %v1454 = vpop.f32.mrb[0].mxu0
      %1455 = vdwg.mxu0
      %v1456 = vpack.c.bf16 %v1445, %v1442
      %v1457 = vpack.c.bf16 %v1453, %v1450
      %1458 = vst.msk [vmem:[#allocation2 + $0x30] sm:$0xff] %vm380, %v1456
      %1459 = vst.msk [vmem:[#allocation2 + $0x38] sm:$0xff] %vm380, %v1457
      %v1460 = vld [vmem:[%s2] sm:$0xf]
      %v1461 = vld [vmem:[%s2 + $0x4] sm:$0xf]
      %v1462 = vld [vmem:[%s2 + $0x8] sm:$0xf]
      %v1463 = vld [vmem:[%s2 + $0xc] sm:$0xf]
      %v1464 = vld [vmem:[%s2 + $0x10] sm:$0xf]
      %v1465 = vld [vmem:[%s2 + $0x14] sm:$0xf]
      %v1466 = vld [vmem:[%s2 + $0x18] sm:$0xf]
      %v1467 = vld [vmem:[%s2 + $0x1c] sm:$0xf]
      %v1468 = vld [vmem:[%s2 + $0x20] sm:$0xf]
      %v1469 = vld [vmem:[%s2 + $0x24] sm:$0xf]
      %v1470 = vld [vmem:[%s2 + $0x28] sm:$0xf]
      %v1471 = vld [vmem:[%s2 + $0x2c] sm:$0xf]
      %v1472 = vld [vmem:[%s2 + $0x30] sm:$0xf]
      %v1473 = vld [vmem:[%s2 + $0x34] sm:$0xf]
      %v1474 = vld [vmem:[%s2 + $0x38] sm:$0xf]
      %v1475 = vld [vmem:[%s2 + $0x3c] sm:$0xf]
      %v1476 = vld [vmem:[#allocation2] sm:$0xff]
      %v1477 = vld [vmem:[#allocation2 + $0x8] sm:$0xff]
      %v1478 = vld [vmem:[#allocation2 + $0x10] sm:$0xff]
      %v1479 = vld [vmem:[#allocation2 + $0x18] sm:$0xff]
      %v1480 = vld [vmem:[#allocation2 + $0x20] sm:$0xff]
      %v1481 = vld [vmem:[#allocation2 + $0x28] sm:$0xff]
      %v1482 = vld [vmem:[#allocation2 + $0x30] sm:$0xff]
      %v1483 = vld [vmem:[#allocation2 + $0x38] sm:$0xff]
      %v1484 = vld [vmem:[%s3] sm:$0xff]
      %v1485 = vld [vmem:[%s3 + $0x8] sm:$0xff]
      %v1486 = vld [vmem:[%s3 + $0x10] sm:$0xff]
      %v1487 = vld [vmem:[%s3 + $0x18] sm:$0xff]
      %v1488 = vld [vmem:[%s3 + $0x20] sm:$0xff]
      %v1489 = vld [vmem:[%s3 + $0x28] sm:$0xff]
      %v1490 = vld [vmem:[%s3 + $0x30] sm:$0xff]
      %v1491 = vld [vmem:[%s3 + $0x38] sm:$0xff]
      %v1492 = vld [vmem:[%s3 + $0x40] sm:$0xff]
      %v1493 = vld [vmem:[%s3 + $0x48] sm:$0xff]
      %v1494 = vld [vmem:[%s3 + $0x50] sm:$0xff]
      %v1495 = vld [vmem:[%s3 + $0x58] sm:$0xff]
      %v1496 = vld [vmem:[%s3 + $0x60] sm:$0xff]
      %v1497 = vld [vmem:[%s3 + $0x68] sm:$0xff]
      %v1498 = vld [vmem:[%s3 + $0x70] sm:$0xff]
      %v1499 = vld [vmem:[%s3 + $0x78] sm:$0xff]
      %1501 = vset.pattern.permute.xlu0 0
      %1502 = vperm.xlu0 %1501, %v1484
      %v1503 = vpop.permute.xlu0 %1502
      %1506 = vset.pattern.permute.xlu0 0
      %1507 = vperm.xlu0 %1506, %v1485
      %v1508 = vpop.permute.xlu0 %1507
      %1511 = vset.pattern.permute.xlu0 0
      %1512 = vperm.xlu0 %1511, %v1486
      %v1513 = vpop.permute.xlu0 %1512
      %1516 = vset.pattern.permute.xlu0 0
      %1517 = vperm.xlu0 %1516, %v1487
      %v1518 = vpop.permute.xlu0 %1517
      %1521 = vset.pattern.permute.xlu0 0
      %1522 = vperm.xlu0 %1521, %v1488
      %v1523 = vpop.permute.xlu0 %1522
      %1526 = vset.pattern.permute.xlu0 0
      %1527 = vperm.xlu0 %1526, %v1489
      %v1528 = vpop.permute.xlu0 %1527
      %1531 = vset.pattern.permute.xlu0 0
      %1532 = vperm.xlu0 %1531, %v1490
      %v1533 = vpop.permute.xlu0 %1532
      %1536 = vset.pattern.permute.xlu0 0
      %1537 = vperm.xlu0 %1536, %v1491
      %v1538 = vpop.permute.xlu0 %1537
      %1541 = vset.pattern.permute.xlu0 0
      %1542 = vperm.xlu0 %1541, %v1492
      %v1543 = vpop.permute.xlu0 %1542
      %1546 = vset.pattern.permute.xlu0 0
      %1547 = vperm.xlu0 %1546, %v1493
      %v1548 = vpop.permute.xlu0 %1547
      %1551 = vset.pattern.permute.xlu0 0
      %1552 = vperm.xlu0 %1551, %v1494
      %v1553 = vpop.permute.xlu0 %1552
      %1556 = vset.pattern.permute.xlu0 0
      %1557 = vperm.xlu0 %1556, %v1495
      %v1558 = vpop.permute.xlu0 %1557
      %1561 = vset.pattern.permute.xlu0 0
      %1562 = vperm.xlu0 %1561, %v1496
      %v1563 = vpop.permute.xlu0 %1562
      %1566 = vset.pattern.permute.xlu0 0
      %1567 = vperm.xlu0 %1566, %v1497
      %v1568 = vpop.permute.xlu0 %1567
      %1571 = vset.pattern.permute.xlu0 0
      %1572 = vperm.xlu0 %1571, %v1498
      %v1573 = vpop.permute.xlu0 %1572
      %1576 = vset.pattern.permute.xlu0 0
      %1577 = vperm.xlu0 %1576, %v1499
      %v1578 = vpop.permute.xlu0 %1577
      %v1596 = vunpack.c.l.b16 %v1460
      %v1597 = vunpack.c.l.b16 %v1461
      %v1598 = vunpack.c.l.b16 %v1462
      %v1599 = vunpack.c.l.b16 %v1463
      %v1600 = vunpack.c.l.b16 %v1464
      %v1601 = vunpack.c.l.b16 %v1465
      %v1602 = vunpack.c.l.b16 %v1466
      %v1603 = vunpack.c.l.b16 %v1467
      %v1604 = vunpack.c.l.b16 %v1468
      %v1605 = vunpack.c.l.b16 %v1469
      %v1606 = vunpack.c.l.b16 %v1470
      %v1607 = vunpack.c.l.b16 %v1471
      %v1608 = vunpack.c.l.b16 %v1472
      %v1609 = vunpack.c.l.b16 %v1473
      %v1610 = vunpack.c.l.b16 %v1474
      %v1611 = vunpack.c.l.b16 %v1475
      %v1612 = vpack.c.b16 %v1597, %v1596
      %v1613 = vpack.c.b16 %v1599, %v1598
      %v1614 = vpack.c.b16 %v1601, %v1600
      %v1615 = vpack.c.b16 %v1603, %v1602
      %v1616 = vpack.c.b16 %v1605, %v1604
      %v1617 = vpack.c.b16 %v1607, %v1606
      %v1618 = vpack.c.b16 %v1609, %v1608
      %v1619 = vpack.c.b16 %v1611, %v1610
      %1628 = vmatprep.subr.bf16.mxu0 0
      %1629 = vmatpush1.bf16.msra.mxu0 %v1476
      %1630 = vmatprep.subr.bf16.mxu0 0
      %1631 = vmatpush1.bf16.msra.mxu0 %v1477
      %1632 = vmatprep.subr.bf16.mxu0 0
      %1633 = vmatpush1.bf16.msra.mxu0 %v1478
      %1634 = vmatprep.subr.bf16.mxu0 0
      %1635 = vmatpush1.bf16.msra.mxu0 %v1479
      %1636 = vmatprep.subr.bf16.mxu0 0
      %1637 = vmatpush1.bf16.msra.mxu0 %v1480
      %1638 = vmatprep.subr.bf16.mxu0 0
      %1639 = vmatpush1.bf16.msra.mxu0 %v1481
      %1640 = vmatprep.subr.bf16.mxu0 0
      %1641 = vmatpush1.bf16.msra.mxu0 %v1482
      %1642 = vmatprep.subr.bf16.mxu0 0
      %1643 = vmatpush1.bf16.msra.mxu0 %v1483
      %1644 = vmatprep.subr.bf16.mxu0 0
      %1645 = vmatpush1.bf16.msra.mxu0 0
      %1646 = vmatprep.subr.bf16.mxu0 0
      %1647 = vmatpush1.bf16.msra.mxu0 0
      %1648 = vmatprep.subr.bf16.mxu0 0
      %1649 = vmatpush1.bf16.msra.mxu0 0
      %1650 = vmatprep.subr.bf16.mxu0 0
      %1651 = vmatpush1.bf16.msra.mxu0 0
      %1652 = vmatprep.subr.bf16.mxu0 0
      %1653 = vmatpush1.bf16.msra.mxu0 0
      %1654 = vmatprep.subr.bf16.mxu0 0
      %1655 = vmatpush1.bf16.msra.mxu0 0
      %1656 = vmatprep.subr.bf16.mxu0 0
      %1657 = vmatpush1.bf16.msra.mxu0 0
      %1658 = vmatprep.subr.bf16.mxu0 0
      %1659 = vmatpush1.bf16.msra.mxu0 0
      %1660 = vmatprep.mubr.bf16.mxu0 0
      %1661 = vmatmul.mubr.bf16.gmra.mrb[0].mxu0 %v1612
      %v1662 = vpop.f32.mrb[0].mxu0
      %v1663 = vadd.f32 %v1503, %v1662
      %v1664 = vpop.f32.mrb[0].mxu0
      %v1665 = vpop.f32.mrb[0].mxu0
      %v1666 = vadd.f32 %v1508, %v1665
      %v1667 = vpop.f32.mrb[0].mxu0
      %1668 = vmatprep.mubr.bf16.mxu0 0
      %1669 = vmatmul.mubr.bf16.gmra.mrb[0].mxu0 %v1613
      %v1670 = vpop.f32.mrb[0].mxu0
      %v1671 = vadd.f32 %v1513, %v1670
      %v1672 = vpop.f32.mrb[0].mxu0
      %v1673 = vpop.f32.mrb[0].mxu0
      %v1674 = vadd.f32 %v1518, %v1673
      %v1675 = vpop.f32.mrb[0].mxu0
      %1676 = vmatprep.mubr.bf16.mxu0 0
      %1677 = vmatmul.mubr.bf16.gmra.mrb[0].mxu0 %v1614
      %v1678 = vpop.f32.mrb[0].mxu0
      %v1679 = vadd.f32 %v1523, %v1678
      %v1680 = vpop.f32.mrb[0].mxu0
      %v1681 = vpop.f32.mrb[0].mxu0
      %v1682 = vadd.f32 %v1528, %v1681
      %v1683 = vpop.f32.mrb[0].mxu0
      %1684 = vmatprep.mubr.bf16.mxu0 0
      %1685 = vmatmul.mubr.bf16.gmra.mrb[0].mxu0 %v1615
      %v1686 = vpop.f32.mrb[0].mxu0
      %v1687 = vadd.f32 %v1533, %v1686
      %v1688 = vpop.f32.mrb[0].mxu0
      %v1689 = vpop.f32.mrb[0].mxu0
      %v1690 = vadd.f32 %v1538, %v1689
      %v1691 = vpop.f32.mrb[0].mxu0
      %1692 = vmatprep.mubr.bf16.mxu0 0
      %1693 = vmatmul.mubr.bf16.gmra.mrb[0].mxu0 %v1616
      %v1694 = vpop.f32.mrb[0].mxu0
      %v1695 = vadd.f32 %v1543, %v1694
      %v1696 = vpop.f32.mrb[0].mxu0
      %v1697 = vpop.f32.mrb[0].mxu0
      %v1698 = vadd.f32 %v1548, %v1697
      %v1699 = vpop.f32.mrb[0].mxu0
      %1700 = vmatprep.mubr.bf16.mxu0 0
      %1701 = vmatmul.mubr.bf16.gmra.mrb[0].mxu0 %v1617
      %v1702 = vpop.f32.mrb[0].mxu0
      %v1703 = vadd.f32 %v1553, %v1702
      %v1704 = vpop.f32.mrb[0].mxu0
      %v1705 = vpop.f32.mrb[0].mxu0
      %v1706 = vadd.f32 %v1558, %v1705
      %v1707 = vpop.f32.mrb[0].mxu0
      %1708 = vmatprep.mubr.bf16.mxu0 0
      %1709 = vmatmul.mubr.bf16.gmra.mrb[0].mxu0 %v1618
      %v1710 = vpop.f32.mrb[0].mxu0
      %v1711 = vadd.f32 %v1563, %v1710
      %v1712 = vpop.f32.mrb[0].mxu0
      %v1713 = vpop.f32.mrb[0].mxu0
      %v1714 = vadd.f32 %v1568, %v1713
      %v1715 = vpop.f32.mrb[0].mxu0
      %1716 = vmatprep.mubr.bf16.mxu0 0
      %1717 = vmatmul.mubr.bf16.gmra.mrb[0].mxu0 %v1619
      %v1718 = vpop.f32.mrb[0].mxu0
      %v1719 = vadd.f32 %v1573, %v1718
      %v1720 = vpop.f32.mrb[0].mxu0
      %v1721 = vpop.f32.mrb[0].mxu0
      %v1722 = vadd.f32 %v1578, %v1721
      %v1723 = vpop.f32.mrb[0].mxu0
      %1724 = vdwg.mxu0
      %1725 = vst.msk [vmem:[%s248] sm:$0xff] %vm380, %v1663
      %1726 = vst.msk [vmem:[%s248 + $0x8] sm:$0xff] %vm380, %v1666
      %1727 = vst.msk [vmem:[%s248 + $0x10] sm:$0xff] %vm380, %v1671
      %1728 = vst.msk [vmem:[%s248 + $0x18] sm:$0xff] %vm380, %v1674
      %1729 = vst.msk [vmem:[%s248 + $0x20] sm:$0xff] %vm380, %v1679
      %1730 = vst.msk [vmem:[%s248 + $0x28] sm:$0xff] %vm380, %v1682
      %1731 = vst.msk [vmem:[%s248 + $0x30] sm:$0xff] %vm380, %v1687
      %1732 = vst.msk [vmem:[%s248 + $0x38] sm:$0xff] %vm380, %v1690
      %1733 = vst.msk [vmem:[%s248 + $0x40] sm:$0xff] %vm380, %v1695
      %1734 = vst.msk [vmem:[%s248 + $0x48] sm:$0xff] %vm380, %v1698
      %1735 = vst.msk [vmem:[%s248 + $0x50] sm:$0xff] %vm380, %v1703
      %1736 = vst.msk [vmem:[%s248 + $0x58] sm:$0xff] %vm380, %v1706
      %1737 = vst.msk [vmem:[%s248 + $0x60] sm:$0xff] %vm380, %v1711
      %1738 = vst.msk [vmem:[%s248 + $0x68] sm:$0xff] %vm380, %v1714
      %1739 = vst.msk [vmem:[%s248 + $0x70] sm:$0xff] %vm380, %v1719
      %1740 = vst.msk [vmem:[%s248 + $0x78] sm:$0xff] %vm380, %v1722
      %p1741 = scmp.lt.s32.totalorder %s19, 1
      %s1742 = scalar_select %p1741, %s19, 1
      %p1743 = scmp.lt.s32.totalorder %s20, 0
      %s1744 = scalar_select %p1743, %s20, 0
      %s1745 = smul.addr %s1742, 16
      %s1746 = sadd.s32 %s1744, %s1745
      %s1747 = smul.addr %s1746, 8
      %s1748 = scalar_lea.vmem %s4, %s1747
      // Predicated region
      $region37: #{multi_head_attention_forward.5} parent=35 // pred_check
        %p1749 = pneg %p143
      $region38: #{multi_head_attention_forward.5} parent=35 // pred_check_branch
        %1751 = sbr.rel (%p1749) target = $region40
      $region39: #{multi_head_attention_forward.5} parent=35 // pred_region
        _
      $region40: #{multi_head_attention_forward.5} parent=35 // pred_fallthru
        _
    $region36: #{multi_head_attention_forward.5} parent=5 // pred_fallthru
      _
    %p1752 = scmp.le.s32.totalorder 2, %s10
    // Predicated region
    $region41: #{multi_head_attention_forward.5} parent=5 // pred_check
      %p1753 = pneg %p1752
    $region42: #{multi_head_attention_forward.5} parent=5 // pred_check_branch
      %1755 = sbr.rel (%p1753) target = $region44
    $region43: #{multi_head_attention_forward.5} parent=5 // pred_region
      %s1756 = ssub.s32 %s10, 2
      // Predicated region
      $region45: #{multi_head_attention_forward.5} parent=43 // pred_check
        %p1757 = pneg %p149
      $region46: #{multi_head_attention_forward.5} parent=43 // pred_check_branch
        %1759 = sbr.rel (%p1757) target = $region48
      $region47: #{multi_head_attention_forward.5} parent=43 // pred_region
        %p1760 = scmp.lt.s32.totalorder %s21, 1
        %s1761 = scalar_select %p1760, %s21, 1
        %p1762 = scmp.lt.s32.totalorder %s22, 0
        %s1763 = scalar_select %p1762, %s22, 0
        %s1764 = smul.addr %s1761, 16
        %s1765 = sadd.s32 %s1763, %s1764
        %s1766 = smul.addr %s1765, 8
        %s1767 = scalar_lea.vmem %s4, %s1766
      $region48: #{multi_head_attention_forward.5} parent=43 // pred_fallthru
        _
    $region44: #{multi_head_attention_forward.5} parent=5 // pred_fallthru
      _
  $region6: #{multi_head_attention_forward.5} parent=0 // loop_footer
    %s14 = sadd.s32 1, %s10
  $region7: #{multi_head_attention_forward.5} parent=0 // loop_footer_branch
    %9 = sbr.rel target = $region3
  $region8: #{multi_head_attention_forward.5} parent=0 // loop_exit
    _

</llo_original>
